<compile_context>
chip_gen: v7x
topology: tpu7x:2x2x1
jax: 0.10.0
libtpu: 0.0.40
codegen_flags: <defaults>
</compile_context>

<pallas_src>
import functools

import jax
import jax.numpy as jnp
from jax import lax
from jax.experimental import pallas as pl
from jax.experimental.pallas import tpu as pltpu


_VMEM = pl.BlockSpec(memory_space=pltpu.MemorySpace.VMEM)


# ----------------------------------------------------------------------------
# Kernel A: conv1 (as 4 quadrant GEMMs) + bias + ReLU + fused 2x2 max-pool
#   w_ref : (6, 25)  bf16   conv1 weight, rows=Cout, cols=(ki,kj)
#   b_ref : (6, 1)   f32
#   c0..c3: (25, B*14*14) bf16 im2col cols for pool taps (di,dj)
#   o_ref : (6, B*14*14)  f32 pooled conv1 activations, cols ordered (b,oi,oj)
# ----------------------------------------------------------------------------
def _conv1_pool_kernel(w_ref, b_ref, c0, c1, c2, c3, o_ref):
    w = w_ref[...]
    y = jnp.dot(w, c0[...], preferred_element_type=jnp.float32)
    y = jnp.maximum(y, jnp.dot(w, c1[...], preferred_element_type=jnp.float32))
    y = jnp.maximum(y, jnp.dot(w, c2[...], preferred_element_type=jnp.float32))
    y = jnp.maximum(y, jnp.dot(w, c3[...], preferred_element_type=jnp.float32))
    # max over pool taps commutes with (+bias) and ReLU
    o_ref[...] = jnp.maximum(y + b_ref[...], 0.0)


# ----------------------------------------------------------------------------
# Kernel B: conv2 (4 quadrant GEMMs) + bias + ReLU + 2x2 pool + fc1 + fc2 + fc3
#   w2_ref : (150, 16) bf16     conv2 weight^T, rows=(ci,ki,kj)
#   b2_ref : (1, 16)   f32
#   c0..c3 : (25*B, 150) bf16   im2col cols, rows ordered (oi,oj,b)
#   w1p_ref: (25, 16, 120) bf16 fc1 weight permuted to [spatial, cin, out]
#   fb1/2/3: (1, 120)/(1,84)/(1,10) f32
#   w2p_ref: (120, 84) bf16, w3p_ref: (84, 10) bf16
#   o_ref  : (B, 10) f32 logits
# ----------------------------------------------------------------------------
def _conv2_pool_fc_kernel(w2_ref, b2_ref, c0, c1, c2, c3,
                          w1p_ref, fb1_ref, w2p_ref, fb2_ref, w3p_ref, fb3_ref,
                          o_ref, *, batch):
    w2 = w2_ref[...]
    y = jnp.dot(c0[...], w2, preferred_element_type=jnp.float32)
    y = jnp.maximum(y, jnp.dot(c1[...], w2, preferred_element_type=jnp.float32))
    y = jnp.maximum(y, jnp.dot(c2[...], w2, preferred_element_type=jnp.float32))
    y = jnp.maximum(y, jnp.dot(c3[...], w2, preferred_element_type=jnp.float32))
    a2 = jnp.maximum(y + b2_ref[...], 0.0)          # (25*B, 16) pooled conv2 act
    a2 = a2.astype(jnp.bfloat16)

    # fc1 as a sum over the 25 spatial positions (avoids any in-kernel reshape)
    h = jnp.zeros((batch, 120), jnp.float32)
    for s in range(25):
        h = h + jnp.dot(a2[s * batch:(s + 1) * batch, :], w1p_ref[s],
                        preferred_element_type=jnp.float32)
    h = jnp.maximum(h + fb1_ref[...], 0.0)

    h = jnp.dot(h.astype(jnp.bfloat16), w2p_ref[...],
                preferred_element_type=jnp.float32) + fb2_ref[...]
    h = jnp.maximum(h, 0.0)

    out = jnp.dot(h.astype(jnp.bfloat16), w3p_ref[...],
                  preferred_element_type=jnp.float32) + fb3_ref[...]
    o_ref[...] = out


# ----------------------------------------------------------------------------
# Host-side wrappers (im2col glue + pallas_call)
# ----------------------------------------------------------------------------
def _conv1_relu_pool(params, x):
    """x: (B,1,28,28) f32 -> (6, B*14*14) f32 pooled conv1 activations."""
    B = x.shape[0]
    xp = jnp.pad(x[:, 0], ((0, 0), (2, 2), (2, 2)))                  # (B,32,32)
    taps = jnp.stack([xp[:, ki:ki + 28, kj:kj + 28]
                      for ki in range(5) for kj in range(5)], axis=0)  # (25,B,28,28)
    cols = [taps[:, :, di::2, dj::2].reshape(25, B * 196).astype(jnp.bfloat16)
            for di in (0, 1) for dj in (0, 1)]
    M = B * 196
    ce = pl.CostEstimate(
        flops=4 * 2 * 6 * 25 * M, transcendentals=0,
        bytes_accessed=6 * 25 * 2 + 6 * 4 + 4 * 25 * M * 2 + 6 * M * 4)
    return pl.pallas_call(
        _conv1_pool_kernel,
        out_shape=jax.ShapeDtypeStruct((6, M), jnp.float32),
        in_specs=[_VMEM] * 6,
        out_specs=_VMEM,
        cost_estimate=ce,
    )(params["w1m"], params["b1"], *cols)


def _conv2_pool_fc(params, a1, batch):
    """a1: (6, B*196) -> (B, 10) logits."""
    a1r = a1.reshape(6, batch, 14, 14)
    taps = jnp.stack([a1r[:, :, ki:ki + 10, kj:kj + 10]
                      for ki in range(5) for kj in range(5)], axis=1)  # (6,25,B,10,10)
    cols = []
    for di in (0, 1):
        for dj in (0, 1):
            q = taps[:, :, :, di::2, dj::2]                # (6,25,B,5,5)
            q = q.transpose(3, 4, 2, 0, 1)                 # (oi,oj,b,ci,t)
            cols.append(q.reshape(25 * batch, 150).astype(jnp.bfloat16))
    M = 25 * batch
    ce = pl.CostEstimate(
        flops=4 * 2 * M * 150 * 16 + 25 * 2 * batch * 16 * 120
              + 2 * batch * 120 * 84 + 2 * batch * 84 * 10,
        transcendentals=0,
        bytes_accessed=4 * M * 150 * 2 + 150 * 16 * 2 + 16 * 4
                       + 25 * 16 * 120 * 2 + 120 * 4 + 120 * 84 * 2 + 84 * 4
                       + 84 * 10 * 2 + 10 * 4 + batch * 10 * 4)
    kernel = functools.partial(_conv2_pool_fc_kernel, batch=batch)
    return pl.pallas_call(
        kernel,
        out_shape=jax.ShapeDtypeStruct((batch, 10), jnp.float32),
        in_specs=[_VMEM] * 12,
        out_specs=_VMEM,
        cost_estimate=ce,
    )(params["w2t"], params["b2"], *cols,
      params["w1p"], params["fb1"], params["w2p"], params["fb2"],
      params["w3p"], params["fb3"])


def lenet_forward(params, x):
    """x: (B, 1, 28, 28) f32 -> (B, 10) logits."""
    a1 = _conv1_relu_pool(params, x)                 # (6, B*196)
    return _conv2_pool_fc(params, a1, x.shape[0])    # (B, 10)


# ----------------------------------------------------------------------------
# Parameters: PyTorch-style raw params + one-time kernel-layout preparation
# ----------------------------------------------------------------------------
def _init_params(key):
    def uniform(k, shape, fan_in):
        bound = 1.0 / jnp.sqrt(jnp.float32(fan_in))
        return jax.random.uniform(k, shape, jnp.float32, -bound, bound)

    keys = jax.random.split(key, 10)
    return {
        "conv1_w": uniform(keys[0], (6, 1, 5, 5), 25),
        "conv1_b": uniform(keys[1], (6,), 25),
        "conv2_w": uniform(keys[2], (16, 6, 5, 5), 150),
        "conv2_b": uniform(keys[3], (16,), 150),
        "fc1_w": uniform(keys[4], (120, 400), 400),   # PyTorch (out, in)
        "fc1_b": uniform(keys[5], (120,), 400),
        "fc2_w": uniform(keys[6], (84, 120), 120),
        "fc2_b": uniform(keys[7], (84,), 120),
        "fc3_w": uniform(keys[8], (10, 84), 84),
        "fc3_b": uniform(keys[9], (10,), 84),
    }


def prepare_params(raw):
    """One-time re-layout: transposes / permutes / bf16 casts done outside forward."""
    # fc1 weight permuted to [spatial s, channel c, out n]; s = oi*5 + oj
    w1p = raw["fc1_w"].T.reshape(16, 25, 120).transpose(1, 0, 2)
    return {
        "w1m": raw["conv1_w"].reshape(6, 25).astype(jnp.bfloat16),
        "b1": raw["conv1_b"].reshape(6, 1).astype(jnp.float32),
        "w2t": raw["conv2_w"].reshape(16, 150).T.astype(jnp.bfloat16),
        "b2": raw["conv2_b"].reshape(1, 16).astype(jnp.float32),
        "w1p": w1p.astype(jnp.bfloat16),
        "fb1": raw["fc1_b"].reshape(1, 120).astype(jnp.float32),
        "w2p": raw["fc2_w"].T.astype(jnp.bfloat16),
        "fb2": raw["fc2_b"].reshape(1, 84).astype(jnp.float32),
        "w3p": raw["fc3_w"].T.astype(jnp.bfloat16),
        "fb3": raw["fc3_b"].reshape(1, 10).astype(jnp.float32),
    }


# ----------------------------------------------------------------------------
# Pure-JAX reference (mirrors the PyTorch module exactly) for a sanity check
# ----------------------------------------------------------------------------
def _reference_forward(raw, x):
    y = lax.conv_general_dilated(x, raw["conv1_w"], (1, 1), ((2, 2), (2, 2)),
                                 dimension_numbers=("NCHW", "OIHW", "NCHW"))
    y = jax.nn.relu(y + raw["conv1_b"].reshape(1, 6, 1, 1))
    y = lax.reduce_window(y, -jnp.inf, lax.max, (1, 1, 2, 2), (1, 1, 2, 2), "VALID")
    y = lax.conv_general_dilated(y, raw["conv2_w"], (1, 1), ((0, 0), (0, 0)),
                                 dimension_numbers=("NCHW", "OIHW", "NCHW"))
    y = jax.nn.relu(y + raw["conv2_b"].reshape(1, 16, 1, 1))
    y = lax.reduce_window(y, -jnp.inf, lax.max, (1, 1, 2, 2), (1, 1, 2, 2), "VALID")
    y = y.reshape(y.shape[0], -1)
    y = jax.nn.relu(y @ raw["fc1_w"].T + raw["fc1_b"])
    y = jax.nn.relu(y @ raw["fc2_w"].T + raw["fc2_b"])
    return y @ raw["fc3_w"].T + raw["fc3_b"]


if __name__ == "__main__":
    key = jax.random.PRNGKey(0)
    k_params, k_x = jax.random.split(key)
    raw = _init_params(k_params)
    params = prepare_params(raw)

    # MNIST-shaped input (28x28 required by the 16*5*5 -> fc1 contract), batch=2
    x = jax.random.normal(k_x, (2, 1, 28, 28), dtype=jnp.float32)

    out = jax.block_until_ready(jax.jit(lenet_forward)(params, x))
    assert out.shape == (2, 10)
    assert bool(jnp.all(jnp.isfinite(out)))

    # numerical sanity check vs. a pure-JAX reference (loose tol: bf16 MXU inputs)
    ref = _reference_forward(raw, x)
    max_err = float(jnp.max(jnp.abs(out - ref)))
    assert max_err < 5e-2, f"kernel/reference mismatch: {max_err}"

    print("KERNEL_OK")
</pallas_src>

<mosaic_0001>
module attributes {stable_mosaic.version = 11 : i64} {
  func.func @_conv1_pool_kernel(%arg0: memref<6x25xbf16, #tpu.memory_space<vmem>>, %arg1: memref<6x1xf32, #tpu.memory_space<vmem>>, %arg2: memref<25x392xbf16, #tpu.memory_space<vmem>>, %arg3: memref<25x392xbf16, #tpu.memory_space<vmem>>, %arg4: memref<25x392xbf16, #tpu.memory_space<vmem>>, %arg5: memref<25x392xbf16, #tpu.memory_space<vmem>>, %arg6: memref<6x392xf32, #tpu.memory_space<vmem>>) attributes {dimension_semantics = [], scalar_prefetch = 0 : i64, scratch_operands = 0 : i64, tpu.core_type = #tpu.core_type<tc>} {
    %c0 = arith.constant 0 : index
    %c0_0 = arith.constant 0 : index
    %0 = vector.load %arg0[%c0, %c0_0] : memref<6x25xbf16, #tpu.memory_space<vmem>>, vector<6x25xbf16>
    %c0_1 = arith.constant 0 : index
    %c0_2 = arith.constant 0 : index
    %1 = vector.load %arg2[%c0_1, %c0_2] : memref<25x392xbf16, #tpu.memory_space<vmem>>, vector<25x392xbf16>
    %cst = arith.constant dense<0.000000e+00> : vector<6x392xf32>
    %2 = tpu.matmul %0, %1, %cst {dimension_numbers = #tpu.dot_dimension_numbers<[1], [0], [0], [1], [0, 0, 1, 1], [], []>} : vector<6x25xbf16>, vector<25x392xbf16>, vector<6x392xf32> -> vector<6x392xf32>
    %c0_3 = arith.constant 0 : index
    %c0_4 = arith.constant 0 : index
    %3 = vector.load %arg3[%c0_3, %c0_4] : memref<25x392xbf16, #tpu.memory_space<vmem>>, vector<25x392xbf16>
    %cst_5 = arith.constant dense<0.000000e+00> : vector<6x392xf32>
    %4 = tpu.matmul %0, %3, %cst_5 {dimension_numbers = #tpu.dot_dimension_numbers<[1], [0], [0], [1], [0, 0, 1, 1], [], []>} : vector<6x25xbf16>, vector<25x392xbf16>, vector<6x392xf32> -> vector<6x392xf32>
    %5 = arith.maximumf %2, %4 : vector<6x392xf32>
    %c0_6 = arith.constant 0 : index
    %c0_7 = arith.constant 0 : index
    %6 = vector.load %arg4[%c0_6, %c0_7] : memref<25x392xbf16, #tpu.memory_space<vmem>>, vector<25x392xbf16>
    %cst_8 = arith.constant dense<0.000000e+00> : vector<6x392xf32>
    %7 = tpu.matmul %0, %6, %cst_8 {dimension_numbers = #tpu.dot_dimension_numbers<[1], [0], [0], [1], [0, 0, 1, 1], [], []>} : vector<6x25xbf16>, vector<25x392xbf16>, vector<6x392xf32> -> vector<6x392xf32>
    %8 = arith.maximumf %5, %7 : vector<6x392xf32>
    %c0_9 = arith.constant 0 : index
    %c0_10 = arith.constant 0 : index
    %9 = vector.load %arg5[%c0_9, %c0_10] : memref<25x392xbf16, #tpu.memory_space<vmem>>, vector<25x392xbf16>
    %cst_11 = arith.constant dense<0.000000e+00> : vector<6x392xf32>
    %10 = tpu.matmul %0, %9, %cst_11 {dimension_numbers = #tpu.dot_dimension_numbers<[1], [0], [0], [1], [0, 0, 1, 1], [], []>} : vector<6x25xbf16>, vector<25x392xbf16>, vector<6x392xf32> -> vector<6x392xf32>
    %11 = arith.maximumf %8, %10 : vector<6x392xf32>
    %c0_12 = arith.constant 0 : index
    %c0_13 = arith.constant 0 : index
    %12 = vector.load %arg1[%c0_12, %c0_13] : memref<6x1xf32, #tpu.memory_space<vmem>>, vector<6x1xf32>
    %13 = vector.broadcast %12 : vector<6x1xf32> to vector<6x392xf32>
    %14 = arith.addf %11, %13 : vector<6x392xf32>
    %cst_14 = arith.constant 0.000000e+00 : f32
    %15 = vector.broadcast %cst_14 : f32 to vector<6x392xf32>
    %16 = arith.maximumf %14, %15 : vector<6x392xf32>
    %c0_15 = arith.constant 0 : index
    %c0_16 = arith.constant 0 : index
    %17 = vector.load %arg6[%c0_15, %c0_16] : memref<6x392xf32, #tpu.memory_space<vmem>>, vector<6x392xf32>
    tpu.vector_store %arg6[%c0_15, %c0_16], %16 {strides = array<i32>} : memref<6x392xf32, #tpu.memory_space<vmem>>, vector<6x392xf32>,
    return
  }
}

module attributes {stable_mosaic.version = 11 : i64} {
  func.func @_conv2_pool_fc_kernel(%arg0: memref<150x16xbf16, #tpu.memory_space<vmem>>, %arg1: memref<1x16xf32, #tpu.memory_space<vmem>>, %arg2: memref<50x150xbf16, #tpu.memory_space<vmem>>, %arg3: memref<50x150xbf16, #tpu.memory_space<vmem>>, %arg4: memref<50x150xbf16, #tpu.memory_space<vmem>>, %arg5: memref<50x150xbf16, #tpu.memory_space<vmem>>, %arg6: memref<25x16x120xbf16, #tpu.memory_space<vmem>>, %arg7: memref<1x120xf32, #tpu.memory_space<vmem>>, %arg8: memref<120x84xbf16, #tpu.memory_space<vmem>>, %arg9: memref<1x84xf32, #tpu.memory_space<vmem>>, %arg10: memref<84x10xbf16, #tpu.memory_space<vmem>>, %arg11: memref<1x10xf32, #tpu.memory_space<vmem>>, %arg12: memref<2x10xf32, #tpu.memory_space<vmem>>) attributes {dimension_semantics = [], scalar_prefetch = 0 : i64, scratch_operands = 0 : i64, tpu.core_type = #tpu.core_type<tc>} {
    %c0 = arith.constant 0 : index
    %c0_0 = arith.constant 0 : index
    %0 = vector.load %arg0[%c0, %c0_0] : memref<150x16xbf16, #tpu.memory_space<vmem>>, vector<150x16xbf16>
    %c0_1 = arith.constant 0 : index
    %c0_2 = arith.constant 0 : index
    %1 = vector.load %arg2[%c0_1, %c0_2] : memref<50x150xbf16, #tpu.memory_space<vmem>>, vector<50x150xbf16>
    %cst = arith.constant dense<0.000000e+00> : vector<50x16xf32>
    %2 = tpu.matmul %1, %0, %cst {dimension_numbers = #tpu.dot_dimension_numbers<[1], [0], [0], [1], [0, 0, 1, 1], [], []>} : vector<50x150xbf16>, vector<150x16xbf16>, vector<50x16xf32> -> vector<50x16xf32>
    %c0_3 = arith.constant 0 : index
    %c0_4 = arith.constant 0 : index
    %3 = vector.load %arg3[%c0_3, %c0_4] : memref<50x150xbf16, #tpu.memory_space<vmem>>, vector<50x150xbf16>
    %cst_5 = arith.constant dense<0.000000e+00> : vector<50x16xf32>
    %4 = tpu.matmul %3, %0, %cst_5 {dimension_numbers = #tpu.dot_dimension_numbers<[1], [0], [0], [1], [0, 0, 1, 1], [], []>} : vector<50x150xbf16>, vector<150x16xbf16>, vector<50x16xf32> -> vector<50x16xf32>
    %5 = arith.maximumf %2, %4 : vector<50x16xf32>
    %c0_6 = arith.constant 0 : index
    %c0_7 = arith.constant 0 : index
    %6 = vector.load %arg4[%c0_6, %c0_7] : memref<50x150xbf16, #tpu.memory_space<vmem>>, vector<50x150xbf16>
    %cst_8 = arith.constant dense<0.000000e+00> : vector<50x16xf32>
    %7 = tpu.matmul %6, %0, %cst_8 {dimension_numbers = #tpu.dot_dimension_numbers<[1], [0], [0], [1], [0, 0, 1, 1], [], []>} : vector<50x150xbf16>, vector<150x16xbf16>, vector<50x16xf32> -> vector<50x16xf32>
    %8 = arith.maximumf %5, %7 : vector<50x16xf32>
    %c0_9 = arith.constant 0 : index
    %c0_10 = arith.constant 0 : index
    %9 = vector.load %arg5[%c0_9, %c0_10] : memref<50x150xbf16, #tpu.memory_space<vmem>>, vector<50x150xbf16>
    %cst_11 = arith.constant dense<0.000000e+00> : vector<50x16xf32>
    %10 = tpu.matmul %9, %0, %cst_11 {dimension_numbers = #tpu.dot_dimension_numbers<[1], [0], [0], [1], [0, 0, 1, 1], [], []>} : vector<50x150xbf16>, vector<150x16xbf16>, vector<50x16xf32> -> vector<50x16xf32>
    %11 = arith.maximumf %8, %10 : vector<50x16xf32>
    %c0_12 = arith.constant 0 : index
    %c0_13 = arith.constant 0 : index
    %12 = vector.load %arg1[%c0_12, %c0_13] : memref<1x16xf32, #tpu.memory_space<vmem>>, vector<1x16xf32>
    %13 = vector.broadcast %12 : vector<1x16xf32> to vector<50x16xf32>
    %14 = arith.addf %11, %13 : vector<50x16xf32>
    %cst_14 = arith.constant 0.000000e+00 : f32
    %15 = vector.broadcast %cst_14 : f32 to vector<50x16xf32>
    %16 = arith.maximumf %14, %15 : vector<50x16xf32>
    %17 = arith.truncf %16 : vector<50x16xf32> to vector<50x16xbf16>
    %cst_15 = arith.constant 0.000000e+00 : f32
    %18 = vector.broadcast %cst_15 : f32 to vector<2x120xf32>
    %19 = vector.extract_strided_slice %17 {offsets = [0, 0], sizes = [2, 16], strides = [1, 1]} : vector<50x16xbf16> to vector<2x16xbf16>
    %c0_16 = arith.constant 0 : index
    %c0_17 = arith.constant 0 : index
    %c0_18 = arith.constant 0 : index
    %20 = vector.load %arg6[%c0_16, %c0_17, %c0_18] : memref<25x16x120xbf16, #tpu.memory_space<vmem>>, vector<1x16x120xbf16>
    %21 = vector.shape_cast %20 : vector<1x16x120xbf16> to vector<16x120xbf16>
    %cst_19 = arith.constant dense<0.000000e+00> : vector<2x120xf32>
    %22 = tpu.matmul %19, %21, %cst_19 {dimension_numbers = #tpu.dot_dimension_numbers<[1], [0], [0], [1], [0, 0, 1, 1], [], []>} : vector<2x16xbf16>, vector<16x120xbf16>, vector<2x120xf32> -> vector<2x120xf32>
    %23 = arith.addf %18, %22 : vector<2x120xf32>
    %24 = vector.extract_strided_slice %17 {offsets = [2, 0], sizes = [2, 16], strides = [1, 1]} : vector<50x16xbf16> to vector<2x16xbf16>
    %c1 = arith.constant 1 : index
    %c0_20 = arith.constant 0 : index
    %c0_21 = arith.constant 0 : index
    %25 = vector.load %arg6[%c1, %c0_20, %c0_21] : memref<25x16x120xbf16, #tpu.memory_space<vmem>>, vector<1x16x120xbf16>
    %26 = vector.shape_cast %25 : vector<1x16x120xbf16> to vector<16x120xbf16>
    %cst_22 = arith.constant dense<0.000000e+00> : vector<2x120xf32>
    %27 = tpu.matmul %24, %26, %cst_22 {dimension_numbers = #tpu.dot_dimension_numbers<[1], [0], [0], [1], [0, 0, 1, 1], [], []>} : vector<2x16xbf16>, vector<16x120xbf16>, vector<2x120xf32> -> vector<2x120xf32>
    %28 = arith.addf %23, %27 : vector<2x120xf32>
    %29 = vector.extract_strided_slice %17 {offsets = [4, 0], sizes = [2, 16], strides = [1, 1]} : vector<50x16xbf16> to vector<2x16xbf16>
    %c2 = arith.constant 2 : index
    %c0_23 = arith.constant 0 : index
    %c0_24 = arith.constant 0 : index
    %30 = vector.load %arg6[%c2, %c0_23, %c0_24] : memref<25x16x120xbf16, #tpu.memory_space<vmem>>, vector<1x16x120xbf16>
    %31 = vector.shape_cast %30 : vector<1x16x120xbf16> to vector<16x120xbf16>
    %cst_25 = arith.constant dense<0.000000e+00> : vector<2x120xf32>
    %32 = tpu.matmul %29, %31, %cst_25 {dimension_numbers = #tpu.dot_dimension_numbers<[1], [0], [0], [1], [0, 0, 1, 1], [], []>} : vector<2x16xbf16>, vector<16x120xbf16>, vector<2x120xf32> -> vector<2x120xf32>
    %33 = arith.addf %28, %32 : vector<2x120xf32>
    %34 = vector.extract_strided_slice %17 {offsets = [6, 0], sizes = [2, 16], strides = [1, 1]} : vector<50x16xbf16> to vector<2x16xbf16>
    %c3 = arith.constant 3 : index
    %c0_26 = arith.constant 0 : index
    %c0_27 = arith.constant 0 : index
    %35 = vector.load %arg6[%c3, %c0_26, %c0_27] : memref<25x16x120xbf16, #tpu.memory_space<vmem>>, vector<1x16x120xbf16>
    %36 = vector.shape_cast %35 : vector<1x16x120xbf16> to vector<16x120xbf16>
    %cst_28 = arith.constant dense<0.000000e+00> : vector<2x120xf32>
    %37 = tpu.matmul %34, %36, %cst_28 {dimension_numbers = #tpu.dot_dimension_numbers<[1], [0], [0], [1], [0, 0, 1, 1], [], []>} : vector<2x16xbf16>, vector<16x120xbf16>, vector<2x120xf32> -> vector<2x120xf32>
    %38 = arith.addf %33, %37 : vector<2x120xf32>
    %39 = vector.extract_strided_slice %17 {offsets = [8, 0], sizes = [2, 16], strides = [1, 1]} : vector<50x16xbf16> to vector<2x16xbf16>
    %c4 = arith.constant 4 : index
    %c0_29 = arith.constant 0 : index
    %c0_30 = arith.constant 0 : index
    %40 = vector.load %arg6[%c4, %c0_29, %c0_30] : memref<25x16x120xbf16, #tpu.memory_space<vmem>>, vector<1x16x120xbf16>
    %41 = vector.shape_cast %40 : vector<1x16x120xbf16> to vector<16x120xbf16>
    %cst_31 = arith.constant dense<0.000000e+00> : vector<2x120xf32>
    %42 = tpu.matmul %39, %41, %cst_31 {dimension_numbers = #tpu.dot_dimension_numbers<[1], [0], [0], [1], [0, 0, 1, 1], [], []>} : vector<2x16xbf16>, vector<16x120xbf16>, vector<2x120xf32> -> vector<2x120xf32>
    %43 = arith.addf %38, %42 : vector<2x120xf32>
    %44 = vector.extract_strided_slice %17 {offsets = [10, 0], sizes = [2, 16], strides = [1, 1]} : vector<50x16xbf16> to vector<2x16xbf16>
    %c5 = arith.constant 5 : index
    %c0_32 = arith.constant 0 : index
    %c0_33 = arith.constant 0 : index
    %45 = vector.load %arg6[%c5, %c0_32, %c0_33] : memref<25x16x120xbf16, #tpu.memory_space<vmem>>, vector<1x16x120xbf16>
    %46 = vector.shape_cast %45 : vector<1x16x120xbf16> to vector<16x120xbf16>
    %cst_34 = arith.constant dense<0.000000e+00> : vector<2x120xf32>
    %47 = tpu.matmul %44, %46, %cst_34 {dimension_numbers = #tpu.dot_dimension_numbers<[1], [0], [0], [1], [0, 0, 1, 1], [], []>} : vector<2x16xbf16>, vector<16x120xbf16>, vector<2x120xf32> -> vector<2x120xf32>
    %48 = arith.addf %43, %47 : vector<2x120xf32>
    %49 = vector.extract_strided_slice %17 {offsets = [12, 0], sizes = [2, 16], strides = [1, 1]} : vector<50x16xbf16> to vector<2x16xbf16>
    %c6 = arith.constant 6 : index
    %c0_35 = arith.constant 0 : index
    %c0_36 = arith.constant 0 : index
    %50 = vector.load %arg6[%c6, %c0_35, %c0_36] : memref<25x16x120xbf16, #tpu.memory_space<vmem>>, vector<1x16x120xbf16>
    %51 = vector.shape_cast %50 : vector<1x16x120xbf16> to vector<16x120xbf16>
    %cst_37 = arith.constant dense<0.000000e+00> : vector<2x120xf32>
    %52 = tpu.matmul %49, %51, %cst_37 {dimension_numbers = #tpu.dot_dimension_numbers<[1], [0], [0], [1], [0, 0, 1, 1], [], []>} : vector<2x16xbf16>, vector<16x120xbf16>, vector<2x120xf32> -> vector<2x120xf32>
    %53 = arith.addf %48, %52 : vector<2x120xf32>
    %54 = vector.extract_strided_slice %17 {offsets = [14, 0], sizes = [2, 16], strides = [1, 1]} : vector<50x16xbf16> to vector<2x16xbf16>
    %c7 = arith.constant 7 : index
    %c0_38 = arith.constant 0 : index
    %c0_39 = arith.constant 0 : index
    %55 = vector.load %arg6[%c7, %c0_38, %c0_39] : memref<25x16x120xbf16, #tpu.memory_space<vmem>>, vector<1x16x120xbf16>
    %56 = vector.shape_cast %55 : vector<1x16x120xbf16> to vector<16x120xbf16>
    %cst_40 = arith.constant dense<0.000000e+00> : vector<2x120xf32>
    %57 = tpu.matmul %54, %56, %cst_40 {dimension_numbers = #tpu.dot_dimension_numbers<[1], [0], [0], [1], [0, 0, 1, 1], [], []>} : vector<2x16xbf16>, vector<16x120xbf16>, vector<2x120xf32> -> vector<2x120xf32>
    %58 = arith.addf %53, %57 : vector<2x120xf32>
    %59 = vector.extract_strided_slice %17 {offsets = [16, 0], sizes = [2, 16], strides = [1, 1]} : vector<50x16xbf16> to vector<2x16xbf16>
    %c8 = arith.constant 8 : index
    %c0_41 = arith.constant 0 : index
    %c0_42 = arith.constant 0 : index
    %60 = vector.load %arg6[%c8, %c0_41, %c0_42] : memref<25x16x120xbf16, #tpu.memory_space<vmem>>, vector<1x16x120xbf16>
    %61 = vector.shape_cast %60 : vector<1x16x120xbf16> to vector<16x120xbf16>
    %cst_43 = arith.constant dense<0.000000e+00> : vector<2x120xf32>
    %62 = tpu.matmul %59, %61, %cst_43 {dimension_numbers = #tpu.dot_dimension_numbers<[1], [0], [0], [1], [0, 0, 1, 1], [], []>} : vector<2x16xbf16>, vector<16x120xbf16>, vector<2x120xf32> -> vector<2x120xf32>
    %63 = arith.addf %58, %62 : vector<2x120xf32>
    %64 = vector.extract_strided_slice %17 {offsets = [18, 0], sizes = [2, 16], strides = [1, 1]} : vector<50x16xbf16> to vector<2x16xbf16>
    %c9 = arith.constant 9 : index
    %c0_44 = arith.constant 0 : index
    %c0_45 = arith.constant 0 : index
    %65 = vector.load %arg6[%c9, %c0_44, %c0_45] : memref<25x16x120xbf16, #tpu.memory_space<vmem>>, vector<1x16x120xbf16>
    %66 = vector.shape_cast %65 : vector<1x16x120xbf16> to vector<16x120xbf16>
    %cst_46 = arith.constant dense<0.000000e+00> : vector<2x120xf32>
    %67 = tpu.matmul %64, %66, %cst_46 {dimension_numbers = #tpu.dot_dimension_numbers<[1], [0], [0], [1], [0, 0, 1, 1], [], []>} : vector<2x16xbf16>, vector<16x120xbf16>, vector<2x120xf32> -> vector<2x120xf32>
    %68 = arith.addf %63, %67 : vector<2x120xf32>
    %69 = vector.extract_strided_slice %17 {offsets = [20, 0], sizes = [2, 16], strides = [1, 1]} : vector<50x16xbf16> to vector<2x16xbf16>
    %c10 = arith.constant 10 : index
    %c0_47 = arith.constant 0 : index
    %c0_48 = arith.constant 0 : index
    %70 = vector.load %arg6[%c10, %c0_47, %c0_48] : memref<25x16x120xbf16, #tpu.memory_space<vmem>>, vector<1x16x120xbf16>
    %71 = vector.shape_cast %70 : vector<1x16x120xbf16> to vector<16x120xbf16>
    %cst_49 = arith.constant dense<0.000000e+00> : vector<2x120xf32>
    %72 = tpu.matmul %69, %71, %cst_49 {dimension_numbers = #tpu.dot_dimension_numbers<[1], [0], [0], [1], [0, 0, 1, 1], [], []>} : vector<2x16xbf16>, vector<16x120xbf16>, vector<2x120xf32> -> vector<2x120xf32>
    %73 = arith.addf %68, %72 : vector<2x120xf32>
    %74 = vector.extract_strided_slice %17 {offsets = [22, 0], sizes = [2, 16], strides = [1, 1]} : vector<50x16xbf16> to vector<2x16xbf16>
    %c11 = arith.constant 11 : index
    %c0_50 = arith.constant 0 : index
    %c0_51 = arith.constant 0 : index
    %75 = vector.load %arg6[%c11, %c0_50, %c0_51] : memref<25x16x120xbf16, #tpu.memory_space<vmem>>, vector<1x16x120xbf16>
    %76 = vector.shape_cast %75 : vector<1x16x120xbf16> to vector<16x120xbf16>
    %cst_52 = arith.constant dense<0.000000e+00> : vector<2x120xf32>
    %77 = tpu.matmul %74, %76, %cst_52 {dimension_numbers = #tpu.dot_dimension_numbers<[1], [0], [0], [1], [0, 0, 1, 1], [], []>} : vector<2x16xbf16>, vector<16x120xbf16>, vector<2x120xf32> -> vector<2x120xf32>
    %78 = arith.addf %73, %77 : vector<2x120xf32>
    %79 = vector.extract_strided_slice %17 {offsets = [24, 0], sizes = [2, 16], strides = [1, 1]} : vector<50x16xbf16> to vector<2x16xbf16>
    %c12 = arith.constant 12 : index
    %c0_53 = arith.constant 0 : index
    %c0_54 = arith.constant 0 : index
    %80 = vector.load %arg6[%c12, %c0_53, %c0_54] : memref<25x16x120xbf16, #tpu.memory_space<vmem>>, vector<1x16x120xbf16>
    %81 = vector.shape_cast %80 : vector<1x16x120xbf16> to vector<16x120xbf16>
    %cst_55 = arith.constant dense<0.000000e+00> : vector<2x120xf32>
    %82 = tpu.matmul %79, %81, %cst_55 {dimension_numbers = #tpu.dot_dimension_numbers<[1], [0], [0], [1], [0, 0, 1, 1], [], []>} : vector<2x16xbf16>, vector<16x120xbf16>, vector<2x120xf32> -> vector<2x120xf32>
    %83 = arith.addf %78, %82 : vector<2x120xf32>
    %84 = vector.extract_strided_slice %17 {offsets = [26, 0], sizes = [2, 16], strides = [1, 1]} : vector<50x16xbf16> to vector<2x16xbf16>
    %c13 = arith.constant 13 : index
    %c0_56 = arith.constant 0 : index
    %c0_57 = arith.constant 0 : index
    %85 = vector.load %arg6[%c13, %c0_56, %c0_57] : memref<25x16x120xbf16, #tpu.memory_space<vmem>>, vector<1x16x120xbf16>
    %86 = vector.shape_cast %85 : vector<1x16x120xbf16> to vector<16x120xbf16>
    %cst_58 = arith.constant dense<0.000000e+00> : vector<2x120xf32>
    %87 = tpu.matmul %84, %86, %cst_58 {dimension_numbers = #tpu.dot_dimension_numbers<[1], [0], [0], [1], [0, 0, 1, 1], [], []>} : vector<2x16xbf16>, vector<16x120xbf16>, vector<2x120xf32> -> vector<2x120xf32>
    %88 = arith.addf %83, %87 : vector<2x120xf32>
    %89 = vector.extract_strided_slice %17 {offsets = [28, 0], sizes = [2, 16], strides = [1, 1]} : vector<50x16xbf16> to vector<2x16xbf16>
    %c14 = arith.constant 14 : index
    %c0_59 = arith.constant 0 : index
    %c0_60 = arith.constant 0 : index
    %90 = vector.load %arg6[%c14, %c0_59, %c0_60] : memref<25x16x120xbf16, #tpu.memory_space<vmem>>, vector<1x16x120xbf16>
    %91 = vector.shape_cast %90 : vector<1x16x120xbf16> to vector<16x120xbf16>
    %cst_61 = arith.constant dense<0.000000e+00> : vector<2x120xf32>
    %92 = tpu.matmul %89, %91, %cst_61 {dimension_numbers = #tpu.dot_dimension_numbers<[1], [0], [0], [1], [0, 0, 1, 1], [], []>} : vector<2x16xbf16>, vector<16x120xbf16>, vector<2x120xf32> -> vector<2x120xf32>
    %93 = arith.addf %88, %92 : vector<2x120xf32>
    %94 = vector.extract_strided_slice %17 {offsets = [30, 0], sizes = [2, 16], strides = [1, 1]} : vector<50x16xbf16> to vector<2x16xbf16>
    %c15 = arith.constant 15 : index
    %c0_62 = arith.constant 0 : index
    %c0_63 = arith.constant 0 : index
    %95 = vector.load %arg6[%c15, %c0_62, %c0_63] : memref<25x16x120xbf16, #tpu.memory_space<vmem>>, vector<1x16x120xbf16>
    %96 = vector.shape_cast %95 : vector<1x16x120xbf16> to vector<16x120xbf16>
    %cst_64 = arith.constant dense<0.000000e+00> : vector<2x120xf32>
    %97 = tpu.matmul %94, %96, %cst_64 {dimension_numbers = #tpu.dot_dimension_numbers<[1], [0], [0], [1], [0, 0, 1, 1], [], []>} : vector<2x16xbf16>, vector<16x120xbf16>, vector<2x120xf32> -> vector<2x120xf32>
    %98 = arith.addf %93, %97 : vector<2x120xf32>
    %99 = vector.extract_strided_slice %17 {offsets = [32, 0], sizes = [2, 16], strides = [1, 1]} : vector<50x16xbf16> to vector<2x16xbf16>
    %c16 = arith.constant 16 : index
    %c0_65 = arith.constant 0 : index
    %c0_66 = arith.constant 0 : index
    %100 = vector.load %arg6[%c16, %c0_65, %c0_66] : memref<25x16x120xbf16, #tpu.memory_space<vmem>>, vector<1x16x120xbf16>
    %101 = vector.shape_cast %100 : vector<1x16x120xbf16> to vector<16x120xbf16>
    %cst_67 = arith.constant dense<0.000000e+00> : vector<2x120xf32>
    %102 = tpu.matmul %99, %101, %cst_67 {dimension_numbers = #tpu.dot_dimension_numbers<[1], [0], [0], [1], [0, 0, 1, 1], [], []>} : vector<2x16xbf16>, vector<16x120xbf16>, vector<2x120xf32> -> vector<2x120xf32>
    %103 = arith.addf %98, %102 : vector<2x120xf32>
    %104 = vector.extract_strided_slice %17 {offsets = [34, 0], sizes = [2, 16], strides = [1, 1]} : vector<50x16xbf16> to vector<2x16xbf16>
    %c17 = arith.constant 17 : index
    %c0_68 = arith.constant 0 : index
    %c0_69 = arith.constant 0 : index
    %105 = vector.load %arg6[%c17, %c0_68, %c0_69] : memref<25x16x120xbf16, #tpu.memory_space<vmem>>, vector<1x16x120xbf16>
    %106 = vector.shape_cast %105 : vector<1x16x120xbf16> to vector<16x120xbf16>
    %cst_70 = arith.constant dense<0.000000e+00> : vector<2x120xf32>
    %107 = tpu.matmul %104, %106, %cst_70 {dimension_numbers = #tpu.dot_dimension_numbers<[1], [0], [0], [1], [0, 0, 1, 1], [], []>} : vector<2x16xbf16>, vector<16x120xbf16>, vector<2x120xf32> -> vector<2x120xf32>
    %108 = arith.addf %103, %107 : vector<2x120xf32>
    %109 = vector.extract_strided_slice %17 {offsets = [36, 0], sizes = [2, 16], strides = [1, 1]} : vector<50x16xbf16> to vector<2x16xbf16>
    %c18 = arith.constant 18 : index
    %c0_71 = arith.constant 0 : index
    %c0_72 = arith.constant 0 : index
    %110 = vector.load %arg6[%c18, %c0_71, %c0_72] : memref<25x16x120xbf16, #tpu.memory_space<vmem>>, vector<1x16x120xbf16>
    %111 = vector.shape_cast %110 : vector<1x16x120xbf16> to vector<16x120xbf16>
    %cst_73 = arith.constant dense<0.000000e+00> : vector<2x120xf32>
    %112 = tpu.matmul %109, %111, %cst_73 {dimension_numbers = #tpu.dot_dimension_numbers<[1], [0], [0], [1], [0, 0, 1, 1], [], []>} : vector<2x16xbf16>, vector<16x120xbf16>, vector<2x120xf32> -> vector<2x120xf32>
    %113 = arith.addf %108, %112 : vector<2x120xf32>
    %114 = vector.extract_strided_slice %17 {offsets = [38, 0], sizes = [2, 16], strides = [1, 1]} : vector<50x16xbf16> to vector<2x16xbf16>
    %c19 = arith.constant 19 : index
    %c0_74 = arith.constant 0 : index
    %c0_75 = arith.constant 0 : index
    %115 = vector.load %arg6[%c19, %c0_74, %c0_75] : memref<25x16x120xbf16, #tpu.memory_space<vmem>>, vector<1x16x120xbf16>
    %116 = vector.shape_cast %115 : vector<1x16x120xbf16> to vector<16x120xbf16>
    %cst_76 = arith.constant dense<0.000000e+00> : vector<2x120xf32>
    %117 = tpu.matmul %114, %116, %cst_76 {dimension_numbers = #tpu.dot_dimension_numbers<[1], [0], [0], [1], [0, 0, 1, 1], [], []>} : vector<2x16xbf16>, vector<16x120xbf16>, vector<2x120xf32> -> vector<2x120xf32>
    %118 = arith.addf %113, %117 : vector<2x120xf32>
    %119 = vector.extract_strided_slice %17 {offsets = [40, 0], sizes = [2, 16], strides = [1, 1]} : vector<50x16xbf16> to vector<2x16xbf16>
    %c20 = arith.constant 20 : index
    %c0_77 = arith.constant 0 : index
    %c0_78 = arith.constant 0 : index
    %120 = vector.load %arg6[%c20, %c0_77, %c0_78] : memref<25x16x120xbf16, #tpu.memory_space<vmem>>, vector<1x16x120xbf16>
    %121 = vector.shape_cast %120 : vector<1x16x120xbf16> to vector<16x120xbf16>
    %cst_79 = arith.constant dense<0.000000e+00> : vector<2x120xf32>
    %122 = tpu.matmul %119, %121, %cst_79 {dimension_numbers = #tpu.dot_dimension_numbers<[1], [0], [0], [1], [0, 0, 1, 1], [], []>} : vector<2x16xbf16>, vector<16x120xbf16>, vector<2x120xf32> -> vector<2x120xf32>
    %123 = arith.addf %118, %122 : vector<2x120xf32>
    %124 = vector.extract_strided_slice %17 {offsets = [42, 0], sizes = [2, 16], strides = [1, 1]} : vector<50x16xbf16> to vector<2x16xbf16>
    %c21 = arith.constant 21 : index
    %c0_80 = arith.constant 0 : index
    %c0_81 = arith.constant 0 : index
    %125 = vector.load %arg6[%c21, %c0_80, %c0_81] : memref<25x16x120xbf16, #tpu.memory_space<vmem>>, vector<1x16x120xbf16>
    %126 = vector.shape_cast %125 : vector<1x16x120xbf16> to vector<16x120xbf16>
    %cst_82 = arith.constant dense<0.000000e+00> : vector<2x120xf32>
    %127 = tpu.matmul %124, %126, %cst_82 {dimension_numbers = #tpu.dot_dimension_numbers<[1], [0], [0], [1], [0, 0, 1, 1], [], []>} : vector<2x16xbf16>, vector<16x120xbf16>, vector<2x120xf32> -> vector<2x120xf32>
    %128 = arith.addf %123, %127 : vector<2x120xf32>
    %129 = vector.extract_strided_slice %17 {offsets = [44, 0], sizes = [2, 16], strides = [1, 1]} : vector<50x16xbf16> to vector<2x16xbf16>
    %c22 = arith.constant 22 : index
    %c0_83 = arith.constant 0 : index
    %c0_84 = arith.constant 0 : index
    %130 = vector.load %arg6[%c22, %c0_83, %c0_84] : memref<25x16x120xbf16, #tpu.memory_space<vmem>>, vector<1x16x120xbf16>
    %131 = vector.shape_cast %130 : vector<1x16x120xbf16> to vector<16x120xbf16>
    %cst_85 = arith.constant dense<0.000000e+00> : vector<2x120xf32>
    %132 = tpu.matmul %129, %131, %cst_85 {dimension_numbers = #tpu.dot_dimension_numbers<[1], [0], [0], [1], [0, 0, 1, 1], [], []>} : vector<2x16xbf16>, vector<16x120xbf16>, vector<2x120xf32> -> vector<2x120xf32>
    %133 = arith.addf %128, %132 : vector<2x120xf32>
    %134 = vector.extract_strided_slice %17 {offsets = [46, 0], sizes = [2, 16], strides = [1, 1]} : vector<50x16xbf16> to vector<2x16xbf16>
    %c23 = arith.constant 23 : index
    %c0_86 = arith.constant 0 : index
    %c0_87 = arith.constant 0 : index
    %135 = vector.load %arg6[%c23, %c0_86, %c0_87] : memref<25x16x120xbf16, #tpu.memory_space<vmem>>, vector<1x16x120xbf16>
    %136 = vector.shape_cast %135 : vector<1x16x120xbf16> to vector<16x120xbf16>
    %cst_88 = arith.constant dense<0.000000e+00> : vector<2x120xf32>
    %137 = tpu.matmul %134, %136, %cst_88 {dimension_numbers = #tpu.dot_dimension_numbers<[1], [0], [0], [1], [0, 0, 1, 1], [], []>} : vector<2x16xbf16>, vector<16x120xbf16>, vector<2x120xf32> -> vector<2x120xf32>
    %138 = arith.addf %133, %137 : vector<2x120xf32>
    %139 = vector.extract_strided_slice %17 {offsets = [48, 0], sizes = [2, 16], strides = [1, 1]} : vector<50x16xbf16> to vector<2x16xbf16>
    %c24 = arith.constant 24 : index
    %c0_89 = arith.constant 0 : index
    %c0_90 = arith.constant 0 : index
    %140 = vector.load %arg6[%c24, %c0_89, %c0_90] : memref<25x16x120xbf16, #tpu.memory_space<vmem>>, vector<1x16x120xbf16>
    %141 = vector.shape_cast %140 : vector<1x16x120xbf16> to vector<16x120xbf16>
    %cst_91 = arith.constant dense<0.000000e+00> : vector<2x120xf32>
    %142 = tpu.matmul %139, %141, %cst_91 {dimension_numbers = #tpu.dot_dimension_numbers<[1], [0], [0], [1], [0, 0, 1, 1], [], []>} : vector<2x16xbf16>, vector<16x120xbf16>, vector<2x120xf32> -> vector<2x120xf32>
    %143 = arith.addf %138, %142 : vector<2x120xf32>
    %c0_92 = arith.constant 0 : index
    %c0_93 = arith.constant 0 : index
    %144 = vector.load %arg7[%c0_92, %c0_93] : memref<1x120xf32, #tpu.memory_space<vmem>>, vector<1x120xf32>
    %145 = vector.broadcast %144 : vector<1x120xf32> to vector<2x120xf32>
    %146 = arith.addf %143, %145 : vector<2x120xf32>
    %cst_94 = arith.constant 0.000000e+00 : f32
    %147 = vector.broadcast %cst_94 : f32 to vector<2x120xf32>
    %148 = arith.maximumf %146, %147 : vector<2x120xf32>
    %149 = arith.truncf %148 : vector<2x120xf32> to vector<2x120xbf16>
    %c0_95 = arith.constant 0 : index
    %c0_96 = arith.constant 0 : index
    %150 = vector.load %arg8[%c0_95, %c0_96] : memref<120x84xbf16, #tpu.memory_space<vmem>>, vector<120x84xbf16>
    %cst_97 = arith.constant dense<0.000000e+00> : vector<2x84xf32>
    %151 = tpu.matmul %149, %150, %cst_97 {dimension_numbers = #tpu.dot_dimension_numbers<[1], [0], [0], [1], [0, 0, 1, 1], [], []>} : vector<2x120xbf16>, vector<120x84xbf16>, vector<2x84xf32> -> vector<2x84xf32>
    %c0_98 = arith.constant 0 : index
    %c0_99 = arith.constant 0 : index
    %152 = vector.load %arg9[%c0_98, %c0_99] : memref<1x84xf32, #tpu.memory_space<vmem>>, vector<1x84xf32>
    %153 = vector.broadcast %152 : vector<1x84xf32> to vector<2x84xf32>
    %154 = arith.addf %151, %153 : vector<2x84xf32>
    %cst_100 = arith.constant 0.000000e+00 : f32
    %155 = vector.broadcast %cst_100 : f32 to vector<2x84xf32>
    %156 = arith.maximumf %154, %155 : vector<2x84xf32>
    %157 = arith.truncf %156 : vector<2x84xf32> to vector<2x84xbf16>
    %c0_101 = arith.constant 0 : index
    %c0_102 = arith.constant 0 : index
    %158 = vector.load %arg10[%c0_101, %c0_102] : memref<84x10xbf16, #tpu.memory_space<vmem>>, vector<84x10xbf16>
    %cst_103 = arith.constant dense<0.000000e+00> : vector<2x10xf32>
    %159 = tpu.matmul %157, %158, %cst_103 {dimension_numbers = #tpu.dot_dimension_numbers<[1], [0], [0], [1], [0, 0, 1, 1], [], []>} : vector<2x84xbf16>, vector<84x10xbf16>, vector<2x10xf32> -> vector<2x10xf32>
    %c0_104 = arith.constant 0 : index
    %c0_105 = arith.constant 0 : index
    %160 = vector.load %arg11[%c0_104, %c0_105] : memref<1x10xf32, #tpu.memory_space<vmem>>, vector<1x10xf32>
    %161 = vector.broadcast %160 : vector<1x10xf32> to vector<2x10xf32>
    %162 = arith.addf %159, %161 : vector<2x10xf32>
    %c0_106 = arith.constant 0 : index
    %c0_107 = arith.constant 0 : index
    %163 = vector.load %arg12[%c0_106, %c0_107] : memref<2x10xf32, #tpu.memory_space<vmem>>, vector<2x10xf32>
    tpu.vector_store %arg12[%c0_106, %c0_107], %162 {strides = array<i32>} : memref<2x10xf32, #tpu.memory_space<vmem>>, vector<2x10xf32>,
    return
  }
}

</mosaic_0001>

<llo_original>
// kernel: lenet_forward.2
$region0: #{lenet_forward.2}
  #allocation0 [shape = 'u32[]', space=smem, size = 0x4, offset = 0x4, fixed_abs, tag = 'smem constant byte address 0x4 - core index']
  #allocation1 [shape = 'u32[144,128]{1,0:T(1,128)}', space=vmem, size = 0x12000, scoped, tag = 'internal scratch']
  %s0 = inlined_call_operand.vmem [shape: bf16[6,25], index: 0, kind: input, shape index: {}]
  %s1 = inlined_call_operand.vmem [shape: f32[6,1], index: 1, kind: input, shape index: {}]
  %s2 = inlined_call_operand.vmem [shape: bf16[25,392], index: 2, kind: input, shape index: {}]
  %s3 = inlined_call_operand.vmem [shape: bf16[25,392], index: 3, kind: input, shape index: {}]
  %s4 = inlined_call_operand.vmem [shape: bf16[25,392], index: 4, kind: input, shape index: {}]
  %s5 = inlined_call_operand.vmem [shape: bf16[25,392], index: 5, kind: input, shape index: {}]
  %s6 = inlined_call_operand.vmem [shape: f32[6,392], index: 6, kind: output, shape index: {}]
  %s7 = sld [smem:[#allocation0]]
  $region34: #{lenet_forward.2} parent=0
    _
  %s9 = ssub.s32 1, %s7
  %s10 = scalar_select 0, %s9, %s7
  // Predicated region
  $region2: #{lenet_forward.2} parent=0 // pred_check
    _
  $region3: #{lenet_forward.2} parent=0 // pred_check_branch
    %12 = sbr.rel (0) target = $region5
  $region4: #{lenet_forward.2} parent=0 // pred_region
    _
  $region5: #{lenet_forward.2} parent=0 // pred_fallthru
    _
  // Predicated region
  $region6: #{lenet_forward.2} parent=0 // pred_check
    _
  $region7: #{lenet_forward.2} parent=0 // pred_check_branch
    %14 = sbr.rel (0) target = $region9
  $region8: #{lenet_forward.2} parent=0 // pred_region
    _
  $region9: #{lenet_forward.2} parent=0 // pred_fallthru
    _
  // Predicated region
  $region10: #{lenet_forward.2} parent=0 // pred_check
    _
  $region11: #{lenet_forward.2} parent=0 // pred_check_branch
    %16 = sbr.rel (0) target = $region13
  $region12: #{lenet_forward.2} parent=0 // pred_region
    _
  $region13: #{lenet_forward.2} parent=0 // pred_fallthru
    _
  // Predicated region
  $region14: #{lenet_forward.2} parent=0 // pred_check
    _
  $region15: #{lenet_forward.2} parent=0 // pred_check_branch
    %18 = sbr.rel (0) target = $region17
  $region16: #{lenet_forward.2} parent=0 // pred_region
    _
  $region17: #{lenet_forward.2} parent=0 // pred_fallthru
    _
  // Predicated region
  $region18: #{lenet_forward.2} parent=0 // pred_check
    _
  $region19: #{lenet_forward.2} parent=0 // pred_check_branch
    %20 = sbr.rel (0) target = $region21
  $region20: #{lenet_forward.2} parent=0 // pred_region
    _
  $region21: #{lenet_forward.2} parent=0 // pred_fallthru
    _
  // Predicated region
  $region22: #{lenet_forward.2} parent=0 // pred_check
    _
  $region23: #{lenet_forward.2} parent=0 // pred_check_branch
    %22 = sbr.rel (0) target = $region25
  $region24: #{lenet_forward.2} parent=0 // pred_region
    _
  $region25: #{lenet_forward.2} parent=0 // pred_fallthru
    _
  %v24 = vld [vmem:[%s0] sm:$0x7]
  %v25 = vld [vmem:[%s2] sm:$0xff]
  %v26 = vld [vmem:[%s2 + $0x8] sm:$0xff]
  %v27 = vld [vmem:[%s2 + $0x10] sm:$0xff]
  %v28 = vld [vmem:[%s2 + $0x18] sm:$0xff]
  %v29 = vld [vmem:[%s2 + $0x20] sm:$0xff]
  %v30 = vld [vmem:[%s2 + $0x28] sm:$0xff]
  %v31 = vld [vmem:[%s2 + $0x30] sm:$0x11]
  %v32 = vld [vmem:[%s2 + $0x38] sm:$0x11]
  %v41 = vunpack.c.l.b16 %v25
  %v42 = vunpack.c.h.b16 %v25
  %v43 = vunpack.c.l.b16 %v26
  %v44 = vunpack.c.h.b16 %v26
  %v45 = vunpack.c.l.b16 %v27
  %v46 = vunpack.c.h.b16 %v27
  %v47 = vunpack.c.l.b16 %v28
  %v48 = vunpack.c.h.b16 %v28
  %v49 = vunpack.c.l.b16 %v29
  %v50 = vunpack.c.h.b16 %v29
  %v51 = vunpack.c.l.b16 %v30
  %v52 = vunpack.c.h.b16 %v30
  %v53 = vunpack.c.l.b16 %v31
  %v54 = vunpack.c.h.b16 %v31
  %v55 = vunpack.c.l.b16 %v32
  %v56 = vunpack.c.h.b16 %v32
  %v57 = vpack.c.b16 %v45, %v41
  %v58 = vpack.c.b16 %v46, %v42
  %v59 = vpack.c.b16 %v47, %v43
  %v60 = vpack.c.b16 %v48, %v44
  %v61 = vpack.c.b16 %v53, %v49
  %v62 = vpack.c.b16 %v54, %v50
  %v63 = vpack.c.b16 %v55, %v51
  %v64 = vpack.c.b16 %v56, %v52
  %vm69 = vcmask 203776
  %v71 = vsel %vm69, %v24, 0
  %vm73 = vcmask 1043456
  %vm74 = vcmask 1044480
  %v75 = vsel %vm73, 4294967295, 65535
  %v76 = vsel %vm74, %v75, 0
  %v78 = vand.u32 %v61, %v76
  %v81 = vand.u32 %v62, %v76
  %v84 = vand.u32 %v63, %v76
  %v87 = vand.u32 %v64, %v76
  %89 = vmatprep.subr.bf16.mxu0 %v58
  %90 = vmatpush1.bf16.msra.mxu0 %v57
  %91 = vmatprep.subr.bf16.mxu0 %v81
  %92 = vmatpush1.bf16.msra.mxu0 %v78
  %93 = vmatprep.subr.bf16.mxu0 0
  %94 = vmatpush1.bf16.msra.mxu0 0
  %95 = vmatprep.subr.bf16.mxu0 0
  %96 = vmatpush1.bf16.msra.mxu0 0
  %97 = vmatprep.subr.bf16.mxu0 0
  %98 = vmatpush1.bf16.msra.mxu0 0
  %99 = vmatprep.subr.bf16.mxu0 0
  %100 = vmatpush1.bf16.msra.mxu0 0
  %101 = vmatprep.subr.bf16.mxu0 0
  %102 = vmatpush1.bf16.msra.mxu0 0
  %103 = vmatprep.subr.bf16.mxu0 0
  %104 = vmatpush1.bf16.msra.mxu0 0
  %105 = vmatprep.subr.bf16.mxu0 0
  %106 = vmatpush1.bf16.msra.mxu0 0
  %107 = vmatprep.subr.bf16.mxu0 0
  %108 = vmatpush1.bf16.msra.mxu0 0
  %109 = vmatprep.subr.bf16.mxu0 0
  %110 = vmatpush1.bf16.msra.mxu0 0
  %111 = vmatprep.subr.bf16.mxu0 0
  %112 = vmatpush1.bf16.msra.mxu0 0
  %113 = vmatprep.subr.bf16.mxu0 0
  %114 = vmatpush1.bf16.msra.mxu0 0
  %115 = vmatprep.subr.bf16.mxu0 0
  %116 = vmatpush1.bf16.msra.mxu0 0
  %117 = vmatprep.subr.bf16.mxu0 0
  %118 = vmatpush1.bf16.msra.mxu0 0
  %119 = vmatprep.subr.bf16.mxu0 0
  %120 = vmatpush1.bf16.msra.mxu0 0
  %121 = vmatprep.mubr.bf16.mxu0 0
  %122 = vmatmul.mubr.bf16.gmra.mrb[0].mxu0 %v71
  %v123 = vpop.f32.mrb[0].mxu0
  %v124 = vadd.f32 0.0, %v123
  %v125 = vpop.f32.mrb[0].mxu0
  %v126 = vadd.f32 0.0, %v125
  %v127 = vpop.f32.mrb[0].mxu0
  %v128 = vpop.f32.mrb[0].mxu0
  %129 = vdwg.mxu0
  %130 = vmatprep.subr.bf16.mxu0 %v60
  %131 = vmatpush1.bf16.msra.mxu0 %v59
  %132 = vmatprep.subr.bf16.mxu0 %v87
  %133 = vmatpush1.bf16.msra.mxu0 %v84
  %134 = vmatprep.subr.bf16.mxu0 0
  %135 = vmatpush1.bf16.msra.mxu0 0
  %136 = vmatprep.subr.bf16.mxu0 0
  %137 = vmatpush1.bf16.msra.mxu0 0
  %138 = vmatprep.subr.bf16.mxu0 0
  %139 = vmatpush1.bf16.msra.mxu0 0
  %140 = vmatprep.subr.bf16.mxu0 0
  %141 = vmatpush1.bf16.msra.mxu0 0
  %142 = vmatprep.subr.bf16.mxu0 0
  %143 = vmatpush1.bf16.msra.mxu0 0
  %144 = vmatprep.subr.bf16.mxu0 0
  %145 = vmatpush1.bf16.msra.mxu0 0
  %146 = vmatprep.subr.bf16.mxu0 0
  %147 = vmatpush1.bf16.msra.mxu0 0
  %148 = vmatprep.subr.bf16.mxu0 0
  %149 = vmatpush1.bf16.msra.mxu0 0
  %150 = vmatprep.subr.bf16.mxu0 0
  %151 = vmatpush1.bf16.msra.mxu0 0
  %152 = vmatprep.subr.bf16.mxu0 0
  %153 = vmatpush1.bf16.msra.mxu0 0
  %154 = vmatprep.subr.bf16.mxu0 0
  %155 = vmatpush1.bf16.msra.mxu0 0
  %156 = vmatprep.subr.bf16.mxu0 0
  %157 = vmatpush1.bf16.msra.mxu0 0
  %158 = vmatprep.subr.bf16.mxu0 0
  %159 = vmatpush1.bf16.msra.mxu0 0
  %160 = vmatprep.subr.bf16.mxu0 0
  %161 = vmatpush1.bf16.msra.mxu0 0
  %162 = vmatprep.mubr.bf16.mxu0 0
  %163 = vmatmul.mubr.bf16.gmra.mrb[0].mxu0 %v71
  %v164 = vpop.f32.mrb[0].mxu0
  %v165 = vadd.f32 0.0, %v164
  %v166 = vpop.f32.mrb[0].mxu0
  %v167 = vadd.f32 0.0, %v166
  %v168 = vpop.f32.mrb[0].mxu0
  %v169 = vpop.f32.mrb[0].mxu0
  %170 = vdwg.mxu0
  %v171 = vld [vmem:[%s3] sm:$0xff]
  %v172 = vld [vmem:[%s3 + $0x8] sm:$0xff]
  %v173 = vld [vmem:[%s3 + $0x10] sm:$0xff]
  %v174 = vld [vmem:[%s3 + $0x18] sm:$0xff]
  %v175 = vld [vmem:[%s3 + $0x20] sm:$0xff]
  %v176 = vld [vmem:[%s3 + $0x28] sm:$0xff]
  %v177 = vld [vmem:[%s3 + $0x30] sm:$0x11]
  %v178 = vld [vmem:[%s3 + $0x38] sm:$0x11]
  %v187 = vunpack.c.l.b16 %v171
  %v188 = vunpack.c.h.b16 %v171
  %v189 = vunpack.c.l.b16 %v172
  %v190 = vunpack.c.h.b16 %v172
  %v191 = vunpack.c.l.b16 %v173
  %v192 = vunpack.c.h.b16 %v173
  %v193 = vunpack.c.l.b16 %v174
  %v194 = vunpack.c.h.b16 %v174
  %v195 = vunpack.c.l.b16 %v175
  %v196 = vunpack.c.h.b16 %v175
  %v197 = vunpack.c.l.b16 %v176
  %v198 = vunpack.c.h.b16 %v176
  %v199 = vunpack.c.l.b16 %v177
  %v200 = vunpack.c.h.b16 %v177
  %v201 = vunpack.c.l.b16 %v178
  %v202 = vunpack.c.h.b16 %v178
  %v203 = vpack.c.b16 %v191, %v187
  %v204 = vpack.c.b16 %v192, %v188
  %v205 = vpack.c.b16 %v193, %v189
  %v206 = vpack.c.b16 %v194, %v190
  %v207 = vpack.c.b16 %v199, %v195
  %v208 = vpack.c.b16 %v200, %v196
  %v209 = vpack.c.b16 %v201, %v197
  %v210 = vpack.c.b16 %v202, %v198
  %v216 = vand.u32 %v207, %v76
  %v219 = vand.u32 %v208, %v76
  %v222 = vand.u32 %v209, %v76
  %v225 = vand.u32 %v210, %v76
  %227 = vmatprep.subr.bf16.mxu0 %v204
  %228 = vmatpush1.bf16.msra.mxu0 %v203
  %229 = vmatprep.subr.bf16.mxu0 %v219
  %230 = vmatpush1.bf16.msra.mxu0 %v216
  %231 = vmatprep.subr.bf16.mxu0 0
  %232 = vmatpush1.bf16.msra.mxu0 0
  %233 = vmatprep.subr.bf16.mxu0 0
  %234 = vmatpush1.bf16.msra.mxu0 0
  %235 = vmatprep.subr.bf16.mxu0 0
  %236 = vmatpush1.bf16.msra.mxu0 0
  %237 = vmatprep.subr.bf16.mxu0 0
  %238 = vmatpush1.bf16.msra.mxu0 0
  %239 = vmatprep.subr.bf16.mxu0 0
  %240 = vmatpush1.bf16.msra.mxu0 0
  %241 = vmatprep.subr.bf16.mxu0 0
  %242 = vmatpush1.bf16.msra.mxu0 0
  %243 = vmatprep.subr.bf16.mxu0 0
  %244 = vmatpush1.bf16.msra.mxu0 0
  %245 = vmatprep.subr.bf16.mxu0 0
  %246 = vmatpush1.bf16.msra.mxu0 0
  %247 = vmatprep.subr.bf16.mxu0 0
  %248 = vmatpush1.bf16.msra.mxu0 0
  %249 = vmatprep.subr.bf16.mxu0 0
  %250 = vmatpush1.bf16.msra.mxu0 0
  %251 = vmatprep.subr.bf16.mxu0 0
  %252 = vmatpush1.bf16.msra.mxu0 0
  %253 = vmatprep.subr.bf16.mxu0 0
  %254 = vmatpush1.bf16.msra.mxu0 0
  %255 = vmatprep.subr.bf16.mxu0 0
  %256 = vmatpush1.bf16.msra.mxu0 0
  %257 = vmatprep.subr.bf16.mxu0 0
  %258 = vmatpush1.bf16.msra.mxu0 0
  %259 = vmatprep.mubr.bf16.mxu0 0
  %260 = vmatmul.mubr.bf16.gmra.mrb[0].mxu0 %v71
  %v261 = vpop.f32.mrb[0].mxu0
  %v262 = vadd.f32 0.0, %v261
  %v263 = vpop.f32.mrb[0].mxu0
  %v264 = vadd.f32 0.0, %v263
  %v265 = vpop.f32.mrb[0].mxu0
  %v266 = vpop.f32.mrb[0].mxu0
  %267 = vdwg.mxu0
  %268 = vmatprep.subr.bf16.mxu0 %v206
  %269 = vmatpush1.bf16.msra.mxu0 %v205
  %270 = vmatprep.subr.bf16.mxu0 %v225
  %271 = vmatpush1.bf16.msra.mxu0 %v222
  %272 = vmatprep.subr.bf16.mxu0 0
  %273 = vmatpush1.bf16.msra.mxu0 0
  %274 = vmatprep.subr.bf16.mxu0 0
  %275 = vmatpush1.bf16.msra.mxu0 0
  %276 = vmatprep.subr.bf16.mxu0 0
  %277 = vmatpush1.bf16.msra.mxu0 0
  %278 = vmatprep.subr.bf16.mxu0 0
  %279 = vmatpush1.bf16.msra.mxu0 0
  %280 = vmatprep.subr.bf16.mxu0 0
  %281 = vmatpush1.bf16.msra.mxu0 0
  %282 = vmatprep.subr.bf16.mxu0 0
  %283 = vmatpush1.bf16.msra.mxu0 0
  %284 = vmatprep.subr.bf16.mxu0 0
  %285 = vmatpush1.bf16.msra.mxu0 0
  %286 = vmatprep.subr.bf16.mxu0 0
  %287 = vmatpush1.bf16.msra.mxu0 0
  %288 = vmatprep.subr.bf16.mxu0 0
  %289 = vmatpush1.bf16.msra.mxu0 0
  %290 = vmatprep.subr.bf16.mxu0 0
  %291 = vmatpush1.bf16.msra.mxu0 0
  %292 = vmatprep.subr.bf16.mxu0 0
  %293 = vmatpush1.bf16.msra.mxu0 0
  %294 = vmatprep.subr.bf16.mxu0 0
  %295 = vmatpush1.bf16.msra.mxu0 0
  %296 = vmatprep.subr.bf16.mxu0 0
  %297 = vmatpush1.bf16.msra.mxu0 0
  %298 = vmatprep.subr.bf16.mxu0 0
  %299 = vmatpush1.bf16.msra.mxu0 0
  %300 = vmatprep.mubr.bf16.mxu0 0
  %301 = vmatmul.mubr.bf16.gmra.mrb[0].mxu0 %v71
  %v302 = vpop.f32.mrb[0].mxu0
  %v303 = vadd.f32 0.0, %v302
  %v304 = vpop.f32.mrb[0].mxu0
  %v305 = vadd.f32 0.0, %v304
  %v306 = vpop.f32.mrb[0].mxu0
  %v307 = vpop.f32.mrb[0].mxu0
  %308 = vdwg.mxu0
  %v309 = vmax.f32 %v124, %v262
  %v310 = vmax.f32 %v126, %v264
  %v311 = vmax.f32 %v165, %v303
  %v312 = vmax.f32 %v167, %v305
  %v313 = vld [vmem:[%s4] sm:$0xff]
  %v314 = vld [vmem:[%s4 + $0x8] sm:$0xff]
  %v315 = vld [vmem:[%s4 + $0x10] sm:$0xff]
  %v316 = vld [vmem:[%s4 + $0x18] sm:$0xff]
  %v317 = vld [vmem:[%s4 + $0x20] sm:$0xff]
  %v318 = vld [vmem:[%s4 + $0x28] sm:$0xff]
  %v319 = vld [vmem:[%s4 + $0x30] sm:$0x11]
  %v320 = vld [vmem:[%s4 + $0x38] sm:$0x11]
  %v329 = vunpack.c.l.b16 %v313
  %v330 = vunpack.c.h.b16 %v313
  %v331 = vunpack.c.l.b16 %v314
  %v332 = vunpack.c.h.b16 %v314
  %v333 = vunpack.c.l.b16 %v315
  %v334 = vunpack.c.h.b16 %v315
  %v335 = vunpack.c.l.b16 %v316
  %v336 = vunpack.c.h.b16 %v316
  %v337 = vunpack.c.l.b16 %v317
  %v338 = vunpack.c.h.b16 %v317
  %v339 = vunpack.c.l.b16 %v318
  %v340 = vunpack.c.h.b16 %v318
  %v341 = vunpack.c.l.b16 %v319
  %v342 = vunpack.c.h.b16 %v319
  %v343 = vunpack.c.l.b16 %v320
  %v344 = vunpack.c.h.b16 %v320
  %v345 = vpack.c.b16 %v333, %v329
  %v346 = vpack.c.b16 %v334, %v330
  %v347 = vpack.c.b16 %v335, %v331
  %v348 = vpack.c.b16 %v336, %v332
  %v349 = vpack.c.b16 %v341, %v337
  %v350 = vpack.c.b16 %v342, %v338
  %v351 = vpack.c.b16 %v343, %v339
  %v352 = vpack.c.b16 %v344, %v340
  %v358 = vand.u32 %v349, %v76
  %v361 = vand.u32 %v350, %v76
  %v364 = vand.u32 %v351, %v76
  %v367 = vand.u32 %v352, %v76
  %369 = vmatprep.subr.bf16.mxu0 %v346
  %370 = vmatpush1.bf16.msra.mxu0 %v345
  %371 = vmatprep.subr.bf16.mxu0 %v361
  %372 = vmatpush1.bf16.msra.mxu0 %v358
  %373 = vmatprep.subr.bf16.mxu0 0
  %374 = vmatpush1.bf16.msra.mxu0 0
  %375 = vmatprep.subr.bf16.mxu0 0
  %376 = vmatpush1.bf16.msra.mxu0 0
  %377 = vmatprep.subr.bf16.mxu0 0
  %378 = vmatpush1.bf16.msra.mxu0 0
  %379 = vmatprep.subr.bf16.mxu0 0
  %380 = vmatpush1.bf16.msra.mxu0 0
  %381 = vmatprep.subr.bf16.mxu0 0
  %382 = vmatpush1.bf16.msra.mxu0 0
  %383 = vmatprep.subr.bf16.mxu0 0
  %384 = vmatpush1.bf16.msra.mxu0 0
  %385 = vmatprep.subr.bf16.mxu0 0
  %386 = vmatpush1.bf16.msra.mxu0 0
  %387 = vmatprep.subr.bf16.mxu0 0
  %388 = vmatpush1.bf16.msra.mxu0 0
  %389 = vmatprep.subr.bf16.mxu0 0
  %390 = vmatpush1.bf16.msra.mxu0 0
  %391 = vmatprep.subr.bf16.mxu0 0
  %392 = vmatpush1.bf16.msra.mxu0 0
  %393 = vmatprep.subr.bf16.mxu0 0
  %394 = vmatpush1.bf16.msra.mxu0 0
  %395 = vmatprep.subr.bf16.mxu0 0
  %396 = vmatpush1.bf16.msra.mxu0 0
  %397 = vmatprep.subr.bf16.mxu0 0
  %398 = vmatpush1.bf16.msra.mxu0 0
  %399 = vmatprep.subr.bf16.mxu0 0
  %400 = vmatpush1.bf16.msra.mxu0 0
  %401 = vmatprep.mubr.bf16.mxu0 0
  %402 = vmatmul.mubr.bf16.gmra.mrb[0].mxu0 %v71
  %v403 = vpop.f32.mrb[0].mxu0
  %v404 = vadd.f32 0.0, %v403
  %v405 = vpop.f32.mrb[0].mxu0
  %v406 = vadd.f32 0.0, %v405
  %v407 = vpop.f32.mrb[0].mxu0
  %v408 = vpop.f32.mrb[0].mxu0
  %409 = vdwg.mxu0
  %410 = vmatprep.subr.bf16.mxu0 %v348
  %411 = vmatpush1.bf16.msra.mxu0 %v347
  %412 = vmatprep.subr.bf16.mxu0 %v367
  %413 = vmatpush1.bf16.msra.mxu0 %v364
  %414 = vmatprep.subr.bf16.mxu0 0
  %415 = vmatpush1.bf16.msra.mxu0 0
  %416 = vmatprep.subr.bf16.mxu0 0
  %417 = vmatpush1.bf16.msra.mxu0 0
  %418 = vmatprep.subr.bf16.mxu0 0
  %419 = vmatpush1.bf16.msra.mxu0 0
  %420 = vmatprep.subr.bf16.mxu0 0
  %421 = vmatpush1.bf16.msra.mxu0 0
  %422 = vmatprep.subr.bf16.mxu0 0
  %423 = vmatpush1.bf16.msra.mxu0 0
  %424 = vmatprep.subr.bf16.mxu0 0
  %425 = vmatpush1.bf16.msra.mxu0 0
  %426 = vmatprep.subr.bf16.mxu0 0
  %427 = vmatpush1.bf16.msra.mxu0 0
  %428 = vmatprep.subr.bf16.mxu0 0
  %429 = vmatpush1.bf16.msra.mxu0 0
  %430 = vmatprep.subr.bf16.mxu0 0
  %431 = vmatpush1.bf16.msra.mxu0 0
  %432 = vmatprep.subr.bf16.mxu0 0
  %433 = vmatpush1.bf16.msra.mxu0 0
  %434 = vmatprep.subr.bf16.mxu0 0
  %435 = vmatpush1.bf16.msra.mxu0 0
  %436 = vmatprep.subr.bf16.mxu0 0
  %437 = vmatpush1.bf16.msra.mxu0 0
  %438 = vmatprep.subr.bf16.mxu0 0
  %439 = vmatpush1.bf16.msra.mxu0 0
  %440 = vmatprep.subr.bf16.mxu0 0
  %441 = vmatpush1.bf16.msra.mxu0 0
  %442 = vmatprep.mubr.bf16.mxu0 0
  %443 = vmatmul.mubr.bf16.gmra.mrb[0].mxu0 %v71
  %v444 = vpop.f32.mrb[0].mxu0
  %v445 = vadd.f32 0.0, %v444
  %v446 = vpop.f32.mrb[0].mxu0
  %v447 = vadd.f32 0.0, %v446
  %v448 = vpop.f32.mrb[0].mxu0
  %v449 = vpop.f32.mrb[0].mxu0
  %450 = vdwg.mxu0
  %v451 = vmax.f32 %v309, %v404
  %v452 = vmax.f32 %v310, %v406
  %v453 = vmax.f32 %v311, %v445
  %v454 = vmax.f32 %v312, %v447
  %v455 = vld [vmem:[%s5] sm:$0xff]
  %v456 = vld [vmem:[%s5 + $0x8] sm:$0xff]
  %v457 = vld [vmem:[%s5 + $0x10] sm:$0xff]
  %v458 = vld [vmem:[%s5 + $0x18] sm:$0xff]
  %v459 = vld [vmem:[%s5 + $0x20] sm:$0xff]
  %v460 = vld [vmem:[%s5 + $0x28] sm:$0xff]
  %v461 = vld [vmem:[%s5 + $0x30] sm:$0x11]
  %v462 = vld [vmem:[%s5 + $0x38] sm:$0x11]
  %v471 = vunpack.c.l.b16 %v455
  %v472 = vunpack.c.h.b16 %v455
  %v473 = vunpack.c.l.b16 %v456
  %v474 = vunpack.c.h.b16 %v456
  %v475 = vunpack.c.l.b16 %v457
  %v476 = vunpack.c.h.b16 %v457
  %v477 = vunpack.c.l.b16 %v458
  %v478 = vunpack.c.h.b16 %v458
  %v479 = vunpack.c.l.b16 %v459
  %v480 = vunpack.c.h.b16 %v459
  %v481 = vunpack.c.l.b16 %v460
  %v482 = vunpack.c.h.b16 %v460
  %v483 = vunpack.c.l.b16 %v461
  %v484 = vunpack.c.h.b16 %v461
  %v485 = vunpack.c.l.b16 %v462
  %v486 = vunpack.c.h.b16 %v462
  %v487 = vpack.c.b16 %v475, %v471
  %v488 = vpack.c.b16 %v476, %v472
  %v489 = vpack.c.b16 %v477, %v473
  %v490 = vpack.c.b16 %v478, %v474
  %v491 = vpack.c.b16 %v483, %v479
  %v492 = vpack.c.b16 %v484, %v480
  %v493 = vpack.c.b16 %v485, %v481
  %v494 = vpack.c.b16 %v486, %v482
  %v500 = vand.u32 %v491, %v76
  %v503 = vand.u32 %v492, %v76
  %v506 = vand.u32 %v493, %v76
  %v509 = vand.u32 %v494, %v76
  %511 = vmatprep.subr.bf16.mxu0 %v488
  %512 = vmatpush1.bf16.msra.mxu0 %v487
  %513 = vmatprep.subr.bf16.mxu0 %v503
  %514 = vmatpush1.bf16.msra.mxu0 %v500
  %515 = vmatprep.subr.bf16.mxu0 0
  %516 = vmatpush1.bf16.msra.mxu0 0
  %517 = vmatprep.subr.bf16.mxu0 0
  %518 = vmatpush1.bf16.msra.mxu0 0
  %519 = vmatprep.subr.bf16.mxu0 0
  %520 = vmatpush1.bf16.msra.mxu0 0
  %521 = vmatprep.subr.bf16.mxu0 0
  %522 = vmatpush1.bf16.msra.mxu0 0
  %523 = vmatprep.subr.bf16.mxu0 0
  %524 = vmatpush1.bf16.msra.mxu0 0
  %525 = vmatprep.subr.bf16.mxu0 0
  %526 = vmatpush1.bf16.msra.mxu0 0
  %527 = vmatprep.subr.bf16.mxu0 0
  %528 = vmatpush1.bf16.msra.mxu0 0
  %529 = vmatprep.subr.bf16.mxu0 0
  %530 = vmatpush1.bf16.msra.mxu0 0
  %531 = vmatprep.subr.bf16.mxu0 0
  %532 = vmatpush1.bf16.msra.mxu0 0
  %533 = vmatprep.subr.bf16.mxu0 0
  %534 = vmatpush1.bf16.msra.mxu0 0
  %535 = vmatprep.subr.bf16.mxu0 0
  %536 = vmatpush1.bf16.msra.mxu0 0
  %537 = vmatprep.subr.bf16.mxu0 0
  %538 = vmatpush1.bf16.msra.mxu0 0
  %539 = vmatprep.subr.bf16.mxu0 0
  %540 = vmatpush1.bf16.msra.mxu0 0
  %541 = vmatprep.subr.bf16.mxu0 0
  %542 = vmatpush1.bf16.msra.mxu0 0
  %543 = vmatprep.mubr.bf16.mxu0 0
  %544 = vmatmul.mubr.bf16.gmra.mrb[0].mxu0 %v71
  %v545 = vpop.f32.mrb[0].mxu0
  %v546 = vadd.f32 0.0, %v545
  %v547 = vpop.f32.mrb[0].mxu0
  %v548 = vadd.f32 0.0, %v547
  %v549 = vpop.f32.mrb[0].mxu0
  %v550 = vpop.f32.mrb[0].mxu0
  %551 = vdwg.mxu0
  %552 = vmatprep.subr.bf16.mxu0 %v490
  %553 = vmatpush1.bf16.msra.mxu0 %v489
  %554 = vmatprep.subr.bf16.mxu0 %v509
  %555 = vmatpush1.bf16.msra.mxu0 %v506
  %556 = vmatprep.subr.bf16.mxu0 0
  %557 = vmatpush1.bf16.msra.mxu0 0
  %558 = vmatprep.subr.bf16.mxu0 0
  %559 = vmatpush1.bf16.msra.mxu0 0
  %560 = vmatprep.subr.bf16.mxu0 0
  %561 = vmatpush1.bf16.msra.mxu0 0
  %562 = vmatprep.subr.bf16.mxu0 0
  %563 = vmatpush1.bf16.msra.mxu0 0
  %564 = vmatprep.subr.bf16.mxu0 0
  %565 = vmatpush1.bf16.msra.mxu0 0
  %566 = vmatprep.subr.bf16.mxu0 0
  %567 = vmatpush1.bf16.msra.mxu0 0
  %568 = vmatprep.subr.bf16.mxu0 0
  %569 = vmatpush1.bf16.msra.mxu0 0
  %570 = vmatprep.subr.bf16.mxu0 0
  %571 = vmatpush1.bf16.msra.mxu0 0
  %572 = vmatprep.subr.bf16.mxu0 0
  %573 = vmatpush1.bf16.msra.mxu0 0
  %574 = vmatprep.subr.bf16.mxu0 0
  %575 = vmatpush1.bf16.msra.mxu0 0
  %576 = vmatprep.subr.bf16.mxu0 0
  %577 = vmatpush1.bf16.msra.mxu0 0
  %578 = vmatprep.subr.bf16.mxu0 0
  %579 = vmatpush1.bf16.msra.mxu0 0
  %580 = vmatprep.subr.bf16.mxu0 0
  %581 = vmatpush1.bf16.msra.mxu0 0
  %582 = vmatprep.subr.bf16.mxu0 0
  %583 = vmatpush1.bf16.msra.mxu0 0
  %584 = vmatprep.mubr.bf16.mxu0 0
  %585 = vmatmul.mubr.bf16.gmra.mrb[0].mxu0 %v71
  %v586 = vpop.f32.mrb[0].mxu0
  %v587 = vadd.f32 0.0, %v586
  %v588 = vpop.f32.mrb[0].mxu0
  %v589 = vadd.f32 0.0, %v588
  %v590 = vpop.f32.mrb[0].mxu0
  %v591 = vpop.f32.mrb[0].mxu0
  %592 = vdwg.mxu0
  %v593 = vmax.f32 %v451, %v546
  %v594 = vmax.f32 %v452, %v548
  %v595 = vmax.f32 %v453, %v587
  %v596 = vmax.f32 %v454, %v589
  %v597 = vld [vmem:[%s1] sm:$0x3f]
  %599 = vset.pattern.permute.xlu0 0
  %600 = vperm.xlu0 %599, %v597
  %v601 = vpop.permute.xlu0 %600
  %v603 = vadd.f32 %v593, %v601
  %v604 = vadd.f32 %v594, %v601
  %v605 = vadd.f32 %v595, %v601
  %v606 = vadd.f32 %v596, %v601
  %v607 = vmax.f32 %v603, 0.0
  %v608 = vmax.f32 %v604, 0.0
  %v609 = vmax.f32 %v605, 0.0
  %v610 = vmax.f32 %v606, 0.0
  %611 = vst [vmem:[%s6] sm:$0x3f] %v607
  %612 = vst [vmem:[%s6 + $0x8] sm:$0x3f] %v608
  %613 = vst [vmem:[%s6 + $0x10] sm:$0x3f] %v609
  %vm614 = vcmask 62464
  %615 = vst.msk [vmem:[%s6 + $0x18] sm:$0x3f] %vm614, %v610
  // Predicated region
  $region26: #{lenet_forward.2} parent=0 // pred_check
    _
  $region27: #{lenet_forward.2} parent=0 // pred_check_branch
    %617 = sbr.rel (0) target = $region29
  $region28: #{lenet_forward.2} parent=0 // pred_region
    _
  $region29: #{lenet_forward.2} parent=0 // pred_fallthru
    _
  // Predicated region
  $region30: #{lenet_forward.2} parent=0 // pred_check
    _
  $region31: #{lenet_forward.2} parent=0 // pred_check_branch
    %619 = sbr.rel (0) target = $region33
  $region32: #{lenet_forward.2} parent=0 // pred_region
    _
  $region33: #{lenet_forward.2} parent=0 // pred_fallthru
    _

// kernel: lenet_forward.3
$region0: #{lenet_forward.3}
  #allocation0 [shape = 'u32[]', space=smem, size = 0x4, offset = 0x4, fixed_abs, tag = 'smem constant byte address 0x4 - core index']
  #allocation1 [shape = 'u32[144,128]{1,0:T(1,128)}', space=vmem, size = 0x12000, scoped, tag = 'internal scratch']
  %s0 = inlined_call_operand.vmem [shape: bf16[150,16], index: 0, kind: input, shape index: {}]
  %s1 = inlined_call_operand.vmem [shape: f32[1,16], index: 1, kind: input, shape index: {}]
  %s2 = inlined_call_operand.vmem [shape: bf16[50,150], index: 2, kind: input, shape index: {}]
  %s3 = inlined_call_operand.vmem [shape: bf16[50,150], index: 3, kind: input, shape index: {}]
  %s4 = inlined_call_operand.vmem [shape: bf16[50,150], index: 4, kind: input, shape index: {}]
  %s5 = inlined_call_operand.vmem [shape: bf16[50,150], index: 5, kind: input, shape index: {}]
  %s6 = inlined_call_operand.vmem [shape: bf16[25,16,120], index: 6, kind: input, shape index: {}]
  %s7 = inlined_call_operand.vmem [shape: f32[1,120], index: 7, kind: input, shape index: {}]
  %s8 = inlined_call_operand.vmem [shape: bf16[120,84], index: 8, kind: input, shape index: {}]
  %s9 = inlined_call_operand.vmem [shape: f32[1,84], index: 9, kind: input, shape index: {}]
  %s10 = inlined_call_operand.vmem [shape: bf16[84,10], index: 10, kind: input, shape index: {}]
  %s11 = inlined_call_operand.vmem [shape: f32[1,10], index: 11, kind: input, shape index: {}]
  %s12 = inlined_call_operand.hbm [shape: f32[2,10], index: 12, kind: output, shape index: {}]
  %s13 = sld [smem:[#allocation0]]
  $region58: #{lenet_forward.3} parent=0
    _
  %s15 = ssub.s32 1, %s13
  %s16 = scalar_select 0, %s15, %s13
  $region1: #{lenet_forward.3} parent=0
    #allocation2 [shape = 'u8[1024]{0}', space=vmem, size = 0x400, scoped, tag = 'output window, operand 0, single buffered']
    #allocation3 [shape = 's32[1]{0}', space=sflag, size = 0x4, scoped, tag = 'scoped memory for lenet_forward.3']
    %17 = vsyncpa [#allocation3], 0
    // Predicated region
    $region2: #{lenet_forward.3} parent=1 // pred_check
      _
    $region3: #{lenet_forward.3} parent=1 // pred_check_branch
      %19 = sbr.rel (0) target = $region5
    $region4: #{lenet_forward.3} parent=1 // pred_region
      _
    $region5: #{lenet_forward.3} parent=1 // pred_fallthru
      _
    // Predicated region
    $region6: #{lenet_forward.3} parent=1 // pred_check
      _
    $region7: #{lenet_forward.3} parent=1 // pred_check_branch
      %21 = sbr.rel (0) target = $region9
    $region8: #{lenet_forward.3} parent=1 // pred_region
      _
    $region9: #{lenet_forward.3} parent=1 // pred_fallthru
      _
    // Predicated region
    $region10: #{lenet_forward.3} parent=1 // pred_check
      _
    $region11: #{lenet_forward.3} parent=1 // pred_check_branch
      %23 = sbr.rel (0) target = $region13
    $region12: #{lenet_forward.3} parent=1 // pred_region
      _
    $region13: #{lenet_forward.3} parent=1 // pred_fallthru
      _
    // Predicated region
    $region14: #{lenet_forward.3} parent=1 // pred_check
      _
    $region15: #{lenet_forward.3} parent=1 // pred_check_branch
      %25 = sbr.rel (0) target = $region17
    $region16: #{lenet_forward.3} parent=1 // pred_region
      _
    $region17: #{lenet_forward.3} parent=1 // pred_fallthru
      _
    // Predicated region
    $region18: #{lenet_forward.3} parent=1 // pred_check
      _
    $region19: #{lenet_forward.3} parent=1 // pred_check_branch
      %27 = sbr.rel (0) target = $region21
    $region20: #{lenet_forward.3} parent=1 // pred_region
      _
    $region21: #{lenet_forward.3} parent=1 // pred_fallthru
      _
    // Predicated region
    $region22: #{lenet_forward.3} parent=1 // pred_check
      _
    $region23: #{lenet_forward.3} parent=1 // pred_check_branch
      %29 = sbr.rel (0) target = $region25
    $region24: #{lenet_forward.3} parent=1 // pred_region
      _
    $region25: #{lenet_forward.3} parent=1 // pred_fallthru
      _
    // Predicated region
    $region26: #{lenet_forward.3} parent=1 // pred_check
      _
    $region27: #{lenet_forward.3} parent=1 // pred_check_branch
      %31 = sbr.rel (0) target = $region29
    $region28: #{lenet_forward.3} parent=1 // pred_region
      _
    $region29: #{lenet_forward.3} parent=1 // pred_fallthru
      _
    // Predicated region
    $region30: #{lenet_forward.3} parent=1 // pred_check
      _
    $region31: #{lenet_forward.3} parent=1 // pred_check_branch
      %33 = sbr.rel (0) target = $region33
    $region32: #{lenet_forward.3} parent=1 // pred_region
      _
    $region33: #{lenet_forward.3} parent=1 // pred_fallthru
      _
    // Predicated region
    $region34: #{lenet_forward.3} parent=1 // pred_check
      _
    $region35: #{lenet_forward.3} parent=1 // pred_check_branch
      %35 = sbr.rel (0) target = $region37
    $region36: #{lenet_forward.3} parent=1 // pred_region
      _
    $region37: #{lenet_forward.3} parent=1 // pred_fallthru
      _
    // Predicated region
    $region38: #{lenet_forward.3} parent=1 // pred_check
      _
    $region39: #{lenet_forward.3} parent=1 // pred_check_branch
      %37 = sbr.rel (0) target = $region41
    $region40: #{lenet_forward.3} parent=1 // pred_region
      _
    $region41: #{lenet_forward.3} parent=1 // pred_fallthru
      _
    // Predicated region
    $region42: #{lenet_forward.3} parent=1 // pred_check
      _
    $region43: #{lenet_forward.3} parent=1 // pred_check_branch
      %39 = sbr.rel (0) target = $region45
    $region44: #{lenet_forward.3} parent=1 // pred_region
      _
    $region45: #{lenet_forward.3} parent=1 // pred_fallthru
      _
    // Predicated region
    $region46: #{lenet_forward.3} parent=1 // pred_check
      _
    $region47: #{lenet_forward.3} parent=1 // pred_check_branch
      %41 = sbr.rel (0) target = $region49
    $region48: #{lenet_forward.3} parent=1 // pred_region
      _
    $region49: #{lenet_forward.3} parent=1 // pred_fallthru
      _
    %v43 = vld [vmem:[%s0] sm:$0xf]
    %v44 = vld [vmem:[%s0 + $0x4] sm:$0xf]
    %v45 = vld [vmem:[%s0 + $0x8] sm:$0xf]
    %v46 = vld [vmem:[%s0 + $0xc] sm:$0xf]
    %v47 = vld [vmem:[%s0 + $0x10] sm:$0xf]
    %v48 = vld [vmem:[%s0 + $0x14] sm:$0xf]
    %v49 = vld [vmem:[%s0 + $0x18] sm:$0xf]
    %v50 = vld [vmem:[%s0 + $0x1c] sm:$0xf]
    %v51 = vld [vmem:[%s0 + $0x20] sm:$0xf]
    %v52 = vld [vmem:[%s0 + $0x24] sm:$0xf]
    %v53 = vld [vmem:[%s0 + $0x28] sm:$0xf]
    %v54 = vld [vmem:[%s0 + $0x2c] sm:$0xf]
    %v55 = vld [vmem:[%s0 + $0x30] sm:$0xf]
    %v56 = vld [vmem:[%s0 + $0x34] sm:$0xf]
    %v57 = vld [vmem:[%s0 + $0x38] sm:$0xf]
    %v58 = vld [vmem:[%s0 + $0x3c] sm:$0xf]
    %v59 = vld [vmem:[%s0 + $0x40] sm:$0xf]
    %v60 = vld [vmem:[%s0 + $0x44] sm:$0xf]
    %v61 = vld [vmem:[%s0 + $0x48] sm:$0x7]
    %v62 = vld [vmem:[%s2] sm:$0xff]
    %v63 = vld [vmem:[%s2 + $0x8] sm:$0xff]
    %v64 = vld [vmem:[%s2 + $0x10] sm:$0xff]
    %v65 = vld [vmem:[%s2 + $0x18] sm:$0xff]
    %v66 = vld [vmem:[%s2 + $0x20] sm:$0xff]
    %v67 = vld [vmem:[%s2 + $0x28] sm:$0xff]
    %v68 = vld [vmem:[%s2 + $0x30] sm:$0x11]
    %v76 = vunpack.c.l.b16 %v62
    %v77 = vunpack.c.h.b16 %v62
    %v78 = vunpack.c.l.b16 %v63
    %v79 = vunpack.c.h.b16 %v63
    %v80 = vunpack.c.l.b16 %v64
    %v81 = vunpack.c.h.b16 %v64
    %v82 = vunpack.c.l.b16 %v65
    %v83 = vunpack.c.h.b16 %v65
    %v84 = vunpack.c.l.b16 %v66
    %v85 = vunpack.c.h.b16 %v66
    %v86 = vunpack.c.l.b16 %v67
    %v87 = vunpack.c.h.b16 %v67
    %v88 = vunpack.c.l.b16 %v68
    %v89 = vunpack.c.h.b16 %v68
    %v90 = vpack.c.b16 %v78, %v76
    %v91 = vpack.c.b16 %v79, %v77
    %v92 = vpack.c.b16 %v82, %v80
    %v93 = vpack.c.b16 %v83, %v81
    %v94 = vpack.c.b16 %v86, %v84
    %v95 = vpack.c.b16 %v87, %v85
    %v96 = vpack.c.b16 %v88, %v88
    %v97 = vpack.c.b16 %v89, %v89
    %v121 = vunpack.c.l.b16 %v43
    %v122 = vunpack.c.l.b16 %v44
    %v123 = vunpack.c.l.b16 %v45
    %v124 = vunpack.c.l.b16 %v46
    %v125 = vunpack.c.l.b16 %v47
    %v126 = vunpack.c.l.b16 %v48
    %v127 = vunpack.c.l.b16 %v49
    %v128 = vunpack.c.l.b16 %v50
    %v129 = vunpack.c.l.b16 %v51
    %v130 = vunpack.c.l.b16 %v52
    %v131 = vunpack.c.l.b16 %v53
    %v132 = vunpack.c.l.b16 %v54
    %v133 = vunpack.c.l.b16 %v55
    %v134 = vunpack.c.l.b16 %v56
    %v135 = vunpack.c.l.b16 %v57
    %v136 = vunpack.c.l.b16 %v58
    %v137 = vunpack.c.l.b16 %v59
    %v138 = vunpack.c.l.b16 %v60
    %v139 = vunpack.c.l.b16 %v61
    %v140 = vpack.c.b16 %v122, %v121
    %v141 = vpack.c.b16 %v124, %v123
    %v142 = vpack.c.b16 %v126, %v125
    %v143 = vpack.c.b16 %v128, %v127
    %v144 = vpack.c.b16 %v130, %v129
    %v145 = vpack.c.b16 %v132, %v131
    %v146 = vpack.c.b16 %v134, %v133
    %v147 = vpack.c.b16 %v136, %v135
    %v148 = vpack.c.b16 %v138, %v137
    %v149 = vpack.c.b16 %v139, %v139
    %vm159 = vcmask 179200
    %v161 = vsel %vm159, %v91, 0
    %v164 = vsel %vm159, %v93, 0
    %v167 = vsel %vm159, %v95, 0
    %v170 = vsel %vm159, %v97, 0
    %vm172 = vcmask 1042432
    %v174 = vsel %vm172, %v149, 0
    %176 = vmatprep.subr.bf16.mxu0 0
    %177 = vmatpush1.bf16.msra.mxu0 %v140
    %178 = vmatprep.subr.bf16.mxu0 0
    %179 = vmatpush1.bf16.msra.mxu0 %v141
    %180 = vmatprep.subr.bf16.mxu0 0
    %181 = vmatpush1.bf16.msra.mxu0 %v142
    %182 = vmatprep.subr.bf16.mxu0 0
    %183 = vmatpush1.bf16.msra.mxu0 %v143
    %184 = vmatprep.subr.bf16.mxu0 0
    %185 = vmatpush1.bf16.msra.mxu0 %v144
    %186 = vmatprep.subr.bf16.mxu0 0
    %187 = vmatpush1.bf16.msra.mxu0 %v145
    %188 = vmatprep.subr.bf16.mxu0 0
    %189 = vmatpush1.bf16.msra.mxu0 %v146
    %190 = vmatprep.subr.bf16.mxu0 0
    %191 = vmatpush1.bf16.msra.mxu0 %v147
    %192 = vmatprep.subr.bf16.mxu0 0
    %193 = vmatpush1.bf16.msra.mxu0 %v148
    %194 = vmatprep.subr.bf16.mxu0 0
    %195 = vmatpush1.bf16.msra.mxu0 %v174
    %196 = vmatprep.subr.bf16.mxu0 0
    %197 = vmatpush1.bf16.msra.mxu0 0
    %198 = vmatprep.subr.bf16.mxu0 0
    %199 = vmatpush1.bf16.msra.mxu0 0
    %200 = vmatprep.subr.bf16.mxu0 0
    %201 = vmatpush1.bf16.msra.mxu0 0
    %202 = vmatprep.subr.bf16.mxu0 0
    %203 = vmatpush1.bf16.msra.mxu0 0
    %204 = vmatprep.subr.bf16.mxu0 0
    %205 = vmatpush1.bf16.msra.mxu0 0
    %206 = vmatprep.subr.bf16.mxu0 0
    %207 = vmatpush1.bf16.msra.mxu0 0
    %208 = vmatprep.mubr.bf16.mxu0 %v161
    %209 = vmatmul.mubr.bf16.gmra.mrb[0].mxu0 %v90
    %v210 = vpop.f32.mrb[0].mxu0
    %v211 = vadd.f32 0.0, %v210
    %v212 = vpop.f32.mrb[0].mxu0
    %v213 = vpop.f32.mrb[0].mxu0
    %v214 = vadd.f32 0.0, %v213
    %v215 = vpop.f32.mrb[0].mxu0
    %216 = vmatprep.mubr.bf16.mxu0 %v164
    %217 = vmatmul.mubr.bf16.gmra.mrb[0].mxu0 %v92
    %v218 = vpop.f32.mrb[0].mxu0
    %v219 = vadd.f32 0.0, %v218
    %v220 = vpop.f32.mrb[0].mxu0
    %v221 = vpop.f32.mrb[0].mxu0
    %v222 = vadd.f32 0.0, %v221
    %v223 = vpop.f32.mrb[0].mxu0
    %224 = vmatprep.mubr.bf16.mxu0 %v167
    %225 = vmatmul.mubr.bf16.gmra.mrb[0].mxu0 %v94
    %v226 = vpop.f32.mrb[0].mxu0
    %v227 = vadd.f32 0.0, %v226
    %v228 = vpop.f32.mrb[0].mxu0
    %v229 = vpop.f32.mrb[0].mxu0
    %v230 = vadd.f32 0.0, %v229
    %v231 = vpop.f32.mrb[0].mxu0
    %232 = vmatprep.mubr.bf16.mxu0 %v170
    %233 = vmatmul.mubr.bf16.gmra.mrb[0].mxu0 %v96
    %v234 = vpop.f32.mrb[0].mxu0
    %v235 = vadd.f32 0.0, %v234
    %v236 = vpop.f32.mrb[0].mxu0
    %v237 = vpop.f32.mrb[0].mxu0
    %v238 = vpop.f32.mrb[0].mxu0
    %239 = vdwg.mxu0
    %v240 = vld [vmem:[%s3] sm:$0xff]
    %v241 = vld [vmem:[%s3 + $0x8] sm:$0xff]
    %v242 = vld [vmem:[%s3 + $0x10] sm:$0xff]
    %v243 = vld [vmem:[%s3 + $0x18] sm:$0xff]
    %v244 = vld [vmem:[%s3 + $0x20] sm:$0xff]
    %v245 = vld [vmem:[%s3 + $0x28] sm:$0xff]
    %v246 = vld [vmem:[%s3 + $0x30] sm:$0x11]
    %v254 = vunpack.c.l.b16 %v240
    %v255 = vunpack.c.h.b16 %v240
    %v256 = vunpack.c.l.b16 %v241
    %v257 = vunpack.c.h.b16 %v241
    %v258 = vunpack.c.l.b16 %v242
    %v259 = vunpack.c.h.b16 %v242
    %v260 = vunpack.c.l.b16 %v243
    %v261 = vunpack.c.h.b16 %v243
    %v262 = vunpack.c.l.b16 %v244
    %v263 = vunpack.c.h.b16 %v244
    %v264 = vunpack.c.l.b16 %v245
    %v265 = vunpack.c.h.b16 %v245
    %v266 = vunpack.c.l.b16 %v246
    %v267 = vunpack.c.h.b16 %v246
    %v268 = vpack.c.b16 %v256, %v254
    %v269 = vpack.c.b16 %v257, %v255
    %v270 = vpack.c.b16 %v260, %v258
    %v271 = vpack.c.b16 %v261, %v259
    %v272 = vpack.c.b16 %v264, %v262
    %v273 = vpack.c.b16 %v265, %v263
    %v274 = vpack.c.b16 %v266, %v266
    %v275 = vpack.c.b16 %v267, %v267
    %v281 = vsel %vm159, %v269, 0
    %v284 = vsel %vm159, %v271, 0
    %v287 = vsel %vm159, %v273, 0
    %v290 = vsel %vm159, %v275, 0
    %292 = vmatprep.subr.bf16.mxu0 0
    %293 = vmatpush1.bf16.msra.mxu0 %v140
    %294 = vmatprep.subr.bf16.mxu0 0
    %295 = vmatpush1.bf16.msra.mxu0 %v141
    %296 = vmatprep.subr.bf16.mxu0 0
    %297 = vmatpush1.bf16.msra.mxu0 %v142
    %298 = vmatprep.subr.bf16.mxu0 0
    %299 = vmatpush1.bf16.msra.mxu0 %v143
    %300 = vmatprep.subr.bf16.mxu0 0
    %301 = vmatpush1.bf16.msra.mxu0 %v144
    %302 = vmatprep.subr.bf16.mxu0 0
    %303 = vmatpush1.bf16.msra.mxu0 %v145
    %304 = vmatprep.subr.bf16.mxu0 0
    %305 = vmatpush1.bf16.msra.mxu0 %v146
    %306 = vmatprep.subr.bf16.mxu0 0
    %307 = vmatpush1.bf16.msra.mxu0 %v147
    %308 = vmatprep.subr.bf16.mxu0 0
    %309 = vmatpush1.bf16.msra.mxu0 %v148
    %310 = vmatprep.subr.bf16.mxu0 0
    %311 = vmatpush1.bf16.msra.mxu0 %v174
    %312 = vmatprep.subr.bf16.mxu0 0
    %313 = vmatpush1.bf16.msra.mxu0 0
    %314 = vmatprep.subr.bf16.mxu0 0
    %315 = vmatpush1.bf16.msra.mxu0 0
    %316 = vmatprep.subr.bf16.mxu0 0
    %317 = vmatpush1.bf16.msra.mxu0 0
    %318 = vmatprep.subr.bf16.mxu0 0
    %319 = vmatpush1.bf16.msra.mxu0 0
    %320 = vmatprep.subr.bf16.mxu0 0
    %321 = vmatpush1.bf16.msra.mxu0 0
    %322 = vmatprep.subr.bf16.mxu0 0
    %323 = vmatpush1.bf16.msra.mxu0 0
    %324 = vmatprep.mubr.bf16.mxu0 %v281
    %325 = vmatmul.mubr.bf16.gmra.mrb[0].mxu0 %v268
    %v326 = vpop.f32.mrb[0].mxu0
    %v327 = vadd.f32 0.0, %v326
    %v328 = vpop.f32.mrb[0].mxu0
    %v329 = vpop.f32.mrb[0].mxu0
    %v330 = vadd.f32 0.0, %v329
    %v331 = vpop.f32.mrb[0].mxu0
    %332 = vmatprep.mubr.bf16.mxu0 %v284
    %333 = vmatmul.mubr.bf16.gmra.mrb[0].mxu0 %v270
    %v334 = vpop.f32.mrb[0].mxu0
    %v335 = vadd.f32 0.0, %v334
    %v336 = vpop.f32.mrb[0].mxu0
    %v337 = vpop.f32.mrb[0].mxu0
    %v338 = vadd.f32 0.0, %v337
    %v339 = vpop.f32.mrb[0].mxu0
    %340 = vmatprep.mubr.bf16.mxu0 %v287
    %341 = vmatmul.mubr.bf16.gmra.mrb[0].mxu0 %v272
    %v342 = vpop.f32.mrb[0].mxu0
    %v343 = vadd.f32 0.0, %v342
    %v344 = vpop.f32.mrb[0].mxu0
    %v345 = vpop.f32.mrb[0].mxu0
    %v346 = vadd.f32 0.0, %v345
    %v347 = vpop.f32.mrb[0].mxu0
    %348 = vmatprep.mubr.bf16.mxu0 %v290
    %349 = vmatmul.mubr.bf16.gmra.mrb[0].mxu0 %v274
    %v350 = vpop.f32.mrb[0].mxu0
    %v351 = vadd.f32 0.0, %v350
    %v352 = vpop.f32.mrb[0].mxu0
    %v353 = vpop.f32.mrb[0].mxu0
    %v354 = vpop.f32.mrb[0].mxu0
    %355 = vdwg.mxu0
    %v356 = vmax.f32 %v211, %v327
    %v357 = vmax.f32 %v214, %v330
    %v358 = vmax.f32 %v219, %v335
    %v359 = vmax.f32 %v222, %v338
    %v360 = vmax.f32 %v227, %v343
    %v361 = vmax.f32 %v230, %v346
    %v362 = vmax.f32 %v235, %v351
    %v363 = vld [vmem:[%s4] sm:$0xff]
    %v364 = vld [vmem:[%s4 + $0x8] sm:$0xff]
    %v365 = vld [vmem:[%s4 + $0x10] sm:$0xff]
    %v366 = vld [vmem:[%s4 + $0x18] sm:$0xff]
    %v367 = vld [vmem:[%s4 + $0x20] sm:$0xff]
    %v368 = vld [vmem:[%s4 + $0x28] sm:$0xff]
    %v369 = vld [vmem:[%s4 + $0x30] sm:$0x11]
    %v377 = vunpack.c.l.b16 %v363
    %v378 = vunpack.c.h.b16 %v363
    %v379 = vunpack.c.l.b16 %v364
    %v380 = vunpack.c.h.b16 %v364
    %v381 = vunpack.c.l.b16 %v365
    %v382 = vunpack.c.h.b16 %v365
    %v383 = vunpack.c.l.b16 %v366
    %v384 = vunpack.c.h.b16 %v366
    %v385 = vunpack.c.l.b16 %v367
    %v386 = vunpack.c.h.b16 %v367
    %v387 = vunpack.c.l.b16 %v368
    %v388 = vunpack.c.h.b16 %v368
    %v389 = vunpack.c.l.b16 %v369
    %v390 = vunpack.c.h.b16 %v369
    %v391 = vpack.c.b16 %v379, %v377
    %v392 = vpack.c.b16 %v380, %v378
    %v393 = vpack.c.b16 %v383, %v381
    %v394 = vpack.c.b16 %v384, %v382
    %v395 = vpack.c.b16 %v387, %v385
    %v396 = vpack.c.b16 %v388, %v386
    %v397 = vpack.c.b16 %v389, %v389
    %v398 = vpack.c.b16 %v390, %v390
    %v404 = vsel %vm159, %v392, 0
    %v407 = vsel %vm159, %v394, 0
    %v410 = vsel %vm159, %v396, 0
    %v413 = vsel %vm159, %v398, 0
    %415 = vmatprep.subr.bf16.mxu0 0
    %416 = vmatpush1.bf16.msra.mxu0 %v140
    %417 = vmatprep.subr.bf16.mxu0 0
    %418 = vmatpush1.bf16.msra.mxu0 %v141
    %419 = vmatprep.subr.bf16.mxu0 0
    %420 = vmatpush1.bf16.msra.mxu0 %v142
    %421 = vmatprep.subr.bf16.mxu0 0
    %422 = vmatpush1.bf16.msra.mxu0 %v143
    %423 = vmatprep.subr.bf16.mxu0 0
    %424 = vmatpush1.bf16.msra.mxu0 %v144
    %425 = vmatprep.subr.bf16.mxu0 0
    %426 = vmatpush1.bf16.msra.mxu0 %v145
    %427 = vmatprep.subr.bf16.mxu0 0
    %428 = vmatpush1.bf16.msra.mxu0 %v146
    %429 = vmatprep.subr.bf16.mxu0 0
    %430 = vmatpush1.bf16.msra.mxu0 %v147
    %431 = vmatprep.subr.bf16.mxu0 0
    %432 = vmatpush1.bf16.msra.mxu0 %v148
    %433 = vmatprep.subr.bf16.mxu0 0
    %434 = vmatpush1.bf16.msra.mxu0 %v174
    %435 = vmatprep.subr.bf16.mxu0 0
    %436 = vmatpush1.bf16.msra.mxu0 0
    %437 = vmatprep.subr.bf16.mxu0 0
    %438 = vmatpush1.bf16.msra.mxu0 0
    %439 = vmatprep.subr.bf16.mxu0 0
    %440 = vmatpush1.bf16.msra.mxu0 0
    %441 = vmatprep.subr.bf16.mxu0 0
    %442 = vmatpush1.bf16.msra.mxu0 0
    %443 = vmatprep.subr.bf16.mxu0 0
    %444 = vmatpush1.bf16.msra.mxu0 0
    %445 = vmatprep.subr.bf16.mxu0 0
    %446 = vmatpush1.bf16.msra.mxu0 0
    %447 = vmatprep.mubr.bf16.mxu0 %v404
    %448 = vmatmul.mubr.bf16.gmra.mrb[0].mxu0 %v391
    %v449 = vpop.f32.mrb[0].mxu0
    %v450 = vadd.f32 0.0, %v449
    %v451 = vpop.f32.mrb[0].mxu0
    %v452 = vpop.f32.mrb[0].mxu0
    %v453 = vadd.f32 0.0, %v452
    %v454 = vpop.f32.mrb[0].mxu0
    %455 = vmatprep.mubr.bf16.mxu0 %v407
    %456 = vmatmul.mubr.bf16.gmra.mrb[0].mxu0 %v393
    %v457 = vpop.f32.mrb[0].mxu0
    %v458 = vadd.f32 0.0, %v457
    %v459 = vpop.f32.mrb[0].mxu0
    %v460 = vpop.f32.mrb[0].mxu0
    %v461 = vadd.f32 0.0, %v460
    %v462 = vpop.f32.mrb[0].mxu0
    %463 = vmatprep.mubr.bf16.mxu0 %v410
    %464 = vmatmul.mubr.bf16.gmra.mrb[0].mxu0 %v395
    %v465 = vpop.f32.mrb[0].mxu0
    %v466 = vadd.f32 0.0, %v465
    %v467 = vpop.f32.mrb[0].mxu0
    %v468 = vpop.f32.mrb[0].mxu0
    %v469 = vadd.f32 0.0, %v468
    %v470 = vpop.f32.mrb[0].mxu0
    %471 = vmatprep.mubr.bf16.mxu0 %v413
    %472 = vmatmul.mubr.bf16.gmra.mrb[0].mxu0 %v397
    %v473 = vpop.f32.mrb[0].mxu0
    %v474 = vadd.f32 0.0, %v473
    %v475 = vpop.f32.mrb[0].mxu0
    %v476 = vpop.f32.mrb[0].mxu0
    %v477 = vpop.f32.mrb[0].mxu0
    %478 = vdwg.mxu0
    %v479 = vmax.f32 %v356, %v450
    %v480 = vmax.f32 %v357, %v453
    %v481 = vmax.f32 %v358, %v458
    %v482 = vmax.f32 %v359, %v461
    %v483 = vmax.f32 %v360, %v466
    %v484 = vmax.f32 %v361, %v469
    %v485 = vmax.f32 %v362, %v474
    %v486 = vld [vmem:[%s5] sm:$0xff]
    %v487 = vld [vmem:[%s5 + $0x8] sm:$0xff]
    %v488 = vld [vmem:[%s5 + $0x10] sm:$0xff]
    %v489 = vld [vmem:[%s5 + $0x18] sm:$0xff]
    %v490 = vld [vmem:[%s5 + $0x20] sm:$0xff]
    %v491 = vld [vmem:[%s5 + $0x28] sm:$0xff]
    %v492 = vld [vmem:[%s5 + $0x30] sm:$0x11]
    %v500 = vunpack.c.l.b16 %v486
    %v501 = vunpack.c.h.b16 %v486
    %v502 = vunpack.c.l.b16 %v487
    %v503 = vunpack.c.h.b16 %v487
    %v504 = vunpack.c.l.b16 %v488
    %v505 = vunpack.c.h.b16 %v488
    %v506 = vunpack.c.l.b16 %v489
    %v507 = vunpack.c.h.b16 %v489
    %v508 = vunpack.c.l.b16 %v490
    %v509 = vunpack.c.h.b16 %v490
    %v510 = vunpack.c.l.b16 %v491
    %v511 = vunpack.c.h.b16 %v491
    %v512 = vunpack.c.l.b16 %v492
    %v513 = vunpack.c.h.b16 %v492
    %v514 = vpack.c.b16 %v502, %v500
    %v515 = vpack.c.b16 %v503, %v501
    %v516 = vpack.c.b16 %v506, %v504
    %v517 = vpack.c.b16 %v507, %v505
    %v518 = vpack.c.b16 %v510, %v508
    %v519 = vpack.c.b16 %v511, %v509
    %v520 = vpack.c.b16 %v512, %v512
    %v521 = vpack.c.b16 %v513, %v513
    %v527 = vsel %vm159, %v515, 0
    %v530 = vsel %vm159, %v517, 0
    %v533 = vsel %vm159, %v519, 0
    %v536 = vsel %vm159, %v521, 0
    %538 = vmatprep.subr.bf16.mxu0 0
    %539 = vmatpush1.bf16.msra.mxu0 %v140
    %540 = vmatprep.subr.bf16.mxu0 0
    %541 = vmatpush1.bf16.msra.mxu0 %v141
    %542 = vmatprep.subr.bf16.mxu0 0
    %543 = vmatpush1.bf16.msra.mxu0 %v142
    %544 = vmatprep.subr.bf16.mxu0 0
    %545 = vmatpush1.bf16.msra.mxu0 %v143
    %546 = vmatprep.subr.bf16.mxu0 0
    %547 = vmatpush1.bf16.msra.mxu0 %v144
    %548 = vmatprep.subr.bf16.mxu0 0
    %549 = vmatpush1.bf16.msra.mxu0 %v145
    %550 = vmatprep.subr.bf16.mxu0 0
    %551 = vmatpush1.bf16.msra.mxu0 %v146
    %552 = vmatprep.subr.bf16.mxu0 0
    %553 = vmatpush1.bf16.msra.mxu0 %v147
    %554 = vmatprep.subr.bf16.mxu0 0
    %555 = vmatpush1.bf16.msra.mxu0 %v148
    %556 = vmatprep.subr.bf16.mxu0 0
    %557 = vmatpush1.bf16.msra.mxu0 %v174
    %558 = vmatprep.subr.bf16.mxu0 0
    %559 = vmatpush1.bf16.msra.mxu0 0
    %560 = vmatprep.subr.bf16.mxu0 0
    %561 = vmatpush1.bf16.msra.mxu0 0
    %562 = vmatprep.subr.bf16.mxu0 0
    %563 = vmatpush1.bf16.msra.mxu0 0
    %564 = vmatprep.subr.bf16.mxu0 0
    %565 = vmatpush1.bf16.msra.mxu0 0
    %566 = vmatprep.subr.bf16.mxu0 0
    %567 = vmatpush1.bf16.msra.mxu0 0
    %568 = vmatprep.subr.bf16.mxu0 0
    %569 = vmatpush1.bf16.msra.mxu0 0
    %570 = vmatprep.mubr.bf16.mxu0 %v527
    %571 = vmatmul.mubr.bf16.gmra.mrb[0].mxu0 %v514
    %v572 = vpop.f32.mrb[0].mxu0
    %v573 = vadd.f32 0.0, %v572
    %v574 = vpop.f32.mrb[0].mxu0
    %v575 = vpop.f32.mrb[0].mxu0
    %v576 = vadd.f32 0.0, %v575
    %v577 = vpop.f32.mrb[0].mxu0
    %578 = vmatprep.mubr.bf16.mxu0 %v530
    %579 = vmatmul.mubr.bf16.gmra.mrb[0].mxu0 %v516
    %v580 = vpop.f32.mrb[0].mxu0
    %v581 = vadd.f32 0.0, %v580
    %v582 = vpop.f32.mrb[0].mxu0
    %v583 = vpop.f32.mrb[0].mxu0
    %v584 = vadd.f32 0.0, %v583
    %v585 = vpop.f32.mrb[0].mxu0
    %586 = vmatprep.mubr.bf16.mxu0 %v533
    %587 = vmatmul.mubr.bf16.gmra.mrb[0].mxu0 %v518
    %v588 = vpop.f32.mrb[0].mxu0
    %v589 = vadd.f32 0.0, %v588
    %v590 = vpop.f32.mrb[0].mxu0
    %v591 = vpop.f32.mrb[0].mxu0
    %v592 = vadd.f32 0.0, %v591
    %v593 = vpop.f32.mrb[0].mxu0
    %594 = vmatprep.mubr.bf16.mxu0 %v536
    %595 = vmatmul.mubr.bf16.gmra.mrb[0].mxu0 %v520
    %v596 = vpop.f32.mrb[0].mxu0
    %v597 = vadd.f32 0.0, %v596
    %v598 = vpop.f32.mrb[0].mxu0
    %v599 = vpop.f32.mrb[0].mxu0
    %v600 = vpop.f32.mrb[0].mxu0
    %601 = vdwg.mxu0
    %v602 = vmax.f32 %v479, %v573
    %v603 = vmax.f32 %v480, %v576
    %v604 = vmax.f32 %v481, %v581
    %v605 = vmax.f32 %v482, %v584
    %v606 = vmax.f32 %v483, %v589
    %v607 = vmax.f32 %v484, %v592
    %v608 = vmax.f32 %v485, %v597
    %v609 = vld [vmem:[%s1] sm:$0x1]
    %v611 = vlaneseq
    %v612 = vshrl.u32 %v611, 7
    %v613 = vsub.s32 0, %v612
    %v614 = vrot.slane %v609, %v613
    %v616 = vadd.f32 %v602, %v614
    %v617 = vadd.f32 %v603, %v614
    %v618 = vadd.f32 %v604, %v614
    %v619 = vadd.f32 %v605, %v614
    %v620 = vadd.f32 %v606, %v614
    %v621 = vadd.f32 %v607, %v614
    %v622 = vadd.f32 %v608, %v614
    %v623 = vmax.f32 %v616, 0.0
    %v624 = vmax.f32 %v617, 0.0
    %v625 = vmax.f32 %v618, 0.0
    %v626 = vmax.f32 %v619, 0.0
    %v627 = vmax.f32 %v620, 0.0
    %v628 = vmax.f32 %v621, 0.0
    %v629 = vmax.f32 %v622, 0.0
    %v630 = vpack.c.bf16 %v624, %v623
    %v631 = vpack.c.bf16 %v626, %v625
    %v632 = vpack.c.bf16 %v628, %v627
    %v633 = vpack.c.bf16 %v629, %v629
    %v634 = vld [vmem:[%s6] sm:$0xf]
    %v635 = vld [vmem:[%s6 + $0x4] sm:$0xf]
    %s636 = scalar_lea.vmem %s6, 8
    %v637 = vld [vmem:[%s636] sm:$0xf]
    %v638 = vld [vmem:[%s636 + $0x4] sm:$0xf]
    %v640 = vrot.slane %v630, 1
    %v643 = vunpack.c.l.b16 %v637
    %v644 = vunpack.c.l.b16 %v638
    %v645 = vpack.c.b16 %v644, %v643
    %vm647 = vcmask 130048
    %v649 = vsel %vm647, %v640, 0
    %651 = vmatprep.subr.bf16.mxu0 0
    %652 = vmatpush1.bf16.msra.mxu0 %v645
    %653 = vmatprep.subr.bf16.mxu0 0
    %654 = vmatpush1.bf16.msra.mxu0 0
    %655 = vmatprep.subr.bf16.mxu0 0
    %656 = vmatpush1.bf16.msra.mxu0 0
    %657 = vmatprep.subr.bf16.mxu0 0
    %658 = vmatpush1.bf16.msra.mxu0 0
    %659 = vmatprep.subr.bf16.mxu0 0
    %660 = vmatpush1.bf16.msra.mxu0 0
    %661 = vmatprep.subr.bf16.mxu0 0
    %662 = vmatpush1.bf16.msra.mxu0 0
    %663 = vmatprep.subr.bf16.mxu0 0
    %664 = vmatpush1.bf16.msra.mxu0 0
    %665 = vmatprep.subr.bf16.mxu0 0
    %666 = vmatpush1.bf16.msra.mxu0 0
    %667 = vmatprep.subr.bf16.mxu0 0
    %668 = vmatpush1.bf16.msra.mxu0 0
    %669 = vmatprep.subr.bf16.mxu0 0
    %670 = vmatpush1.bf16.msra.mxu0 0
    %671 = vmatprep.subr.bf16.mxu0 0
    %672 = vmatpush1.bf16.msra.mxu0 0
    %673 = vmatprep.subr.bf16.mxu0 0
    %674 = vmatpush1.bf16.msra.mxu0 0
    %675 = vmatprep.subr.bf16.mxu0 0
    %676 = vmatpush1.bf16.msra.mxu0 0
    %677 = vmatprep.subr.bf16.mxu0 0
    %678 = vmatpush1.bf16.msra.mxu0 0
    %679 = vmatprep.subr.bf16.mxu0 0
    %680 = vmatpush1.bf16.msra.mxu0 0
    %681 = vmatprep.subr.bf16.mxu0 0
    %682 = vmatpush1.bf16.msra.mxu0 0
    %683 = vmatprep.mubr.bf16.mxu0 0
    %684 = vmatmul.mubr.bf16.gmra.mrb[0].mxu0 %v649
    %v685 = vpop.f32.mrb[0].mxu0
    %v686 = vadd.f32 0.0, %v685
    %v687 = vpop.f32.mrb[0].mxu0
    %v688 = vpop.f32.mrb[0].mxu0
    %v689 = vpop.f32.mrb[0].mxu0
    %690 = vdwg.mxu0
    %v693 = vunpack.c.l.b16 %v634
    %v694 = vunpack.c.l.b16 %v635
    %v695 = vpack.c.b16 %v694, %v693
    %v698 = vsel %vm647, %v630, 0
    %700 = vmatprep.subr.bf16.mxu0 0
    %701 = vmatpush1.bf16.msra.mxu0 %v695
    %702 = vmatprep.subr.bf16.mxu0 0
    %703 = vmatpush1.bf16.msra.mxu0 0
    %704 = vmatprep.subr.bf16.mxu0 0
    %705 = vmatpush1.bf16.msra.mxu0 0
    %706 = vmatprep.subr.bf16.mxu0 0
    %707 = vmatpush1.bf16.msra.mxu0 0
    %708 = vmatprep.subr.bf16.mxu0 0
    %709 = vmatpush1.bf16.msra.mxu0 0
    %710 = vmatprep.subr.bf16.mxu0 0
    %711 = vmatpush1.bf16.msra.mxu0 0
    %712 = vmatprep.subr.bf16.mxu0 0
    %713 = vmatpush1.bf16.msra.mxu0 0
    %714 = vmatprep.subr.bf16.mxu0 0
    %715 = vmatpush1.bf16.msra.mxu0 0
    %716 = vmatprep.subr.bf16.mxu0 0
    %717 = vmatpush1.bf16.msra.mxu0 0
    %718 = vmatprep.subr.bf16.mxu0 0
    %719 = vmatpush1.bf16.msra.mxu0 0
    %720 = vmatprep.subr.bf16.mxu0 0
    %721 = vmatpush1.bf16.msra.mxu0 0
    %722 = vmatprep.subr.bf16.mxu0 0
    %723 = vmatpush1.bf16.msra.mxu0 0
    %724 = vmatprep.subr.bf16.mxu0 0
    %725 = vmatpush1.bf16.msra.mxu0 0
    %726 = vmatprep.subr.bf16.mxu0 0
    %727 = vmatpush1.bf16.msra.mxu0 0
    %728 = vmatprep.subr.bf16.mxu0 0
    %729 = vmatpush1.bf16.msra.mxu0 0
    %730 = vmatprep.subr.bf16.mxu0 0
    %731 = vmatpush1.bf16.msra.mxu0 0
    %732 = vmatprep.mubr.bf16.mxu0 0
    %733 = vmatmul.mubr.bf16.gmra.mrb[0].mxu0 %v698
    %v734 = vpop.f32.mrb[0].mxu0
    %v735 = vadd.f32 %v686, %v734
    %v736 = vpop.f32.mrb[0].mxu0
    %v737 = vpop.f32.mrb[0].mxu0
    %v738 = vpop.f32.mrb[0].mxu0
    %739 = vdwg.mxu0
    %s740 = scalar_lea.vmem %s6, 16
    %v741 = vld [vmem:[%s740] sm:$0xf]
    %v742 = vld [vmem:[%s740 + $0x4] sm:$0xf]
    %v743 = vrot.slane %v630, 2
    %v746 = vunpack.c.l.b16 %v741
    %v747 = vunpack.c.l.b16 %v742
    %v748 = vpack.c.b16 %v747, %v746
    %v751 = vsel %vm647, %v743, 0
    %753 = vmatprep.subr.bf16.mxu0 0
    %754 = vmatpush1.bf16.msra.mxu0 %v748
    %755 = vmatprep.subr.bf16.mxu0 0
    %756 = vmatpush1.bf16.msra.mxu0 0
    %757 = vmatprep.subr.bf16.mxu0 0
    %758 = vmatpush1.bf16.msra.mxu0 0
    %759 = vmatprep.subr.bf16.mxu0 0
    %760 = vmatpush1.bf16.msra.mxu0 0
    %761 = vmatprep.subr.bf16.mxu0 0
    %762 = vmatpush1.bf16.msra.mxu0 0
    %763 = vmatprep.subr.bf16.mxu0 0
    %764 = vmatpush1.bf16.msra.mxu0 0
    %765 = vmatprep.subr.bf16.mxu0 0
    %766 = vmatpush1.bf16.msra.mxu0 0
    %767 = vmatprep.subr.bf16.mxu0 0
    %768 = vmatpush1.bf16.msra.mxu0 0
    %769 = vmatprep.subr.bf16.mxu0 0
    %770 = vmatpush1.bf16.msra.mxu0 0
    %771 = vmatprep.subr.bf16.mxu0 0
    %772 = vmatpush1.bf16.msra.mxu0 0
    %773 = vmatprep.subr.bf16.mxu0 0
    %774 = vmatpush1.bf16.msra.mxu0 0
    %775 = vmatprep.subr.bf16.mxu0 0
    %776 = vmatpush1.bf16.msra.mxu0 0
    %777 = vmatprep.subr.bf16.mxu0 0
    %778 = vmatpush1.bf16.msra.mxu0 0
    %779 = vmatprep.subr.bf16.mxu0 0
    %780 = vmatpush1.bf16.msra.mxu0 0
    %781 = vmatprep.subr.bf16.mxu0 0
    %782 = vmatpush1.bf16.msra.mxu0 0
    %783 = vmatprep.subr.bf16.mxu0 0
    %784 = vmatpush1.bf16.msra.mxu0 0
    %785 = vmatprep.mubr.bf16.mxu0 0
    %786 = vmatmul.mubr.bf16.gmra.mrb[0].mxu0 %v751
    %v787 = vpop.f32.mrb[0].mxu0
    %v788 = vadd.f32 0.0, %v787
    %v789 = vpop.f32.mrb[0].mxu0
    %v790 = vpop.f32.mrb[0].mxu0
    %v791 = vpop.f32.mrb[0].mxu0
    %792 = vdwg.mxu0
    %v793 = vadd.f32 %v735, %v788
    %s794 = scalar_lea.vmem %s6, 24
    %v795 = vld [vmem:[%s794] sm:$0xf]
    %v796 = vld [vmem:[%s794 + $0x4] sm:$0xf]
    %v797 = vrot.slane %v630, 3
    %v800 = vunpack.c.l.b16 %v795
    %v801 = vunpack.c.l.b16 %v796
    %v802 = vpack.c.b16 %v801, %v800
    %v805 = vsel %vm647, %v797, 0
    %807 = vmatprep.subr.bf16.mxu0 0
    %808 = vmatpush1.bf16.msra.mxu0 %v802
    %809 = vmatprep.subr.bf16.mxu0 0
    %810 = vmatpush1.bf16.msra.mxu0 0
    %811 = vmatprep.subr.bf16.mxu0 0
    %812 = vmatpush1.bf16.msra.mxu0 0
    %813 = vmatprep.subr.bf16.mxu0 0
    %814 = vmatpush1.bf16.msra.mxu0 0
    %815 = vmatprep.subr.bf16.mxu0 0
    %816 = vmatpush1.bf16.msra.mxu0 0
    %817 = vmatprep.subr.bf16.mxu0 0
    %818 = vmatpush1.bf16.msra.mxu0 0
    %819 = vmatprep.subr.bf16.mxu0 0
    %820 = vmatpush1.bf16.msra.mxu0 0
    %821 = vmatprep.subr.bf16.mxu0 0
    %822 = vmatpush1.bf16.msra.mxu0 0
    %823 = vmatprep.subr.bf16.mxu0 0
    %824 = vmatpush1.bf16.msra.mxu0 0
    %825 = vmatprep.subr.bf16.mxu0 0
    %826 = vmatpush1.bf16.msra.mxu0 0
    %827 = vmatprep.subr.bf16.mxu0 0
    %828 = vmatpush1.bf16.msra.mxu0 0
    %829 = vmatprep.subr.bf16.mxu0 0
    %830 = vmatpush1.bf16.msra.mxu0 0
    %831 = vmatprep.subr.bf16.mxu0 0
    %832 = vmatpush1.bf16.msra.mxu0 0
    %833 = vmatprep.subr.bf16.mxu0 0
    %834 = vmatpush1.bf16.msra.mxu0 0
    %835 = vmatprep.subr.bf16.mxu0 0
    %836 = vmatpush1.bf16.msra.mxu0 0
    %837 = vmatprep.subr.bf16.mxu0 0
    %838 = vmatpush1.bf16.msra.mxu0 0
    %839 = vmatprep.mubr.bf16.mxu0 0
    %840 = vmatmul.mubr.bf16.gmra.mrb[0].mxu0 %v805
    %v841 = vpop.f32.mrb[0].mxu0
    %v842 = vadd.f32 0.0, %v841
    %v843 = vpop.f32.mrb[0].mxu0
    %v844 = vpop.f32.mrb[0].mxu0
    %v845 = vpop.f32.mrb[0].mxu0
    %846 = vdwg.mxu0
    %v847 = vadd.f32 %v793, %v842
    %s848 = scalar_lea.vmem %s6, 32
    %v849 = vld [vmem:[%s848] sm:$0xf]
    %v850 = vld [vmem:[%s848 + $0x4] sm:$0xf]
    %v851 = vrot.slane %v630, 4
    %v854 = vunpack.c.l.b16 %v849
    %v855 = vunpack.c.l.b16 %v850
    %v856 = vpack.c.b16 %v855, %v854
    %v859 = vsel %vm647, %v851, 0
    %861 = vmatprep.subr.bf16.mxu0 0
    %862 = vmatpush1.bf16.msra.mxu0 %v856
    %863 = vmatprep.subr.bf16.mxu0 0
    %864 = vmatpush1.bf16.msra.mxu0 0
    %865 = vmatprep.subr.bf16.mxu0 0
    %866 = vmatpush1.bf16.msra.mxu0 0
    %867 = vmatprep.subr.bf16.mxu0 0
    %868 = vmatpush1.bf16.msra.mxu0 0
    %869 = vmatprep.subr.bf16.mxu0 0
    %870 = vmatpush1.bf16.msra.mxu0 0
    %871 = vmatprep.subr.bf16.mxu0 0
    %872 = vmatpush1.bf16.msra.mxu0 0
    %873 = vmatprep.subr.bf16.mxu0 0
    %874 = vmatpush1.bf16.msra.mxu0 0
    %875 = vmatprep.subr.bf16.mxu0 0
    %876 = vmatpush1.bf16.msra.mxu0 0
    %877 = vmatprep.subr.bf16.mxu0 0
    %878 = vmatpush1.bf16.msra.mxu0 0
    %879 = vmatprep.subr.bf16.mxu0 0
    %880 = vmatpush1.bf16.msra.mxu0 0
    %881 = vmatprep.subr.bf16.mxu0 0
    %882 = vmatpush1.bf16.msra.mxu0 0
    %883 = vmatprep.subr.bf16.mxu0 0
    %884 = vmatpush1.bf16.msra.mxu0 0
    %885 = vmatprep.subr.bf16.mxu0 0
    %886 = vmatpush1.bf16.msra.mxu0 0
    %887 = vmatprep.subr.bf16.mxu0 0
    %888 = vmatpush1.bf16.msra.mxu0 0
    %889 = vmatprep.subr.bf16.mxu0 0
    %890 = vmatpush1.bf16.msra.mxu0 0
    %891 = vmatprep.subr.bf16.mxu0 0
    %892 = vmatpush1.bf16.msra.mxu0 0
    %893 = vmatprep.mubr.bf16.mxu0 0
    %894 = vmatmul.mubr.bf16.gmra.mrb[0].mxu0 %v859
    %v895 = vpop.f32.mrb[0].mxu0
    %v896 = vadd.f32 0.0, %v895
    %v897 = vpop.f32.mrb[0].mxu0
    %v898 = vpop.f32.mrb[0].mxu0
    %v899 = vpop.f32.mrb[0].mxu0
    %900 = vdwg.mxu0
    %v901 = vadd.f32 %v847, %v896
    %s902 = scalar_lea.vmem %s6, 40
    %v903 = vld [vmem:[%s902] sm:$0xf]
    %v904 = vld [vmem:[%s902 + $0x4] sm:$0xf]
    %v905 = vrot.slane %v630, 5
    %v908 = vunpack.c.l.b16 %v903
    %v909 = vunpack.c.l.b16 %v904
    %v910 = vpack.c.b16 %v909, %v908
    %v913 = vsel %vm647, %v905, 0
    %915 = vmatprep.subr.bf16.mxu0 0
    %916 = vmatpush1.bf16.msra.mxu0 %v910
    %917 = vmatprep.subr.bf16.mxu0 0
    %918 = vmatpush1.bf16.msra.mxu0 0
    %919 = vmatprep.subr.bf16.mxu0 0
    %920 = vmatpush1.bf16.msra.mxu0 0
    %921 = vmatprep.subr.bf16.mxu0 0
    %922 = vmatpush1.bf16.msra.mxu0 0
    %923 = vmatprep.subr.bf16.mxu0 0
    %924 = vmatpush1.bf16.msra.mxu0 0
    %925 = vmatprep.subr.bf16.mxu0 0
    %926 = vmatpush1.bf16.msra.mxu0 0
    %927 = vmatprep.subr.bf16.mxu0 0
    %928 = vmatpush1.bf16.msra.mxu0 0
    %929 = vmatprep.subr.bf16.mxu0 0
    %930 = vmatpush1.bf16.msra.mxu0 0
    %931 = vmatprep.subr.bf16.mxu0 0
    %932 = vmatpush1.bf16.msra.mxu0 0
    %933 = vmatprep.subr.bf16.mxu0 0
    %934 = vmatpush1.bf16.msra.mxu0 0
    %935 = vmatprep.subr.bf16.mxu0 0
    %936 = vmatpush1.bf16.msra.mxu0 0
    %937 = vmatprep.subr.bf16.mxu0 0
    %938 = vmatpush1.bf16.msra.mxu0 0
    %939 = vmatprep.subr.bf16.mxu0 0
    %940 = vmatpush1.bf16.msra.mxu0 0
    %941 = vmatprep.subr.bf16.mxu0 0
    %942 = vmatpush1.bf16.msra.mxu0 0
    %943 = vmatprep.subr.bf16.mxu0 0
    %944 = vmatpush1.bf16.msra.mxu0 0
    %945 = vmatprep.subr.bf16.mxu0 0
    %946 = vmatpush1.bf16.msra.mxu0 0
    %947 = vmatprep.mubr.bf16.mxu0 0
    %948 = vmatmul.mubr.bf16.gmra.mrb[0].mxu0 %v913
    %v949 = vpop.f32.mrb[0].mxu0
    %v950 = vadd.f32 0.0, %v949
    %v951 = vpop.f32.mrb[0].mxu0
    %v952 = vpop.f32.mrb[0].mxu0
    %v953 = vpop.f32.mrb[0].mxu0
    %954 = vdwg.mxu0
    %v955 = vadd.f32 %v901, %v950
    %s956 = scalar_lea.vmem %s6, 48
    %v957 = vld [vmem:[%s956] sm:$0xf]
    %v958 = vld [vmem:[%s956 + $0x4] sm:$0xf]
    %v959 = vrot.slane %v630, 6
    %v962 = vunpack.c.l.b16 %v957
    %v963 = vunpack.c.l.b16 %v958
    %v964 = vpack.c.b16 %v963, %v962
    %v967 = vsel %vm647, %v959, 0
    %969 = vmatprep.subr.bf16.mxu0 0
    %970 = vmatpush1.bf16.msra.mxu0 %v964
    %971 = vmatprep.subr.bf16.mxu0 0
    %972 = vmatpush1.bf16.msra.mxu0 0
    %973 = vmatprep.subr.bf16.mxu0 0
    %974 = vmatpush1.bf16.msra.mxu0 0
    %975 = vmatprep.subr.bf16.mxu0 0
    %976 = vmatpush1.bf16.msra.mxu0 0
    %977 = vmatprep.subr.bf16.mxu0 0
    %978 = vmatpush1.bf16.msra.mxu0 0
    %979 = vmatprep.subr.bf16.mxu0 0
    %980 = vmatpush1.bf16.msra.mxu0 0
    %981 = vmatprep.subr.bf16.mxu0 0
    %982 = vmatpush1.bf16.msra.mxu0 0
    %983 = vmatprep.subr.bf16.mxu0 0
    %984 = vmatpush1.bf16.msra.mxu0 0
    %985 = vmatprep.subr.bf16.mxu0 0
    %986 = vmatpush1.bf16.msra.mxu0 0
    %987 = vmatprep.subr.bf16.mxu0 0
    %988 = vmatpush1.bf16.msra.mxu0 0
    %989 = vmatprep.subr.bf16.mxu0 0
    %990 = vmatpush1.bf16.msra.mxu0 0
    %991 = vmatprep.subr.bf16.mxu0 0
    %992 = vmatpush1.bf16.msra.mxu0 0
    %993 = vmatprep.subr.bf16.mxu0 0
    %994 = vmatpush1.bf16.msra.mxu0 0
    %995 = vmatprep.subr.bf16.mxu0 0
    %996 = vmatpush1.bf16.msra.mxu0 0
    %997 = vmatprep.subr.bf16.mxu0 0
    %998 = vmatpush1.bf16.msra.mxu0 0
    %999 = vmatprep.subr.bf16.mxu0 0
    %1000 = vmatpush1.bf16.msra.mxu0 0
    %1001 = vmatprep.mubr.bf16.mxu0 0
    %1002 = vmatmul.mubr.bf16.gmra.mrb[0].mxu0 %v967
    %v1003 = vpop.f32.mrb[0].mxu0
    %v1004 = vadd.f32 0.0, %v1003
    %v1005 = vpop.f32.mrb[0].mxu0
    %v1006 = vpop.f32.mrb[0].mxu0
    %v1007 = vpop.f32.mrb[0].mxu0
    %1008 = vdwg.mxu0
    %v1009 = vadd.f32 %v955, %v1004
    %s1010 = scalar_lea.vmem %s6, 56
    %v1011 = vld [vmem:[%s1010] sm:$0xf]
    %v1012 = vld [vmem:[%s1010 + $0x4] sm:$0xf]
    %v1013 = vrot.slane %v630, 7
    %v1016 = vunpack.c.l.b16 %v1011
    %v1017 = vunpack.c.l.b16 %v1012
    %v1018 = vpack.c.b16 %v1017, %v1016
    %v1021 = vsel %vm647, %v1013, 0
    %1023 = vmatprep.subr.bf16.mxu0 0
    %1024 = vmatpush1.bf16.msra.mxu0 %v1018
    %1025 = vmatprep.subr.bf16.mxu0 0
    %1026 = vmatpush1.bf16.msra.mxu0 0
    %1027 = vmatprep.subr.bf16.mxu0 0
    %1028 = vmatpush1.bf16.msra.mxu0 0
    %1029 = vmatprep.subr.bf16.mxu0 0
    %1030 = vmatpush1.bf16.msra.mxu0 0
    %1031 = vmatprep.subr.bf16.mxu0 0
    %1032 = vmatpush1.bf16.msra.mxu0 0
    %1033 = vmatprep.subr.bf16.mxu0 0
    %1034 = vmatpush1.bf16.msra.mxu0 0
    %1035 = vmatprep.subr.bf16.mxu0 0
    %1036 = vmatpush1.bf16.msra.mxu0 0
    %1037 = vmatprep.subr.bf16.mxu0 0
    %1038 = vmatpush1.bf16.msra.mxu0 0
    %1039 = vmatprep.subr.bf16.mxu0 0
    %1040 = vmatpush1.bf16.msra.mxu0 0
    %1041 = vmatprep.subr.bf16.mxu0 0
    %1042 = vmatpush1.bf16.msra.mxu0 0
    %1043 = vmatprep.subr.bf16.mxu0 0
    %1044 = vmatpush1.bf16.msra.mxu0 0
    %1045 = vmatprep.subr.bf16.mxu0 0
    %1046 = vmatpush1.bf16.msra.mxu0 0
    %1047 = vmatprep.subr.bf16.mxu0 0
    %1048 = vmatpush1.bf16.msra.mxu0 0
    %1049 = vmatprep.subr.bf16.mxu0 0
    %1050 = vmatpush1.bf16.msra.mxu0 0
    %1051 = vmatprep.subr.bf16.mxu0 0
    %1052 = vmatpush1.bf16.msra.mxu0 0
    %1053 = vmatprep.subr.bf16.mxu0 0
    %1054 = vmatpush1.bf16.msra.mxu0 0
    %1055 = vmatprep.mubr.bf16.mxu0 0
    %1056 = vmatmul.mubr.bf16.gmra.mrb[0].mxu0 %v1021
    %v1057 = vpop.f32.mrb[0].mxu0
    %v1058 = vadd.f32 0.0, %v1057
    %v1059 = vpop.f32.mrb[0].mxu0
    %v1060 = vpop.f32.mrb[0].mxu0
    %v1061 = vpop.f32.mrb[0].mxu0
    %1062 = vdwg.mxu0
    %v1063 = vadd.f32 %v1009, %v1058
    %s1064 = scalar_lea.vmem %s6, 64
    %v1065 = vld [vmem:[%s1064] sm:$0xf]
    %v1066 = vld [vmem:[%s1064 + $0x4] sm:$0xf]
    %v1069 = vunpack.c.l.b16 %v1065
    %v1070 = vunpack.c.l.b16 %v1066
    %v1071 = vpack.c.b16 %v1070, %v1069
    %v1074 = vsel %vm647, %v631, 0
    %1076 = vmatprep.subr.bf16.mxu0 0
    %1077 = vmatpush1.bf16.msra.mxu0 %v1071
    %1078 = vmatprep.subr.bf16.mxu0 0
    %1079 = vmatpush1.bf16.msra.mxu0 0
    %1080 = vmatprep.subr.bf16.mxu0 0
    %1081 = vmatpush1.bf16.msra.mxu0 0
    %1082 = vmatprep.subr.bf16.mxu0 0
    %1083 = vmatpush1.bf16.msra.mxu0 0
    %1084 = vmatprep.subr.bf16.mxu0 0
    %1085 = vmatpush1.bf16.msra.mxu0 0
    %1086 = vmatprep.subr.bf16.mxu0 0
    %1087 = vmatpush1.bf16.msra.mxu0 0
    %1088 = vmatprep.subr.bf16.mxu0 0
    %1089 = vmatpush1.bf16.msra.mxu0 0
    %1090 = vmatprep.subr.bf16.mxu0 0
    %1091 = vmatpush1.bf16.msra.mxu0 0
    %1092 = vmatprep.subr.bf16.mxu0 0
    %1093 = vmatpush1.bf16.msra.mxu0 0
    %1094 = vmatprep.subr.bf16.mxu0 0
    %1095 = vmatpush1.bf16.msra.mxu0 0
    %1096 = vmatprep.subr.bf16.mxu0 0
    %1097 = vmatpush1.bf16.msra.mxu0 0
    %1098 = vmatprep.subr.bf16.mxu0 0
    %1099 = vmatpush1.bf16.msra.mxu0 0
    %1100 = vmatprep.subr.bf16.mxu0 0
    %1101 = vmatpush1.bf16.msra.mxu0 0
    %1102 = vmatprep.subr.bf16.mxu0 0
    %1103 = vmatpush1.bf16.msra.mxu0 0
    %1104 = vmatprep.subr.bf16.mxu0 0
    %1105 = vmatpush1.bf16.msra.mxu0 0
    %1106 = vmatprep.subr.bf16.mxu0 0
    %1107 = vmatpush1.bf16.msra.mxu0 0
    %1108 = vmatprep.mubr.bf16.mxu0 0
    %1109 = vmatmul.mubr.bf16.gmra.mrb[0].mxu0 %v1074
    %v1110 = vpop.f32.mrb[0].mxu0
    %v1111 = vadd.f32 0.0, %v1110
    %v1112 = vpop.f32.mrb[0].mxu0
    %v1113 = vpop.f32.mrb[0].mxu0
    %v1114 = vpop.f32.mrb[0].mxu0
    %1115 = vdwg.mxu0
    %v1116 = vadd.f32 %v1063, %v1111
    %s1117 = scalar_lea.vmem %s6, 72
    %v1118 = vld [vmem:[%s1117] sm:$0xf]
    %v1119 = vld [vmem:[%s1117 + $0x4] sm:$0xf]
    %v1121 = vrot.slane %v631, 1
    %v1124 = vunpack.c.l.b16 %v1118
    %v1125 = vunpack.c.l.b16 %v1119
    %v1126 = vpack.c.b16 %v1125, %v1124
    %v1129 = vsel %vm647, %v1121, 0
    %1131 = vmatprep.subr.bf16.mxu0 0
    %1132 = vmatpush1.bf16.msra.mxu0 %v1126
    %1133 = vmatprep.subr.bf16.mxu0 0
    %1134 = vmatpush1.bf16.msra.mxu0 0
    %1135 = vmatprep.subr.bf16.mxu0 0
    %1136 = vmatpush1.bf16.msra.mxu0 0
    %1137 = vmatprep.subr.bf16.mxu0 0
    %1138 = vmatpush1.bf16.msra.mxu0 0
    %1139 = vmatprep.subr.bf16.mxu0 0
    %1140 = vmatpush1.bf16.msra.mxu0 0
    %1141 = vmatprep.subr.bf16.mxu0 0
    %1142 = vmatpush1.bf16.msra.mxu0 0
    %1143 = vmatprep.subr.bf16.mxu0 0
    %1144 = vmatpush1.bf16.msra.mxu0 0
    %1145 = vmatprep.subr.bf16.mxu0 0
    %1146 = vmatpush1.bf16.msra.mxu0 0
    %1147 = vmatprep.subr.bf16.mxu0 0
    %1148 = vmatpush1.bf16.msra.mxu0 0
    %1149 = vmatprep.subr.bf16.mxu0 0
    %1150 = vmatpush1.bf16.msra.mxu0 0
    %1151 = vmatprep.subr.bf16.mxu0 0
    %1152 = vmatpush1.bf16.msra.mxu0 0
    %1153 = vmatprep.subr.bf16.mxu0 0
    %1154 = vmatpush1.bf16.msra.mxu0 0
    %1155 = vmatprep.subr.bf16.mxu0 0
    %1156 = vmatpush1.bf16.msra.mxu0 0
    %1157 = vmatprep.subr.bf16.mxu0 0
    %1158 = vmatpush1.bf16.msra.mxu0 0
    %1159 = vmatprep.subr.bf16.mxu0 0
    %1160 = vmatpush1.bf16.msra.mxu0 0
    %1161 = vmatprep.subr.bf16.mxu0 0
    %1162 = vmatpush1.bf16.msra.mxu0 0
    %1163 = vmatprep.mubr.bf16.mxu0 0
    %1164 = vmatmul.mubr.bf16.gmra.mrb[0].mxu0 %v1129
    %v1165 = vpop.f32.mrb[0].mxu0
    %v1166 = vadd.f32 0.0, %v1165
    %v1167 = vpop.f32.mrb[0].mxu0
    %v1168 = vpop.f32.mrb[0].mxu0
    %v1169 = vpop.f32.mrb[0].mxu0
    %1170 = vdwg.mxu0
    %v1171 = vadd.f32 %v1116, %v1166
    %s1172 = scalar_lea.vmem %s6, 80
    %v1173 = vld [vmem:[%s1172] sm:$0xf]
    %v1174 = vld [vmem:[%s1172 + $0x4] sm:$0xf]
    %v1175 = vrot.slane %v631, 2
    %v1178 = vunpack.c.l.b16 %v1173
    %v1179 = vunpack.c.l.b16 %v1174
    %v1180 = vpack.c.b16 %v1179, %v1178
    %v1183 = vsel %vm647, %v1175, 0
    %1185 = vmatprep.subr.bf16.mxu0 0
    %1186 = vmatpush1.bf16.msra.mxu0 %v1180
    %1187 = vmatprep.subr.bf16.mxu0 0
    %1188 = vmatpush1.bf16.msra.mxu0 0
    %1189 = vmatprep.subr.bf16.mxu0 0
    %1190 = vmatpush1.bf16.msra.mxu0 0
    %1191 = vmatprep.subr.bf16.mxu0 0
    %1192 = vmatpush1.bf16.msra.mxu0 0
    %1193 = vmatprep.subr.bf16.mxu0 0
    %1194 = vmatpush1.bf16.msra.mxu0 0
    %1195 = vmatprep.subr.bf16.mxu0 0
    %1196 = vmatpush1.bf16.msra.mxu0 0
    %1197 = vmatprep.subr.bf16.mxu0 0
    %1198 = vmatpush1.bf16.msra.mxu0 0
    %1199 = vmatprep.subr.bf16.mxu0 0
    %1200 = vmatpush1.bf16.msra.mxu0 0
    %1201 = vmatprep.subr.bf16.mxu0 0
    %1202 = vmatpush1.bf16.msra.mxu0 0
    %1203 = vmatprep.subr.bf16.mxu0 0
    %1204 = vmatpush1.bf16.msra.mxu0 0
    %1205 = vmatprep.subr.bf16.mxu0 0
    %1206 = vmatpush1.bf16.msra.mxu0 0
    %1207 = vmatprep.subr.bf16.mxu0 0
    %1208 = vmatpush1.bf16.msra.mxu0 0
    %1209 = vmatprep.subr.bf16.mxu0 0
    %1210 = vmatpush1.bf16.msra.mxu0 0
    %1211 = vmatprep.subr.bf16.mxu0 0
    %1212 = vmatpush1.bf16.msra.mxu0 0
    %1213 = vmatprep.subr.bf16.mxu0 0
    %1214 = vmatpush1.bf16.msra.mxu0 0
    %1215 = vmatprep.subr.bf16.mxu0 0
    %1216 = vmatpush1.bf16.msra.mxu0 0
    %1217 = vmatprep.mubr.bf16.mxu0 0
    %1218 = vmatmul.mubr.bf16.gmra.mrb[0].mxu0 %v1183
    %v1219 = vpop.f32.mrb[0].mxu0
    %v1220 = vadd.f32 0.0, %v1219
    %v1221 = vpop.f32.mrb[0].mxu0
    %v1222 = vpop.f32.mrb[0].mxu0
    %v1223 = vpop.f32.mrb[0].mxu0
    %1224 = vdwg.mxu0
    %v1225 = vadd.f32 %v1171, %v1220
    %s1226 = scalar_lea.vmem %s6, 88
    %v1227 = vld [vmem:[%s1226] sm:$0xf]
    %v1228 = vld [vmem:[%s1226 + $0x4] sm:$0xf]
    %v1229 = vrot.slane %v631, 3
    %v1232 = vunpack.c.l.b16 %v1227
    %v1233 = vunpack.c.l.b16 %v1228
    %v1234 = vpack.c.b16 %v1233, %v1232
    %v1237 = vsel %vm647, %v1229, 0
    %1239 = vmatprep.subr.bf16.mxu0 0
    %1240 = vmatpush1.bf16.msra.mxu0 %v1234
    %1241 = vmatprep.subr.bf16.mxu0 0
    %1242 = vmatpush1.bf16.msra.mxu0 0
    %1243 = vmatprep.subr.bf16.mxu0 0
    %1244 = vmatpush1.bf16.msra.mxu0 0
    %1245 = vmatprep.subr.bf16.mxu0 0
    %1246 = vmatpush1.bf16.msra.mxu0 0
    %1247 = vmatprep.subr.bf16.mxu0 0
    %1248 = vmatpush1.bf16.msra.mxu0 0
    %1249 = vmatprep.subr.bf16.mxu0 0
    %1250 = vmatpush1.bf16.msra.mxu0 0
    %1251 = vmatprep.subr.bf16.mxu0 0
    %1252 = vmatpush1.bf16.msra.mxu0 0
    %1253 = vmatprep.subr.bf16.mxu0 0
    %1254 = vmatpush1.bf16.msra.mxu0 0
    %1255 = vmatprep.subr.bf16.mxu0 0
    %1256 = vmatpush1.bf16.msra.mxu0 0
    %1257 = vmatprep.subr.bf16.mxu0 0
    %1258 = vmatpush1.bf16.msra.mxu0 0
    %1259 = vmatprep.subr.bf16.mxu0 0
    %1260 = vmatpush1.bf16.msra.mxu0 0
    %1261 = vmatprep.subr.bf16.mxu0 0
    %1262 = vmatpush1.bf16.msra.mxu0 0
    %1263 = vmatprep.subr.bf16.mxu0 0
    %1264 = vmatpush1.bf16.msra.mxu0 0
    %1265 = vmatprep.subr.bf16.mxu0 0
    %1266 = vmatpush1.bf16.msra.mxu0 0
    %1267 = vmatprep.subr.bf16.mxu0 0
    %1268 = vmatpush1.bf16.msra.mxu0 0
    %1269 = vmatprep.subr.bf16.mxu0 0
    %1270 = vmatpush1.bf16.msra.mxu0 0
    %1271 = vmatprep.mubr.bf16.mxu0 0
    %1272 = vmatmul.mubr.bf16.gmra.mrb[0].mxu0 %v1237
    %v1273 = vpop.f32.mrb[0].mxu0
    %v1274 = vadd.f32 0.0, %v1273
    %v1275 = vpop.f32.mrb[0].mxu0
    %v1276 = vpop.f32.mrb[0].mxu0
    %v1277 = vpop.f32.mrb[0].mxu0
    %1278 = vdwg.mxu0
    %v1279 = vadd.f32 %v1225, %v1274
    %s1280 = scalar_lea.vmem %s6, 96
    %v1281 = vld [vmem:[%s1280] sm:$0xf]
    %v1282 = vld [vmem:[%s1280 + $0x4] sm:$0xf]
    %v1283 = vrot.slane %v631, 4
    %v1286 = vunpack.c.l.b16 %v1281
    %v1287 = vunpack.c.l.b16 %v1282
    %v1288 = vpack.c.b16 %v1287, %v1286
    %v1291 = vsel %vm647, %v1283, 0
    %1293 = vmatprep.subr.bf16.mxu0 0
    %1294 = vmatpush1.bf16.msra.mxu0 %v1288
    %1295 = vmatprep.subr.bf16.mxu0 0
    %1296 = vmatpush1.bf16.msra.mxu0 0
    %1297 = vmatprep.subr.bf16.mxu0 0
    %1298 = vmatpush1.bf16.msra.mxu0 0
    %1299 = vmatprep.subr.bf16.mxu0 0
    %1300 = vmatpush1.bf16.msra.mxu0 0
    %1301 = vmatprep.subr.bf16.mxu0 0
    %1302 = vmatpush1.bf16.msra.mxu0 0
    %1303 = vmatprep.subr.bf16.mxu0 0
    %1304 = vmatpush1.bf16.msra.mxu0 0
    %1305 = vmatprep.subr.bf16.mxu0 0
    %1306 = vmatpush1.bf16.msra.mxu0 0
    %1307 = vmatprep.subr.bf16.mxu0 0
    %1308 = vmatpush1.bf16.msra.mxu0 0
    %1309 = vmatprep.subr.bf16.mxu0 0
    %1310 = vmatpush1.bf16.msra.mxu0 0
    %1311 = vmatprep.subr.bf16.mxu0 0
    %1312 = vmatpush1.bf16.msra.mxu0 0
    %1313 = vmatprep.subr.bf16.mxu0 0
    %1314 = vmatpush1.bf16.msra.mxu0 0
    %1315 = vmatprep.subr.bf16.mxu0 0
    %1316 = vmatpush1.bf16.msra.mxu0 0
    %1317 = vmatprep.subr.bf16.mxu0 0
    %1318 = vmatpush1.bf16.msra.mxu0 0
    %1319 = vmatprep.subr.bf16.mxu0 0
    %1320 = vmatpush1.bf16.msra.mxu0 0
    %1321 = vmatprep.subr.bf16.mxu0 0
    %1322 = vmatpush1.bf16.msra.mxu0 0
    %1323 = vmatprep.subr.bf16.mxu0 0
    %1324 = vmatpush1.bf16.msra.mxu0 0
    %1325 = vmatprep.mubr.bf16.mxu0 0
    %1326 = vmatmul.mubr.bf16.gmra.mrb[0].mxu0 %v1291
    %v1327 = vpop.f32.mrb[0].mxu0
    %v1328 = vadd.f32 0.0, %v1327
    %v1329 = vpop.f32.mrb[0].mxu0
    %v1330 = vpop.f32.mrb[0].mxu0
    %v1331 = vpop.f32.mrb[0].mxu0
    %1332 = vdwg.mxu0
    %v1333 = vadd.f32 %v1279, %v1328
    %s1334 = scalar_lea.vmem %s6, 104
    %v1335 = vld [vmem:[%s1334] sm:$0xf]
    %v1336 = vld [vmem:[%s1334 + $0x4] sm:$0xf]
    %v1337 = vrot.slane %v631, 5
    %v1340 = vunpack.c.l.b16 %v1335
    %v1341 = vunpack.c.l.b16 %v1336
    %v1342 = vpack.c.b16 %v1341, %v1340
    %v1345 = vsel %vm647, %v1337, 0
    %1347 = vmatprep.subr.bf16.mxu0 0
    %1348 = vmatpush1.bf16.msra.mxu0 %v1342
    %1349 = vmatprep.subr.bf16.mxu0 0
    %1350 = vmatpush1.bf16.msra.mxu0 0
    %1351 = vmatprep.subr.bf16.mxu0 0
    %1352 = vmatpush1.bf16.msra.mxu0 0
    %1353 = vmatprep.subr.bf16.mxu0 0
    %1354 = vmatpush1.bf16.msra.mxu0 0
    %1355 = vmatprep.subr.bf16.mxu0 0
    %1356 = vmatpush1.bf16.msra.mxu0 0
    %1357 = vmatprep.subr.bf16.mxu0 0
    %1358 = vmatpush1.bf16.msra.mxu0 0
    %1359 = vmatprep.subr.bf16.mxu0 0
    %1360 = vmatpush1.bf16.msra.mxu0 0
    %1361 = vmatprep.subr.bf16.mxu0 0
    %1362 = vmatpush1.bf16.msra.mxu0 0
    %1363 = vmatprep.subr.bf16.mxu0 0
    %1364 = vmatpush1.bf16.msra.mxu0 0
    %1365 = vmatprep.subr.bf16.mxu0 0
    %1366 = vmatpush1.bf16.msra.mxu0 0
    %1367 = vmatprep.subr.bf16.mxu0 0
    %1368 = vmatpush1.bf16.msra.mxu0 0
    %1369 = vmatprep.subr.bf16.mxu0 0
    %1370 = vmatpush1.bf16.msra.mxu0 0
    %1371 = vmatprep.subr.bf16.mxu0 0
    %1372 = vmatpush1.bf16.msra.mxu0 0
    %1373 = vmatprep.subr.bf16.mxu0 0
    %1374 = vmatpush1.bf16.msra.mxu0 0
    %1375 = vmatprep.subr.bf16.mxu0 0
    %1376 = vmatpush1.bf16.msra.mxu0 0
    %1377 = vmatprep.subr.bf16.mxu0 0
    %1378 = vmatpush1.bf16.msra.mxu0 0
    %1379 = vmatprep.mubr.bf16.mxu0 0
    %1380 = vmatmul.mubr.bf16.gmra.mrb[0].mxu0 %v1345
    %v1381 = vpop.f32.mrb[0].mxu0
    %v1382 = vadd.f32 0.0, %v1381
    %v1383 = vpop.f32.mrb[0].mxu0
    %v1384 = vpop.f32.mrb[0].mxu0
    %v1385 = vpop.f32.mrb[0].mxu0
    %1386 = vdwg.mxu0
    %v1387 = vadd.f32 %v1333, %v1382
    %s1388 = scalar_lea.vmem %s6, 112
    %v1389 = vld [vmem:[%s1388] sm:$0xf]
    %v1390 = vld [vmem:[%s1388 + $0x4] sm:$0xf]
    %v1391 = vrot.slane %v631, 6
    %v1394 = vunpack.c.l.b16 %v1389
    %v1395 = vunpack.c.l.b16 %v1390
    %v1396 = vpack.c.b16 %v1395, %v1394
    %v1399 = vsel %vm647, %v1391, 0
    %1401 = vmatprep.subr.bf16.mxu0 0
    %1402 = vmatpush1.bf16.msra.mxu0 %v1396
    %1403 = vmatprep.subr.bf16.mxu0 0
    %1404 = vmatpush1.bf16.msra.mxu0 0
    %1405 = vmatprep.subr.bf16.mxu0 0
    %1406 = vmatpush1.bf16.msra.mxu0 0
    %1407 = vmatprep.subr.bf16.mxu0 0
    %1408 = vmatpush1.bf16.msra.mxu0 0
    %1409 = vmatprep.subr.bf16.mxu0 0
    %1410 = vmatpush1.bf16.msra.mxu0 0
    %1411 = vmatprep.subr.bf16.mxu0 0
    %1412 = vmatpush1.bf16.msra.mxu0 0
    %1413 = vmatprep.subr.bf16.mxu0 0
    %1414 = vmatpush1.bf16.msra.mxu0 0
    %1415 = vmatprep.subr.bf16.mxu0 0
    %1416 = vmatpush1.bf16.msra.mxu0 0
    %1417 = vmatprep.subr.bf16.mxu0 0
    %1418 = vmatpush1.bf16.msra.mxu0 0
    %1419 = vmatprep.subr.bf16.mxu0 0
    %1420 = vmatpush1.bf16.msra.mxu0 0
    %1421 = vmatprep.subr.bf16.mxu0 0
    %1422 = vmatpush1.bf16.msra.mxu0 0
    %1423 = vmatprep.subr.bf16.mxu0 0
    %1424 = vmatpush1.bf16.msra.mxu0 0
    %1425 = vmatprep.subr.bf16.mxu0 0
    %1426 = vmatpush1.bf16.msra.mxu0 0
    %1427 = vmatprep.subr.bf16.mxu0 0
    %1428 = vmatpush1.bf16.msra.mxu0 0
    %1429 = vmatprep.subr.bf16.mxu0 0
    %1430 = vmatpush1.bf16.msra.mxu0 0
    %1431 = vmatprep.subr.bf16.mxu0 0
    %1432 = vmatpush1.bf16.msra.mxu0 0
    %1433 = vmatprep.mubr.bf16.mxu0 0
    %1434 = vmatmul.mubr.bf16.gmra.mrb[0].mxu0 %v1399
    %v1435 = vpop.f32.mrb[0].mxu0
    %v1436 = vadd.f32 0.0, %v1435
    %v1437 = vpop.f32.mrb[0].mxu0
    %v1438 = vpop.f32.mrb[0].mxu0
    %v1439 = vpop.f32.mrb[0].mxu0
    %1440 = vdwg.mxu0
    %v1441 = vadd.f32 %v1387, %v1436
    %s1442 = scalar_lea.vmem %s6, 120
    %v1443 = vld [vmem:[%s1442] sm:$0xf]
    %v1444 = vld [vmem:[%s1442 + $0x4] sm:$0xf]
    %v1445 = vrot.slane %v631, 7
    %v1448 = vunpack.c.l.b16 %v1443
    %v1449 = vunpack.c.l.b16 %v1444
    %v1450 = vpack.c.b16 %v1449, %v1448
    %v1453 = vsel %vm647, %v1445, 0
    %1455 = vmatprep.subr.bf16.mxu0 0
    %1456 = vmatpush1.bf16.msra.mxu0 %v1450
    %1457 = vmatprep.subr.bf16.mxu0 0
    %1458 = vmatpush1.bf16.msra.mxu0 0
    %1459 = vmatprep.subr.bf16.mxu0 0
    %1460 = vmatpush1.bf16.msra.mxu0 0
    %1461 = vmatprep.subr.bf16.mxu0 0
    %1462 = vmatpush1.bf16.msra.mxu0 0
    %1463 = vmatprep.subr.bf16.mxu0 0
    %1464 = vmatpush1.bf16.msra.mxu0 0
    %1465 = vmatprep.subr.bf16.mxu0 0
    %1466 = vmatpush1.bf16.msra.mxu0 0
    %1467 = vmatprep.subr.bf16.mxu0 0
    %1468 = vmatpush1.bf16.msra.mxu0 0
    %1469 = vmatprep.subr.bf16.mxu0 0
    %1470 = vmatpush1.bf16.msra.mxu0 0
    %1471 = vmatprep.subr.bf16.mxu0 0
    %1472 = vmatpush1.bf16.msra.mxu0 0
    %1473 = vmatprep.subr.bf16.mxu0 0
    %1474 = vmatpush1.bf16.msra.mxu0 0
    %1475 = vmatprep.subr.bf16.mxu0 0
    %1476 = vmatpush1.bf16.msra.mxu0 0
    %1477 = vmatprep.subr.bf16.mxu0 0
    %1478 = vmatpush1.bf16.msra.mxu0 0
    %1479 = vmatprep.subr.bf16.mxu0 0
    %1480 = vmatpush1.bf16.msra.mxu0 0
    %1481 = vmatprep.subr.bf16.mxu0 0
    %1482 = vmatpush1.bf16.msra.mxu0 0
    %1483 = vmatprep.subr.bf16.mxu0 0
    %1484 = vmatpush1.bf16.msra.mxu0 0
    %1485 = vmatprep.subr.bf16.mxu0 0
    %1486 = vmatpush1.bf16.msra.mxu0 0
    %1487 = vmatprep.mubr.bf16.mxu0 0
    %1488 = vmatmul.mubr.bf16.gmra.mrb[0].mxu0 %v1453
    %v1489 = vpop.f32.mrb[0].mxu0
    %v1490 = vadd.f32 0.0, %v1489
    %v1491 = vpop.f32.mrb[0].mxu0
    %v1492 = vpop.f32.mrb[0].mxu0
    %v1493 = vpop.f32.mrb[0].mxu0
    %1494 = vdwg.mxu0
    %v1495 = vadd.f32 %v1441, %v1490
    %s1496 = scalar_lea.vmem %s6, 128
    %v1497 = vld [vmem:[%s1496] sm:$0xf]
    %v1498 = vld [vmem:[%s1496 + $0x4] sm:$0xf]
    %v1501 = vunpack.c.l.b16 %v1497
    %v1502 = vunpack.c.l.b16 %v1498
    %v1503 = vpack.c.b16 %v1502, %v1501
    %v1506 = vsel %vm647, %v632, 0
    %1508 = vmatprep.subr.bf16.mxu0 0
    %1509 = vmatpush1.bf16.msra.mxu0 %v1503
    %1510 = vmatprep.subr.bf16.mxu0 0
    %1511 = vmatpush1.bf16.msra.mxu0 0
    %1512 = vmatprep.subr.bf16.mxu0 0
    %1513 = vmatpush1.bf16.msra.mxu0 0
    %1514 = vmatprep.subr.bf16.mxu0 0
    %1515 = vmatpush1.bf16.msra.mxu0 0
    %1516 = vmatprep.subr.bf16.mxu0 0
    %1517 = vmatpush1.bf16.msra.mxu0 0
    %1518 = vmatprep.subr.bf16.mxu0 0
    %1519 = vmatpush1.bf16.msra.mxu0 0
    %1520 = vmatprep.subr.bf16.mxu0 0
    %1521 = vmatpush1.bf16.msra.mxu0 0
    %1522 = vmatprep.subr.bf16.mxu0 0
    %1523 = vmatpush1.bf16.msra.mxu0 0
    %1524 = vmatprep.subr.bf16.mxu0 0
    %1525 = vmatpush1.bf16.msra.mxu0 0
    %1526 = vmatprep.subr.bf16.mxu0 0
    %1527 = vmatpush1.bf16.msra.mxu0 0
    %1528 = vmatprep.subr.bf16.mxu0 0
    %1529 = vmatpush1.bf16.msra.mxu0 0
    %1530 = vmatprep.subr.bf16.mxu0 0
    %1531 = vmatpush1.bf16.msra.mxu0 0
    %1532 = vmatprep.subr.bf16.mxu0 0
    %1533 = vmatpush1.bf16.msra.mxu0 0
    %1534 = vmatprep.subr.bf16.mxu0 0
    %1535 = vmatpush1.bf16.msra.mxu0 0
    %1536 = vmatprep.subr.bf16.mxu0 0
    %1537 = vmatpush1.bf16.msra.mxu0 0
    %1538 = vmatprep.subr.bf16.mxu0 0
    %1539 = vmatpush1.bf16.msra.mxu0 0
    %1540 = vmatprep.mubr.bf16.mxu0 0
    %1541 = vmatmul.mubr.bf16.gmra.mrb[0].mxu0 %v1506
    %v1542 = vpop.f32.mrb[0].mxu0
    %v1543 = vadd.f32 0.0, %v1542
    %v1544 = vpop.f32.mrb[0].mxu0
    %v1545 = vpop.f32.mrb[0].mxu0
    %v1546 = vpop.f32.mrb[0].mxu0
    %1547 = vdwg.mxu0
    %v1548 = vadd.f32 %v1495, %v1543
    %s1549 = scalar_lea.vmem %s6, 136
    %v1550 = vld [vmem:[%s1549] sm:$0xf]
    %v1551 = vld [vmem:[%s1549 + $0x4] sm:$0xf]
    %v1553 = vrot.slane %v632, 1
    %v1556 = vunpack.c.l.b16 %v1550
    %v1557 = vunpack.c.l.b16 %v1551
    %v1558 = vpack.c.b16 %v1557, %v1556
    %v1561 = vsel %vm647, %v1553, 0
    %1563 = vmatprep.subr.bf16.mxu0 0
    %1564 = vmatpush1.bf16.msra.mxu0 %v1558
    %1565 = vmatprep.subr.bf16.mxu0 0
    %1566 = vmatpush1.bf16.msra.mxu0 0
    %1567 = vmatprep.subr.bf16.mxu0 0
    %1568 = vmatpush1.bf16.msra.mxu0 0
    %1569 = vmatprep.subr.bf16.mxu0 0
    %1570 = vmatpush1.bf16.msra.mxu0 0
    %1571 = vmatprep.subr.bf16.mxu0 0
    %1572 = vmatpush1.bf16.msra.mxu0 0
    %1573 = vmatprep.subr.bf16.mxu0 0
    %1574 = vmatpush1.bf16.msra.mxu0 0
    %1575 = vmatprep.subr.bf16.mxu0 0
    %1576 = vmatpush1.bf16.msra.mxu0 0
    %1577 = vmatprep.subr.bf16.mxu0 0
    %1578 = vmatpush1.bf16.msra.mxu0 0
    %1579 = vmatprep.subr.bf16.mxu0 0
    %1580 = vmatpush1.bf16.msra.mxu0 0
    %1581 = vmatprep.subr.bf16.mxu0 0
    %1582 = vmatpush1.bf16.msra.mxu0 0
    %1583 = vmatprep.subr.bf16.mxu0 0
    %1584 = vmatpush1.bf16.msra.mxu0 0
    %1585 = vmatprep.subr.bf16.mxu0 0
    %1586 = vmatpush1.bf16.msra.mxu0 0
    %1587 = vmatprep.subr.bf16.mxu0 0
    %1588 = vmatpush1.bf16.msra.mxu0 0
    %1589 = vmatprep.subr.bf16.mxu0 0
    %1590 = vmatpush1.bf16.msra.mxu0 0
    %1591 = vmatprep.subr.bf16.mxu0 0
    %1592 = vmatpush1.bf16.msra.mxu0 0
    %1593 = vmatprep.subr.bf16.mxu0 0
    %1594 = vmatpush1.bf16.msra.mxu0 0
    %1595 = vmatprep.mubr.bf16.mxu0 0
    %1596 = vmatmul.mubr.bf16.gmra.mrb[0].mxu0 %v1561
    %v1597 = vpop.f32.mrb[0].mxu0
    %v1598 = vadd.f32 0.0, %v1597
    %v1599 = vpop.f32.mrb[0].mxu0
    %v1600 = vpop.f32.mrb[0].mxu0
    %v1601 = vpop.f32.mrb[0].mxu0
    %1602 = vdwg.mxu0
    %v1603 = vadd.f32 %v1548, %v1598
    %s1604 = scalar_lea.vmem %s6, 144
    %v1605 = vld [vmem:[%s1604] sm:$0xf]
    %v1606 = vld [vmem:[%s1604 + $0x4] sm:$0xf]
    %v1607 = vrot.slane %v632, 2
    %v1610 = vunpack.c.l.b16 %v1605
    %v1611 = vunpack.c.l.b16 %v1606
    %v1612 = vpack.c.b16 %v1611, %v1610
    %v1615 = vsel %vm647, %v1607, 0
    %1617 = vmatprep.subr.bf16.mxu0 0
    %1618 = vmatpush1.bf16.msra.mxu0 %v1612
    %1619 = vmatprep.subr.bf16.mxu0 0
    %1620 = vmatpush1.bf16.msra.mxu0 0
    %1621 = vmatprep.subr.bf16.mxu0 0
    %1622 = vmatpush1.bf16.msra.mxu0 0
    %1623 = vmatprep.subr.bf16.mxu0 0
    %1624 = vmatpush1.bf16.msra.mxu0 0
    %1625 = vmatprep.subr.bf16.mxu0 0
    %1626 = vmatpush1.bf16.msra.mxu0 0
    %1627 = vmatprep.subr.bf16.mxu0 0
    %1628 = vmatpush1.bf16.msra.mxu0 0
    %1629 = vmatprep.subr.bf16.mxu0 0
    %1630 = vmatpush1.bf16.msra.mxu0 0
    %1631 = vmatprep.subr.bf16.mxu0 0
    %1632 = vmatpush1.bf16.msra.mxu0 0
    %1633 = vmatprep.subr.bf16.mxu0 0
    %1634 = vmatpush1.bf16.msra.mxu0 0
    %1635 = vmatprep.subr.bf16.mxu0 0
    %1636 = vmatpush1.bf16.msra.mxu0 0
    %1637 = vmatprep.subr.bf16.mxu0 0
    %1638 = vmatpush1.bf16.msra.mxu0 0
    %1639 = vmatprep.subr.bf16.mxu0 0
    %1640 = vmatpush1.bf16.msra.mxu0 0
    %1641 = vmatprep.subr.bf16.mxu0 0
    %1642 = vmatpush1.bf16.msra.mxu0 0
    %1643 = vmatprep.subr.bf16.mxu0 0
    %1644 = vmatpush1.bf16.msra.mxu0 0
    %1645 = vmatprep.subr.bf16.mxu0 0
    %1646 = vmatpush1.bf16.msra.mxu0 0
    %1647 = vmatprep.subr.bf16.mxu0 0
    %1648 = vmatpush1.bf16.msra.mxu0 0
    %1649 = vmatprep.mubr.bf16.mxu0 0
    %1650 = vmatmul.mubr.bf16.gmra.mrb[0].mxu0 %v1615
    %v1651 = vpop.f32.mrb[0].mxu0
    %v1652 = vadd.f32 0.0, %v1651
    %v1653 = vpop.f32.mrb[0].mxu0
    %v1654 = vpop.f32.mrb[0].mxu0
    %v1655 = vpop.f32.mrb[0].mxu0
    %1656 = vdwg.mxu0
    %v1657 = vadd.f32 %v1603, %v1652
    %s1658 = scalar_lea.vmem %s6, 152
    %v1659 = vld [vmem:[%s1658] sm:$0xf]
    %v1660 = vld [vmem:[%s1658 + $0x4] sm:$0xf]
    %v1661 = vrot.slane %v632, 3
    %v1664 = vunpack.c.l.b16 %v1659
    %v1665 = vunpack.c.l.b16 %v1660
    %v1666 = vpack.c.b16 %v1665, %v1664
    %v1669 = vsel %vm647, %v1661, 0
    %1671 = vmatprep.subr.bf16.mxu0 0
    %1672 = vmatpush1.bf16.msra.mxu0 %v1666
    %1673 = vmatprep.subr.bf16.mxu0 0
    %1674 = vmatpush1.bf16.msra.mxu0 0
    %1675 = vmatprep.subr.bf16.mxu0 0
    %1676 = vmatpush1.bf16.msra.mxu0 0
    %1677 = vmatprep.subr.bf16.mxu0 0
    %1678 = vmatpush1.bf16.msra.mxu0 0
    %1679 = vmatprep.subr.bf16.mxu0 0
    %1680 = vmatpush1.bf16.msra.mxu0 0
    %1681 = vmatprep.subr.bf16.mxu0 0
    %1682 = vmatpush1.bf16.msra.mxu0 0
    %1683 = vmatprep.subr.bf16.mxu0 0
    %1684 = vmatpush1.bf16.msra.mxu0 0
    %1685 = vmatprep.subr.bf16.mxu0 0
    %1686 = vmatpush1.bf16.msra.mxu0 0
    %1687 = vmatprep.subr.bf16.mxu0 0
    %1688 = vmatpush1.bf16.msra.mxu0 0
    %1689 = vmatprep.subr.bf16.mxu0 0
    %1690 = vmatpush1.bf16.msra.mxu0 0
    %1691 = vmatprep.subr.bf16.mxu0 0
    %1692 = vmatpush1.bf16.msra.mxu0 0
    %1693 = vmatprep.subr.bf16.mxu0 0
    %1694 = vmatpush1.bf16.msra.mxu0 0
    %1695 = vmatprep.subr.bf16.mxu0 0
    %1696 = vmatpush1.bf16.msra.mxu0 0
    %1697 = vmatprep.subr.bf16.mxu0 0
    %1698 = vmatpush1.bf16.msra.mxu0 0
    %1699 = vmatprep.subr.bf16.mxu0 0
    %1700 = vmatpush1.bf16.msra.mxu0 0
    %1701 = vmatprep.subr.bf16.mxu0 0
    %1702 = vmatpush1.bf16.msra.mxu0 0
    %1703 = vmatprep.mubr.bf16.mxu0 0
    %1704 = vmatmul.mubr.bf16.gmra.mrb[0].mxu0 %v1669
    %v1705 = vpop.f32.mrb[0].mxu0
    %v1706 = vadd.f32 0.0, %v1705
    %v1707 = vpop.f32.mrb[0].mxu0
    %v1708 = vpop.f32.mrb[0].mxu0
    %v1709 = vpop.f32.mrb[0].mxu0
    %1710 = vdwg.mxu0
    %v1711 = vadd.f32 %v1657, %v1706
    %s1712 = scalar_lea.vmem %s6, 160
    %v1713 = vld [vmem:[%s1712] sm:$0xf]
    %v1714 = vld [vmem:[%s1712 + $0x4] sm:$0xf]
    %v1715 = vrot.slane %v632, 4
    %v1718 = vunpack.c.l.b16 %v1713
    %v1719 = vunpack.c.l.b16 %v1714
    %v1720 = vpack.c.b16 %v1719, %v1718
    %v1723 = vsel %vm647, %v1715, 0
    %1725 = vmatprep.subr.bf16.mxu0 0
    %1726 = vmatpush1.bf16.msra.mxu0 %v1720
    %1727 = vmatprep.subr.bf16.mxu0 0
    %1728 = vmatpush1.bf16.msra.mxu0 0
    %1729 = vmatprep.subr.bf16.mxu0 0
    %1730 = vmatpush1.bf16.msra.mxu0 0
    %1731 = vmatprep.subr.bf16.mxu0 0
    %1732 = vmatpush1.bf16.msra.mxu0 0
    %1733 = vmatprep.subr.bf16.mxu0 0
    %1734 = vmatpush1.bf16.msra.mxu0 0
    %1735 = vmatprep.subr.bf16.mxu0 0
    %1736 = vmatpush1.bf16.msra.mxu0 0
    %1737 = vmatprep.subr.bf16.mxu0 0
    %1738 = vmatpush1.bf16.msra.mxu0 0
    %1739 = vmatprep.subr.bf16.mxu0 0
    %1740 = vmatpush1.bf16.msra.mxu0 0
    %1741 = vmatprep.subr.bf16.mxu0 0
    %1742 = vmatpush1.bf16.msra.mxu0 0
    %1743 = vmatprep.subr.bf16.mxu0 0
    %1744 = vmatpush1.bf16.msra.mxu0 0
    %1745 = vmatprep.subr.bf16.mxu0 0
    %1746 = vmatpush1.bf16.msra.mxu0 0
    %1747 = vmatprep.subr.bf16.mxu0 0
    %1748 = vmatpush1.bf16.msra.mxu0 0
    %1749 = vmatprep.subr.bf16.mxu0 0
    %1750 = vmatpush1.bf16.msra.mxu0 0
    %1751 = vmatprep.subr.bf16.mxu0 0
    %1752 = vmatpush1.bf16.msra.mxu0 0
    %1753 = vmatprep.subr.bf16.mxu0 0
    %1754 = vmatpush1.bf16.msra.mxu0 0
    %1755 = vmatprep.subr.bf16.mxu0 0
    %1756 = vmatpush1.bf16.msra.mxu0 0
    %1757 = vmatprep.mubr.bf16.mxu0 0
    %1758 = vmatmul.mubr.bf16.gmra.mrb[0].mxu0 %v1723
    %v1759 = vpop.f32.mrb[0].mxu0
    %v1760 = vadd.f32 0.0, %v1759
    %v1761 = vpop.f32.mrb[0].mxu0
    %v1762 = vpop.f32.mrb[0].mxu0
    %v1763 = vpop.f32.mrb[0].mxu0
    %1764 = vdwg.mxu0
    %v1765 = vadd.f32 %v1711, %v1760
    %s1766 = scalar_lea.vmem %s6, 168
    %v1767 = vld [vmem:[%s1766] sm:$0xf]
    %v1768 = vld [vmem:[%s1766 + $0x4] sm:$0xf]
    %v1769 = vrot.slane %v632, 5
    %v1772 = vunpack.c.l.b16 %v1767
    %v1773 = vunpack.c.l.b16 %v1768
    %v1774 = vpack.c.b16 %v1773, %v1772
    %v1777 = vsel %vm647, %v1769, 0
    %1779 = vmatprep.subr.bf16.mxu0 0
    %1780 = vmatpush1.bf16.msra.mxu0 %v1774
    %1781 = vmatprep.subr.bf16.mxu0 0
    %1782 = vmatpush1.bf16.msra.mxu0 0
    %1783 = vmatprep.subr.bf16.mxu0 0
    %1784 = vmatpush1.bf16.msra.mxu0 0
    %1785 = vmatprep.subr.bf16.mxu0 0
    %1786 = vmatpush1.bf16.msra.mxu0 0
    %1787 = vmatprep.subr.bf16.mxu0 0
    %1788 = vmatpush1.bf16.msra.mxu0 0
    %1789 = vmatprep.subr.bf16.mxu0 0
    %1790 = vmatpush1.bf16.msra.mxu0 0
    %1791 = vmatprep.subr.bf16.mxu0 0
    %1792 = vmatpush1.bf16.msra.mxu0 0
    %1793 = vmatprep.subr.bf16.mxu0 0
    %1794 = vmatpush1.bf16.msra.mxu0 0
    %1795 = vmatprep.subr.bf16.mxu0 0
    %1796 = vmatpush1.bf16.msra.mxu0 0
    %1797 = vmatprep.subr.bf16.mxu0 0
    %1798 = vmatpush1.bf16.msra.mxu0 0
    %1799 = vmatprep.subr.bf16.mxu0 0
    %1800 = vmatpush1.bf16.msra.mxu0 0
    %1801 = vmatprep.subr.bf16.mxu0 0
    %1802 = vmatpush1.bf16.msra.mxu0 0
    %1803 = vmatprep.subr.bf16.mxu0 0
    %1804 = vmatpush1.bf16.msra.mxu0 0
    %1805 = vmatprep.subr.bf16.mxu0 0
    %1806 = vmatpush1.bf16.msra.mxu0 0
    %1807 = vmatprep.subr.bf16.mxu0 0
    %1808 = vmatpush1.bf16.msra.mxu0 0
    %1809 = vmatprep.subr.bf16.mxu0 0
    %1810 = vmatpush1.bf16.msra.mxu0 0
    %1811 = vmatprep.mubr.bf16.mxu0 0
    %1812 = vmatmul.mubr.bf16.gmra.mrb[0].mxu0 %v1777
    %v1813 = vpop.f32.mrb[0].mxu0
    %v1814 = vadd.f32 0.0, %v1813
    %v1815 = vpop.f32.mrb[0].mxu0
    %v1816 = vpop.f32.mrb[0].mxu0
    %v1817 = vpop.f32.mrb[0].mxu0
    %1818 = vdwg.mxu0
    %v1819 = vadd.f32 %v1765, %v1814
    %s1820 = scalar_lea.vmem %s6, 176
    %v1821 = vld [vmem:[%s1820] sm:$0xf]
    %v1822 = vld [vmem:[%s1820 + $0x4] sm:$0xf]
    %v1823 = vrot.slane %v632, 6
    %v1826 = vunpack.c.l.b16 %v1821
    %v1827 = vunpack.c.l.b16 %v1822
    %v1828 = vpack.c.b16 %v1827, %v1826
    %v1831 = vsel %vm647, %v1823, 0
    %1833 = vmatprep.subr.bf16.mxu0 0
    %1834 = vmatpush1.bf16.msra.mxu0 %v1828
    %1835 = vmatprep.subr.bf16.mxu0 0
    %1836 = vmatpush1.bf16.msra.mxu0 0
    %1837 = vmatprep.subr.bf16.mxu0 0
    %1838 = vmatpush1.bf16.msra.mxu0 0
    %1839 = vmatprep.subr.bf16.mxu0 0
    %1840 = vmatpush1.bf16.msra.mxu0 0
    %1841 = vmatprep.subr.bf16.mxu0 0
    %1842 = vmatpush1.bf16.msra.mxu0 0
    %1843 = vmatprep.subr.bf16.mxu0 0
    %1844 = vmatpush1.bf16.msra.mxu0 0
    %1845 = vmatprep.subr.bf16.mxu0 0
    %1846 = vmatpush1.bf16.msra.mxu0 0
    %1847 = vmatprep.subr.bf16.mxu0 0
    %1848 = vmatpush1.bf16.msra.mxu0 0
    %1849 = vmatprep.subr.bf16.mxu0 0
    %1850 = vmatpush1.bf16.msra.mxu0 0
    %1851 = vmatprep.subr.bf16.mxu0 0
    %1852 = vmatpush1.bf16.msra.mxu0 0
    %1853 = vmatprep.subr.bf16.mxu0 0
    %1854 = vmatpush1.bf16.msra.mxu0 0
    %1855 = vmatprep.subr.bf16.mxu0 0
    %1856 = vmatpush1.bf16.msra.mxu0 0
    %1857 = vmatprep.subr.bf16.mxu0 0
    %1858 = vmatpush1.bf16.msra.mxu0 0
    %1859 = vmatprep.subr.bf16.mxu0 0
    %1860 = vmatpush1.bf16.msra.mxu0 0
    %1861 = vmatprep.subr.bf16.mxu0 0
    %1862 = vmatpush1.bf16.msra.mxu0 0
    %1863 = vmatprep.subr.bf16.mxu0 0
    %1864 = vmatpush1.bf16.msra.mxu0 0
    %1865 = vmatprep.mubr.bf16.mxu0 0
    %1866 = vmatmul.mubr.bf16.gmra.mrb[0].mxu0 %v1831
    %v1867 = vpop.f32.mrb[0].mxu0
    %v1868 = vadd.f32 0.0, %v1867
    %v1869 = vpop.f32.mrb[0].mxu0
    %v1870 = vpop.f32.mrb[0].mxu0
    %v1871 = vpop.f32.mrb[0].mxu0
    %1872 = vdwg.mxu0
    %v1873 = vadd.f32 %v1819, %v1868
    %s1874 = scalar_lea.vmem %s6, 184
    %v1875 = vld [vmem:[%s1874] sm:$0xf]
    %v1876 = vld [vmem:[%s1874 + $0x4] sm:$0xf]
    %v1877 = vrot.slane %v632, 7
    %v1880 = vunpack.c.l.b16 %v1875
    %v1881 = vunpack.c.l.b16 %v1876
    %v1882 = vpack.c.b16 %v1881, %v1880
    %v1885 = vsel %vm647, %v1877, 0
    %1887 = vmatprep.subr.bf16.mxu0 0
    %1888 = vmatpush1.bf16.msra.mxu0 %v1882
    %1889 = vmatprep.subr.bf16.mxu0 0
    %1890 = vmatpush1.bf16.msra.mxu0 0
    %1891 = vmatprep.subr.bf16.mxu0 0
    %1892 = vmatpush1.bf16.msra.mxu0 0
    %1893 = vmatprep.subr.bf16.mxu0 0
    %1894 = vmatpush1.bf16.msra.mxu0 0
    %1895 = vmatprep.subr.bf16.mxu0 0
    %1896 = vmatpush1.bf16.msra.mxu0 0
    %1897 = vmatprep.subr.bf16.mxu0 0
    %1898 = vmatpush1.bf16.msra.mxu0 0
    %1899 = vmatprep.subr.bf16.mxu0 0
    %1900 = vmatpush1.bf16.msra.mxu0 0
    %1901 = vmatprep.subr.bf16.mxu0 0
    %1902 = vmatpush1.bf16.msra.mxu0 0
    %1903 = vmatprep.subr.bf16.mxu0 0
    %1904 = vmatpush1.bf16.msra.mxu0 0
    %1905 = vmatprep.subr.bf16.mxu0 0
    %1906 = vmatpush1.bf16.msra.mxu0 0
    %1907 = vmatprep.subr.bf16.mxu0 0
    %1908 = vmatpush1.bf16.msra.mxu0 0
    %1909 = vmatprep.subr.bf16.mxu0 0
    %1910 = vmatpush1.bf16.msra.mxu0 0
    %1911 = vmatprep.subr.bf16.mxu0 0
    %1912 = vmatpush1.bf16.msra.mxu0 0
    %1913 = vmatprep.subr.bf16.mxu0 0
    %1914 = vmatpush1.bf16.msra.mxu0 0
    %1915 = vmatprep.subr.bf16.mxu0 0
    %1916 = vmatpush1.bf16.msra.mxu0 0
    %1917 = vmatprep.subr.bf16.mxu0 0
    %1918 = vmatpush1.bf16.msra.mxu0 0
    %1919 = vmatprep.mubr.bf16.mxu0 0
    %1920 = vmatmul.mubr.bf16.gmra.mrb[0].mxu0 %v1885
    %v1921 = vpop.f32.mrb[0].mxu0
    %v1922 = vadd.f32 0.0, %v1921
    %v1923 = vpop.f32.mrb[0].mxu0
    %v1924 = vpop.f32.mrb[0].mxu0
    %v1925 = vpop.f32.mrb[0].mxu0
    %1926 = vdwg.mxu0
    %v1927 = vadd.f32 %v1873, %v1922
    %s1928 = scalar_lea.vmem %s6, 192
    %v1929 = vld [vmem:[%s1928] sm:$0xf]
    %v1930 = vld [vmem:[%s1928 + $0x4] sm:$0xf]
    %v1933 = vunpack.c.l.b16 %v1929
    %v1934 = vunpack.c.l.b16 %v1930
    %v1935 = vpack.c.b16 %v1934, %v1933
    %v1938 = vsel %vm647, %v633, 0
    %1940 = vmatprep.subr.bf16.mxu0 0
    %1941 = vmatpush1.bf16.msra.mxu0 %v1935
    %1942 = vmatprep.subr.bf16.mxu0 0
    %1943 = vmatpush1.bf16.msra.mxu0 0
    %1944 = vmatprep.subr.bf16.mxu0 0
    %1945 = vmatpush1.bf16.msra.mxu0 0
    %1946 = vmatprep.subr.bf16.mxu0 0
    %1947 = vmatpush1.bf16.msra.mxu0 0
    %1948 = vmatprep.subr.bf16.mxu0 0
    %1949 = vmatpush1.bf16.msra.mxu0 0
    %1950 = vmatprep.subr.bf16.mxu0 0
    %1951 = vmatpush1.bf16.msra.mxu0 0
    %1952 = vmatprep.subr.bf16.mxu0 0
    %1953 = vmatpush1.bf16.msra.mxu0 0
    %1954 = vmatprep.subr.bf16.mxu0 0
    %1955 = vmatpush1.bf16.msra.mxu0 0
    %1956 = vmatprep.subr.bf16.mxu0 0
    %1957 = vmatpush1.bf16.msra.mxu0 0
    %1958 = vmatprep.subr.bf16.mxu0 0
    %1959 = vmatpush1.bf16.msra.mxu0 0
    %1960 = vmatprep.subr.bf16.mxu0 0
    %1961 = vmatpush1.bf16.msra.mxu0 0
    %1962 = vmatprep.subr.bf16.mxu0 0
    %1963 = vmatpush1.bf16.msra.mxu0 0
    %1964 = vmatprep.subr.bf16.mxu0 0
    %1965 = vmatpush1.bf16.msra.mxu0 0
    %1966 = vmatprep.subr.bf16.mxu0 0
    %1967 = vmatpush1.bf16.msra.mxu0 0
    %1968 = vmatprep.subr.bf16.mxu0 0
    %1969 = vmatpush1.bf16.msra.mxu0 0
    %1970 = vmatprep.subr.bf16.mxu0 0
    %1971 = vmatpush1.bf16.msra.mxu0 0
    %1972 = vmatprep.mubr.bf16.mxu0 0
    %1973 = vmatmul.mubr.bf16.gmra.mrb[0].mxu0 %v1938
    %v1974 = vpop.f32.mrb[0].mxu0
    %v1975 = vadd.f32 0.0, %v1974
    %v1976 = vpop.f32.mrb[0].mxu0
    %v1977 = vpop.f32.mrb[0].mxu0
    %v1978 = vpop.f32.mrb[0].mxu0
    %1979 = vdwg.mxu0
    %v1980 = vadd.f32 %v1927, %v1975
    %v1981 = vld [vmem:[%s7] sm:$0x1]
    %v1983 = vlaneseq
    %v1984 = vshrl.u32 %v1983, 7
    %v1985 = vsub.s32 0, %v1984
    %v1986 = vrot.slane %v1981, %v1985
    %v1988 = vadd.f32 %v1980, %v1986
    %v1989 = vmax.f32 %v1988, 0.0
    %v1990 = vpack.c.bf16 %v1989, %v1989
    %v1991 = vld [vmem:[%s8] sm:$0xf]
    %v1992 = vld [vmem:[%s8 + $0x4] sm:$0xf]
    %v1993 = vld [vmem:[%s8 + $0x8] sm:$0xf]
    %v1994 = vld [vmem:[%s8 + $0xc] sm:$0xf]
    %v1995 = vld [vmem:[%s8 + $0x10] sm:$0xf]
    %v1996 = vld [vmem:[%s8 + $0x14] sm:$0xf]
    %v1997 = vld [vmem:[%s8 + $0x18] sm:$0xf]
    %v1998 = vld [vmem:[%s8 + $0x1c] sm:$0xf]
    %v1999 = vld [vmem:[%s8 + $0x20] sm:$0xf]
    %v2000 = vld [vmem:[%s8 + $0x24] sm:$0xf]
    %v2001 = vld [vmem:[%s8 + $0x28] sm:$0xf]
    %v2002 = vld [vmem:[%s8 + $0x2c] sm:$0xf]
    %v2003 = vld [vmem:[%s8 + $0x30] sm:$0xf]
    %v2004 = vld [vmem:[%s8 + $0x34] sm:$0xf]
    %v2005 = vld [vmem:[%s8 + $0x38] sm:$0xf]
    %v2006 = vld [vmem:[%s9] sm:$0x1]
    %v2008 = vlaneseq
    %v2009 = vshrl.u32 %v2008, 7
    %v2010 = vsub.s32 0, %v2009
    %v2011 = vrot.slane %v2006, %v2010
    %v2028 = vunpack.c.l.b16 %v1991
    %v2029 = vunpack.c.l.b16 %v1992
    %v2030 = vunpack.c.l.b16 %v1993
    %v2031 = vunpack.c.l.b16 %v1994
    %v2032 = vunpack.c.l.b16 %v1995
    %v2033 = vunpack.c.l.b16 %v1996
    %v2034 = vunpack.c.l.b16 %v1997
    %v2035 = vunpack.c.l.b16 %v1998
    %v2036 = vunpack.c.l.b16 %v1999
    %v2037 = vunpack.c.l.b16 %v2000
    %v2038 = vunpack.c.l.b16 %v2001
    %v2039 = vunpack.c.l.b16 %v2002
    %v2040 = vunpack.c.l.b16 %v2003
    %v2041 = vunpack.c.l.b16 %v2004
    %v2042 = vunpack.c.l.b16 %v2005
    %v2043 = vpack.c.b16 %v2029, %v2028
    %v2044 = vpack.c.b16 %v2031, %v2030
    %v2045 = vpack.c.b16 %v2033, %v2032
    %v2046 = vpack.c.b16 %v2035, %v2034
    %v2047 = vpack.c.b16 %v2037, %v2036
    %v2048 = vpack.c.b16 %v2039, %v2038
    %v2049 = vpack.c.b16 %v2041, %v2040
    %v2050 = vpack.c.b16 %v2042, %v2042
    %vm2058 = vcmask 982016
    %v2060 = vsel %vm2058, %v1990, 0
    %vm2062 = vcmask 1043456
    %v2064 = vsel %vm2062, %v2050, 0
    %2066 = vmatprep.subr.bf16.mxu0 0
    %2067 = vmatpush1.bf16.msra.mxu0 %v2043
    %2068 = vmatprep.subr.bf16.mxu0 0
    %2069 = vmatpush1.bf16.msra.mxu0 %v2044
    %2070 = vmatprep.subr.bf16.mxu0 0
    %2071 = vmatpush1.bf16.msra.mxu0 %v2045
    %2072 = vmatprep.subr.bf16.mxu0 0
    %2073 = vmatpush1.bf16.msra.mxu0 %v2046
    %2074 = vmatprep.subr.bf16.mxu0 0
    %2075 = vmatpush1.bf16.msra.mxu0 %v2047
    %2076 = vmatprep.subr.bf16.mxu0 0
    %2077 = vmatpush1.bf16.msra.mxu0 %v2048
    %2078 = vmatprep.subr.bf16.mxu0 0
    %2079 = vmatpush1.bf16.msra.mxu0 %v2049
    %2080 = vmatprep.subr.bf16.mxu0 0
    %2081 = vmatpush1.bf16.msra.mxu0 %v2064
    %2082 = vmatprep.subr.bf16.mxu0 0
    %2083 = vmatpush1.bf16.msra.mxu0 0
    %2084 = vmatprep.subr.bf16.mxu0 0
    %2085 = vmatpush1.bf16.msra.mxu0 0
    %2086 = vmatprep.subr.bf16.mxu0 0
    %2087 = vmatpush1.bf16.msra.mxu0 0
    %2088 = vmatprep.subr.bf16.mxu0 0
    %2089 = vmatpush1.bf16.msra.mxu0 0
    %2090 = vmatprep.subr.bf16.mxu0 0
    %2091 = vmatpush1.bf16.msra.mxu0 0
    %2092 = vmatprep.subr.bf16.mxu0 0
    %2093 = vmatpush1.bf16.msra.mxu0 0
    %2094 = vmatprep.subr.bf16.mxu0 0
    %2095 = vmatpush1.bf16.msra.mxu0 0
    %2096 = vmatprep.subr.bf16.mxu0 0
    %2097 = vmatpush1.bf16.msra.mxu0 0
    %2098 = vmatprep.mubr.bf16.mxu0 0
    %2099 = vmatmul.mubr.bf16.gmra.mrb[0].mxu0 %v2060
    %v2100 = vpop.f32.mrb[0].mxu0
    %v2101 = vadd.f32 %v2011, %v2100
    %v2102 = vpop.f32.mrb[0].mxu0
    %v2103 = vpop.f32.mrb[0].mxu0
    %v2104 = vpop.f32.mrb[0].mxu0
    %2105 = vdwg.mxu0
    %v2106 = vmax.f32 %v2101, 0.0
    %v2107 = vpack.c.bf16 %v2106, %v2106
    %v2108 = vld [vmem:[%s10] sm:$0xf]
    %v2109 = vld [vmem:[%s10 + $0x4] sm:$0xf]
    %v2110 = vld [vmem:[%s10 + $0x8] sm:$0xf]
    %v2111 = vld [vmem:[%s10 + $0xc] sm:$0xf]
    %v2112 = vld [vmem:[%s10 + $0x10] sm:$0xf]
    %v2113 = vld [vmem:[%s10 + $0x14] sm:$0xf]
    %v2114 = vld [vmem:[%s10 + $0x18] sm:$0xf]
    %v2115 = vld [vmem:[%s10 + $0x1c] sm:$0xf]
    %v2116 = vld [vmem:[%s10 + $0x20] sm:$0xf]
    %v2117 = vld [vmem:[%s10 + $0x24] sm:$0xf]
    %v2118 = vld [vmem:[%s10 + $0x28] sm:$0x3]
    %v2119 = vld [vmem:[%s11] sm:$0x1]
    %v2121 = vlaneseq
    %v2122 = vshrl.u32 %v2121, 7
    %v2123 = vsub.s32 0, %v2122
    %v2124 = vrot.slane %v2119, %v2123
    %v2137 = vunpack.c.l.b16 %v2108
    %v2138 = vunpack.c.l.b16 %v2109
    %v2139 = vunpack.c.l.b16 %v2110
    %v2140 = vunpack.c.l.b16 %v2111
    %v2141 = vunpack.c.l.b16 %v2112
    %v2142 = vunpack.c.l.b16 %v2113
    %v2143 = vunpack.c.l.b16 %v2114
    %v2144 = vunpack.c.l.b16 %v2115
    %v2145 = vunpack.c.l.b16 %v2116
    %v2146 = vunpack.c.l.b16 %v2117
    %v2147 = vunpack.c.l.b16 %v2118
    %v2148 = vpack.c.b16 %v2138, %v2137
    %v2149 = vpack.c.b16 %v2140, %v2139
    %v2150 = vpack.c.b16 %v2142, %v2141
    %v2151 = vpack.c.b16 %v2144, %v2143
    %v2152 = vpack.c.b16 %v2146, %v2145
    %v2153 = vpack.c.b16 %v2147, %v2147
    %vm2159 = vcmask 687104
    %v2161 = vsel %vm2159, %v2107, 0
    %vm2163 = vcmask 1041408
    %v2165 = vsel %vm2163, %v2153, 0
    %2167 = vmatprep.subr.bf16.mxu0 0
    %2168 = vmatpush1.bf16.msra.mxu0 %v2148
    %2169 = vmatprep.subr.bf16.mxu0 0
    %2170 = vmatpush1.bf16.msra.mxu0 %v2149
    %2171 = vmatprep.subr.bf16.mxu0 0
    %2172 = vmatpush1.bf16.msra.mxu0 %v2150
    %2173 = vmatprep.subr.bf16.mxu0 0
    %2174 = vmatpush1.bf16.msra.mxu0 %v2151
    %2175 = vmatprep.subr.bf16.mxu0 0
    %2176 = vmatpush1.bf16.msra.mxu0 %v2152
    %2177 = vmatprep.subr.bf16.mxu0 0
    %2178 = vmatpush1.bf16.msra.mxu0 %v2165
    %2179 = vmatprep.subr.bf16.mxu0 0
    %2180 = vmatpush1.bf16.msra.mxu0 0
    %2181 = vmatprep.subr.bf16.mxu0 0
    %2182 = vmatpush1.bf16.msra.mxu0 0
    %2183 = vmatprep.subr.bf16.mxu0 0
    %2184 = vmatpush1.bf16.msra.mxu0 0
    %2185 = vmatprep.subr.bf16.mxu0 0
    %2186 = vmatpush1.bf16.msra.mxu0 0
    %2187 = vmatprep.subr.bf16.mxu0 0
    %2188 = vmatpush1.bf16.msra.mxu0 0
    %2189 = vmatprep.subr.bf16.mxu0 0
    %2190 = vmatpush1.bf16.msra.mxu0 0
    %2191 = vmatprep.subr.bf16.mxu0 0
    %2192 = vmatpush1.bf16.msra.mxu0 0
    %2193 = vmatprep.subr.bf16.mxu0 0
    %2194 = vmatpush1.bf16.msra.mxu0 0
    %2195 = vmatprep.subr.bf16.mxu0 0
    %2196 = vmatpush1.bf16.msra.mxu0 0
    %2197 = vmatprep.subr.bf16.mxu0 0
    %2198 = vmatpush1.bf16.msra.mxu0 0
    %2199 = vmatprep.mubr.bf16.mxu0 0
    %2200 = vmatmul.mubr.bf16.gmra.mrb[0].mxu0 %v2161
    %v2201 = vpop.f32.mrb[0].mxu0
    %v2202 = vadd.f32 %v2124, %v2201
    %v2203 = vpop.f32.mrb[0].mxu0
    %v2204 = vpop.f32.mrb[0].mxu0
    %v2205 = vpop.f32.mrb[0].mxu0
    %2206 = vdwg.mxu0
    %vm2207 = vcmask 74752
    %2208 = vst.msk [vmem:[#allocation2] sm:$0x3] %vm2207, %v2202
    // Predicated region
    $region50: #{lenet_forward.3} parent=1 // pred_check
      _
    $region51: #{lenet_forward.3} parent=1 // pred_check_branch
      %2210 = sbr.rel (0) target = $region53
    $region52: #{lenet_forward.3} parent=1 // pred_region
      %s2212 = ssub.s32 32, 32
      %2213 = vsyncadd [#allocation3], %s2212
      %s2215 = sshll.u32 [#allocation2], 4
      %s2216 = int_to_ptr.vmem [resolvable:$true] %s2215
      %2218 = dma.vmem_to_hbm [thread:$0]  %s2216, 32, %s12, [#allocation3]
    $region53: #{lenet_forward.3} parent=1 // pred_fallthru
      _
    // Predicated region
    $region54: #{lenet_forward.3} parent=1 // pred_check
      _
    $region55: #{lenet_forward.3} parent=1 // pred_check_branch
      %2220 = sbr.rel (0) target = $region57
    $region56: #{lenet_forward.3} parent=1 // pred_region
      %2221 = dma.done [#allocation3], 32
    $region57: #{lenet_forward.3} parent=1 // pred_fallthru
      _
    %2222 = vsyncpa [#allocation3], 1

</llo_original>
